<compile_context>
chip_gen: v5e
topology: v5e:2x2
jax: 0.10.0
libtpu: 0.0.40
codegen_flags: <defaults>
</compile_context>

<pallas_src>
import jax
import jax.numpy as jnp
from jax import lax
from jax.experimental import pallas as pl
from jax.experimental.pallas import tpu as pltpu


def _conv3x3_bias_relu(pad_ref, w_ref, b_ref, rows, W, cin, cout):
    """3x3 'valid' conv over a pre-padded scratch -> bias -> ReLU.

    pad_ref: (rows+2, W+2, cin) Ref (compute dtype)
    w_ref:   (9*cin, cout) Ref, rows ordered (kh, kw, cin)
    b_ref:   (1, cout) Ref (f32)
    Returns (rows, W, cout) float32.
    """
    acc = None
    for kh in range(3):
        for kw in range(3):
            tap = pad_ref[kh:kh + rows, kw:kw + W, :].reshape(rows * W, cin)
            t = kh * 3 + kw
            wt = w_ref[t * cin:(t + 1) * cin, :]
            p = jnp.dot(tap, wt, preferred_element_type=jnp.float32)
            acc = p if acc is None else acc + p
    y = jnp.maximum(acc + b_ref[...].astype(jnp.float32), 0.0)
    return y.reshape(rows, W, cout)


def _convblock_kernel(x_ref, xt_ref, xb_ref, w1_ref, b1_ref, w2_ref, b2_ref,
                      o_ref, xpad_ref, mid_ref):
    # x_ref:   (TH, W, Cin)   current row strip (batch dim squeezed)
    # xt_ref:  (2, W, Cin)    2-row halo above the strip (clamped at the edge)
    # xb_ref:  (2, W, Cin)    2-row halo below the strip (clamped at the edge)
    # w1_ref:  (9*Cin, C1)    b1_ref: (1, C1) f32
    # w2_ref:  (9*C1,  C1)    b2_ref: (1, C1) f32
    # o_ref:   (TH, W, C1)    output strip
    # xpad_ref:(TH+4, W+2, Cin)  compute-dtype scratch (input + halo, padded)
    # mid_ref: (TH+2, W+2, C1)   compute-dtype scratch (layer-1 act, padded)
    TH, W, C1 = o_ref.shape
    Cin = x_ref.shape[-1]
    cdt = xpad_ref.dtype
    i = pl.program_id(1)
    last = pl.num_programs(1) - 1

    # ---- stage input strip + halo rows into the padded scratch --------------
    # Only the 1-pixel halo *columns* are zeroed (cheap); halo rows get real
    # data below and are masked to zero at the image top/bottom.
    zcol_x = jnp.zeros((TH + 4, 1, Cin), cdt)
    xpad_ref[:, 0:1, :] = zcol_x
    xpad_ref[:, W + 1:W + 2, :] = zcol_x

    xpad_ref[0:2, 1:W + 1, :] = xt_ref[...].astype(cdt)
    xpad_ref[2:TH + 2, 1:W + 1, :] = x_ref[...].astype(cdt)
    xpad_ref[TH + 2:TH + 4, 1:W + 1, :] = xb_ref[...].astype(cdt)

    zrow_x = jnp.zeros((2, W, Cin), cdt)

    @pl.when(i == 0)
    def _():  # rows above the image are conv padding
        xpad_ref[0:2, 1:W + 1, :] = zrow_x

    @pl.when(i == last)
    def _():  # rows below the image are conv padding
        xpad_ref[TH + 2:TH + 4, 1:W + 1, :] = zrow_x

    # ---- layer 1: conv + bias + ReLU over TH+2 rows (strip + 1-row halo) ----
    y1 = _conv3x3_bias_relu(xpad_ref, w1_ref, b1_ref, TH + 2, W, Cin, C1)

    # Layer-1 activation stays resident in VMEM (fusion), padded for layer 2.
    zcol_m = jnp.zeros((TH + 2, 1, C1), cdt)
    mid_ref[:, 0:1, :] = zcol_m
    mid_ref[:, W + 1:W + 2, :] = zcol_m
    mid_ref[:, 1:W + 1, :] = y1.astype(cdt)

    zrow_m = jnp.zeros((1, W, C1), cdt)

    @pl.when(i == 0)
    def _():  # layer-1 "row -1" is conv padding, not ReLU(bias)
        mid_ref[0:1, 1:W + 1, :] = zrow_m

    @pl.when(i == last)
    def _():  # layer-1 "row H" is conv padding
        mid_ref[TH + 1:TH + 2, 1:W + 1, :] = zrow_m

    # ---- layer 2: conv + bias + ReLU over the TH output rows ----------------
    y2 = _conv3x3_bias_relu(mid_ref, w2_ref, b2_ref, TH, W, C1, C1)
    o_ref[...] = y2.astype(o_ref.dtype)


def _estimate_vmem_bytes(TH, W, Cin, C1, csz, osz):
    blocks = (2 * (TH + 4) * W * Cin * csz        # input strip + halos, dbl-buffered
              + 2 * TH * W * C1 * osz             # output strip, dbl-buffered
              + 2 * (9 * Cin * C1 + 9 * C1 * C1 + 2 * C1) * max(csz, 4))
    scratch = ((TH + 4) * (W + 2) * Cin + (TH + 2) * (W + 2) * C1) * csz
    live = 2 * (TH + 2) * W * C1 * 4              # f32 value accumulators
    return blocks + scratch + live


def _choose_strip_rows(H, W, Cin, C1, compute_dtype, out_dtype,
                       budget_bytes=20 * 2 ** 20):
    """Largest even divisor of H whose strip working set fits the VMEM budget."""
    if H % 2 != 0:
        return H  # odd H: single strip (halo blocks are masked anyway)
    csz = jnp.dtype(compute_dtype).itemsize
    osz = jnp.dtype(out_dtype).itemsize
    for th in sorted((d for d in range(2, H + 1, 2) if H % d == 0), reverse=True):
        if _estimate_vmem_bytes(th, W, Cin, C1, csz, osz) <= budget_bytes:
            return th
    return 2


def convblock_forward_nhwc(x_nhwc, w1_oihw, b1, w2_oihw, b2, *,
                           compute_dtype=jnp.float32, strip_rows=None):
    """Fused Conv3x3(+bias)+ReLU -> Conv3x3(+bias)+ReLU, 'same' padding, NHWC.

    compute_dtype feeds the MXU (bf16 recommended on v5e/v6e/v7x); accumulation,
    bias and ReLU stay float32.  Output dtype matches the input dtype.
    """
    N, H, W, Cin = x_nhwc.shape
    C1 = w1_oihw.shape[0]
    out_dtype = x_nhwc.dtype

    TH = strip_rows if strip_rows is not None else _choose_strip_rows(
        H, W, Cin, C1, compute_dtype, out_dtype)
    if H % TH != 0 or (TH % 2 != 0 and TH != H):
        TH = H  # fall back to a single whole-image strip
    S = H // TH

    # OIHW -> HWIO -> (9*Cin, Cout); row index (kh*3+kw)*Cin + cin matches the
    # kernel's tap order.
    x = x_nhwc.astype(compute_dtype)
    w1 = jnp.transpose(w1_oihw, (2, 3, 1, 0)).reshape(9 * Cin, C1).astype(compute_dtype)
    w2 = jnp.transpose(w2_oihw, (2, 3, 1, 0)).reshape(9 * C1, C1).astype(compute_dtype)
    b1r = b1.reshape(1, C1).astype(jnp.float32)
    b2r = b2.reshape(1, C1).astype(jnp.float32)

    csz = jnp.dtype(compute_dtype).itemsize
    osz = jnp.dtype(out_dtype).itemsize
    vmem_needed = _estimate_vmem_bytes(TH, W, Cin, C1, csz, osz)
    vmem_limit = int(min(max(2 * vmem_needed, 32 * 2 ** 20), 100 * 2 ** 20))

    flops = int(2 * N * H * W * 9 * (Cin * C1 + C1 * C1))
    bytes_accessed = int(
        N * (H + 4 * S) * W * Cin * csz                  # input strips + halo re-reads
        + (9 * Cin * C1 + 9 * C1 * C1) * csz + 2 * C1 * 4  # weights + biases
        + N * H * W * C1 * osz)                          # output

    th_half = TH // 2  # TH is even whenever S > 1

    in_specs = [
        # main strip
        pl.BlockSpec((None, TH, W, Cin), lambda n, i: (n, i, 0, 0)),
        # 2-row halo above (block index clamped at the top edge; masked in-kernel)
        pl.BlockSpec((None, 2, W, Cin),
                     lambda n, i: (n, jnp.maximum(i * th_half - 1, 0), 0, 0)),
        # 2-row halo below (clamped at the bottom edge; masked in-kernel)
        pl.BlockSpec((None, 2, W, Cin),
                     lambda n, i: (n, jnp.minimum((i + 1) * th_half, H // 2 - 1), 0, 0)),
        pl.BlockSpec((9 * Cin, C1), lambda n, i: (0, 0)),
        pl.BlockSpec((1, C1), lambda n, i: (0, 0)),
        pl.BlockSpec((9 * C1, C1), lambda n, i: (0, 0)),
        pl.BlockSpec((1, C1), lambda n, i: (0, 0)),
    ]

    out_nhwc = pl.pallas_call(
        _convblock_kernel,
        out_shape=jax.ShapeDtypeStruct((N, H, W, C1), out_dtype),
        grid_spec=pltpu.PrefetchScalarGridSpec(
            num_scalar_prefetch=0,
            grid=(N, S),
            in_specs=in_specs,
            out_specs=pl.BlockSpec((None, TH, W, C1), lambda n, i: (n, i, 0, 0)),
            scratch_shapes=[
                pltpu.VMEM((TH + 4, W + 2, Cin), compute_dtype),  # padded input strip
                pltpu.VMEM((TH + 2, W + 2, C1), compute_dtype),   # padded layer-1 act
            ],
        ),
        compiler_params=pltpu.CompilerParams(
            dimension_semantics=("parallel", "parallel"),
            vmem_limit_bytes=vmem_limit,
        ),
        cost_estimate=pl.CostEstimate(flops=flops, transcendentals=0,
                                      bytes_accessed=bytes_accessed),
    )(x, x, x, w1, b1r, w2, b2r)

    return out_nhwc


def convblock_forward(x_nchw, w1_oihw, b1, w2_oihw, b2, *,
                      compute_dtype=jnp.float32, strip_rows=None):
    """PyTorch-layout entry point (NCHW in, NCHW out)."""
    # TODO(synk): a full NHWC UNet should call convblock_forward_nhwc directly;
    # these two transposes are an extra HBM round trip of the activation.
    x = jnp.transpose(x_nchw, (0, 2, 3, 1))
    y = convblock_forward_nhwc(x, w1_oihw, b1, w2_oihw, b2,
                               compute_dtype=compute_dtype, strip_rows=strip_rows)
    return jnp.transpose(y, (0, 3, 1, 2))


class ConvBlockPallas:
    """Mirror of the PyTorch ConvBlock: Conv2d->ReLU->Conv2d->ReLU."""

    def __init__(self, in_channels, out_channels, key):
        k1, k2, k3, k4 = jax.random.split(key, 4)
        fan1 = in_channels * 9
        bound1 = 1.0 / float(fan1) ** 0.5
        self.w1 = jax.random.uniform(k1, (out_channels, in_channels, 3, 3),
                                     jnp.float32, -bound1, bound1)   # OIHW
        self.b1 = jax.random.uniform(k2, (out_channels,), jnp.float32,
                                     -bound1, bound1)
        fan2 = out_channels * 9
        bound2 = 1.0 / float(fan2) ** 0.5
        self.w2 = jax.random.uniform(k3, (out_channels, out_channels, 3, 3),
                                     jnp.float32, -bound2, bound2)   # OIHW
        self.b2 = jax.random.uniform(k4, (out_channels,), jnp.float32,
                                     -bound2, bound2)

    def __call__(self, x_nchw, *, compute_dtype=jnp.float32, strip_rows=None):
        return convblock_forward(x_nchw, self.w1, self.b1, self.w2, self.b2,
                                 compute_dtype=compute_dtype,
                                 strip_rows=strip_rows)


def _reference(x_nchw, block):
    dn = ('NCHW', 'OIHW', 'NCHW')
    y = lax.conv_general_dilated(x_nchw, block.w1, (1, 1), 'SAME',
                                 dimension_numbers=dn)
    y = jax.nn.relu(y + block.b1[None, :, None, None])
    y = lax.conv_general_dilated(y, block.w2, (1, 1), 'SAME',
                                 dimension_numbers=dn)
    y = jax.nn.relu(y + block.b2[None, :, None, None])
    return y


if __name__ == "__main__":
    key = jax.random.PRNGKey(0)
    kx, kp = jax.random.split(key)

    N, Cin, Cout, HW = 2, 4, 8, 16
    x = jax.random.normal(kx, (N, Cin, HW, HW), dtype=jnp.float32)  # NCHW

    block = ConvBlockPallas(Cin, Cout, kp)
    ref = jax.block_until_ready(_reference(x, block))

    # f32 path, forced multi-strip tiling (exercises the 2-row halo / boundary
    # masking logic across strips).
    out_strips = jax.block_until_ready(block(x, strip_rows=8))
    assert out_strips.shape == (N, Cout, HW, HW)
    assert jnp.allclose(out_strips, ref, atol=1e-4, rtol=1e-4)

    # f32 path, auto strip selection (single strip at this small size).
    out_auto = jax.block_until_ready(block(x))
    assert jnp.allclose(out_auto, ref, atol=1e-4, rtol=1e-4)

    # bf16 MXU-input path (f32 accumulation) — valid on v5e / v6e / v7x.
    out_bf16 = jax.block_until_ready(
        block(x, compute_dtype=jnp.bfloat16, strip_rows=8))
    assert out_bf16.shape == (N, Cout, HW, HW)
    assert jnp.allclose(out_bf16, ref, atol=5e-2, rtol=5e-2)

    print("KERNEL_OK")
</pallas_src>

<mosaic_0001>
module attributes {stable_mosaic.version = 11 : i64} {
  func.func @_convblock_kernel(%arg0: i32, %arg1: i32, %arg2: memref<1x8x16x4xf32, #tpu.memory_space<vmem>>, %arg3: memref<1x2x16x4xf32, #tpu.memory_space<vmem>>, %arg4: memref<1x2x16x4xf32, #tpu.memory_space<vmem>>, %arg5: memref<36x8xf32, #tpu.memory_space<vmem>>, %arg6: memref<1x8xf32, #tpu.memory_space<vmem>>, %arg7: memref<72x8xf32, #tpu.memory_space<vmem>>, %arg8: memref<1x8xf32, #tpu.memory_space<vmem>>, %arg9: memref<1x8x16x8xf32, #tpu.memory_space<vmem>>, %arg10: memref<12x18x4xf32, #tpu.memory_space<vmem>>, %arg11: memref<10x18x8xf32, #tpu.memory_space<vmem>>) attributes {dimension_semantics = [#tpu.dimension_semantics<parallel>, #tpu.dimension_semantics<parallel>], iteration_bounds = array<i64: 2, 2>, scalar_prefetch = 0 : i64, scratch_operands = 2 : i64, tpu.core_type = #tpu.core_type<tc>, window_params = [{transform_indices = @transform_0, window_bounds = array<i64: 1, 8, 16, 4>}, {transform_indices = @transform_1, window_bounds = array<i64: 1, 2, 16, 4>}, {transform_indices = @transform_2, window_bounds = array<i64: 1, 2, 16, 4>}, {pipeline_mode = #tpu.pipeline_mode<synchronous>, transform_indices = @transform_3, window_bounds = array<i64: 36, 8>}, {pipeline_mode = #tpu.pipeline_mode<synchronous>, transform_indices = @transform_4, window_bounds = array<i64: 1, 8>}, {pipeline_mode = #tpu.pipeline_mode<synchronous>, transform_indices = @transform_5, window_bounds = array<i64: 72, 8>}, {pipeline_mode = #tpu.pipeline_mode<synchronous>, transform_indices = @transform_6, window_bounds = array<i64: 1, 8>}, {transform_indices = @transform_7, window_bounds = array<i64: 1, 8, 16, 8>}]} {
    %cst = arith.constant 0.000000e+00 : f32
    %0 = vector.broadcast %cst : f32 to vector<12x1x4xf32>
    %c0 = arith.constant 0 : index
    %c0_0 = arith.constant 0 : index
    %c0_1 = arith.constant 0 : index
    %1 = vector.load %arg10[%c0, %c0_0, %c0_1] : memref<12x18x4xf32, #tpu.memory_space<vmem>>, vector<12x1x4xf32>
    tpu.vector_store %arg10[%c0, %c0_0, %c0_1], %0 {strides = array<i32>} : memref<12x18x4xf32, #tpu.memory_space<vmem>>, vector<12x1x4xf32>,
    %c0_2 = arith.constant 0 : index
    %c17 = arith.constant 17 : index
    %c0_3 = arith.constant 0 : index
    %2 = vector.load %arg10[%c0_2, %c17, %c0_3] : memref<12x18x4xf32, #tpu.memory_space<vmem>>, vector<12x1x4xf32>
    tpu.vector_store %arg10[%c0_2, %c17, %c0_3], %0 {strides = array<i32>} : memref<12x18x4xf32, #tpu.memory_space<vmem>>, vector<12x1x4xf32>,
    %c0_4 = arith.constant 0 : index
    %c0_5 = arith.constant 0 : index
    %c0_6 = arith.constant 0 : index
    %c0_7 = arith.constant 0 : index
    %3 = vector.load %arg3[%c0_4, %c0_5, %c0_6, %c0_7] : memref<1x2x16x4xf32, #tpu.memory_space<vmem>>, vector<1x2x16x4xf32>
    %4 = vector.shape_cast %3 : vector<1x2x16x4xf32> to vector<2x16x4xf32>
    %c0_8 = arith.constant 0 : index
    %c1 = arith.constant 1 : index
    %c0_9 = arith.constant 0 : index
    %5 = vector.load %arg10[%c0_8, %c1, %c0_9] : memref<12x18x4xf32, #tpu.memory_space<vmem>>, vector<2x16x4xf32>
    tpu.vector_store %arg10[%c0_8, %c1, %c0_9], %4 {strides = array<i32>} : memref<12x18x4xf32, #tpu.memory_space<vmem>>, vector<2x16x4xf32>,
    %c0_10 = arith.constant 0 : index
    %c0_11 = arith.constant 0 : index
    %c0_12 = arith.constant 0 : index
    %c0_13 = arith.constant 0 : index
    %6 = vector.load %arg2[%c0_10, %c0_11, %c0_12, %c0_13] : memref<1x8x16x4xf32, #tpu.memory_space<vmem>>, vector<1x8x16x4xf32>
    %7 = vector.shape_cast %6 : vector<1x8x16x4xf32> to vector<8x16x4xf32>
    %c2 = arith.constant 2 : index
    %c1_14 = arith.constant 1 : index
    %c0_15 = arith.constant 0 : index
    %8 = vector.load %arg10[%c2, %c1_14, %c0_15] : memref<12x18x4xf32, #tpu.memory_space<vmem>>, vector<8x16x4xf32>
    tpu.vector_store %arg10[%c2, %c1_14, %c0_15], %7 {strides = array<i32>} : memref<12x18x4xf32, #tpu.memory_space<vmem>>, vector<8x16x4xf32>,
    %c0_16 = arith.constant 0 : index
    %c0_17 = arith.constant 0 : index
    %c0_18 = arith.constant 0 : index
    %c0_19 = arith.constant 0 : index
    %9 = vector.load %arg4[%c0_16, %c0_17, %c0_18, %c0_19] : memref<1x2x16x4xf32, #tpu.memory_space<vmem>>, vector<1x2x16x4xf32>
    %10 = vector.shape_cast %9 : vector<1x2x16x4xf32> to vector<2x16x4xf32>
    %c10 = arith.constant 10 : index
    %c1_20 = arith.constant 1 : index
    %c0_21 = arith.constant 0 : index
    %11 = vector.load %arg10[%c10, %c1_20, %c0_21] : memref<12x18x4xf32, #tpu.memory_space<vmem>>, vector<2x16x4xf32>
    tpu.vector_store %arg10[%c10, %c1_20, %c0_21], %10 {strides = array<i32>} : memref<12x18x4xf32, #tpu.memory_space<vmem>>, vector<2x16x4xf32>,
    %cst_22 = arith.constant 0.000000e+00 : f32
    %12 = vector.broadcast %cst_22 : f32 to vector<2x16x4xf32>
    %c0_i32 = arith.constant 0 : i32
    %13 = arith.cmpi eq, %arg1, %c0_i32 : i32
    %14 = arith.extui %13 : i1 to i32
    %c0_i32_23 = arith.constant 0 : i32
    %15 = arith.cmpi ne, %14, %c0_i32_23 : i32
    scf.if %15 {
      %c0_146 = arith.constant 0 : index
      %c1_147 = arith.constant 1 : index
      %c0_148 = arith.constant 0 : index
      %133 = vector.load %arg10[%c0_146, %c1_147, %c0_148] : memref<12x18x4xf32, #tpu.memory_space<vmem>>, vector<2x16x4xf32>
      tpu.vector_store %arg10[%c0_146, %c1_147, %c0_148], %12 {strides = array<i32>} : memref<12x18x4xf32, #tpu.memory_space<vmem>>, vector<2x16x4xf32>,
    } else {
    }
    %c1_i32 = arith.constant 1 : i32
    %16 = arith.cmpi eq, %arg1, %c1_i32 : i32
    %17 = arith.extui %16 : i1 to i32
    %c0_i32_24 = arith.constant 0 : i32
    %18 = arith.cmpi ne, %17, %c0_i32_24 : i32
    scf.if %18 {
      %c10_146 = arith.constant 10 : index
      %c1_147 = arith.constant 1 : index
      %c0_148 = arith.constant 0 : index
      %133 = vector.load %arg10[%c10_146, %c1_147, %c0_148] : memref<12x18x4xf32, #tpu.memory_space<vmem>>, vector<2x16x4xf32>
      tpu.vector_store %arg10[%c10_146, %c1_147, %c0_148], %12 {strides = array<i32>} : memref<12x18x4xf32, #tpu.memory_space<vmem>>, vector<2x16x4xf32>,
    } else {
    }
    %c0_25 = arith.constant 0 : index
    %c0_26 = arith.constant 0 : index
    %c0_27 = arith.constant 0 : index
    %19 = vector.load %arg10[%c0_25, %c0_26, %c0_27] : memref<12x18x4xf32, #tpu.memory_space<vmem>>, vector<10x16x4xf32>
    %20 = vector.shape_cast %19 : vector<10x16x4xf32> to vector<160x4xf32>
    %c0_28 = arith.constant 0 : index
    %c0_29 = arith.constant 0 : index
    %21 = vector.load %arg5[%c0_28, %c0_29] : memref<36x8xf32, #tpu.memory_space<vmem>>, vector<4x8xf32>
    %cst_30 = arith.constant dense<0.000000e+00> : vector<160x8xf32>
    %22 = tpu.matmul %20, %21, %cst_30 {dimension_numbers = #tpu.dot_dimension_numbers<[1], [0], [0], [1], [0, 0, 1, 1], [], []>} : vector<160x4xf32>, vector<4x8xf32>, vector<160x8xf32> -> vector<160x8xf32>
    %c0_31 = arith.constant 0 : index
    %c1_32 = arith.constant 1 : index
    %c0_33 = arith.constant 0 : index
    %23 = vector.load %arg10[%c0_31, %c1_32, %c0_33] : memref<12x18x4xf32, #tpu.memory_space<vmem>>, vector<10x16x4xf32>
    %24 = vector.shape_cast %23 : vector<10x16x4xf32> to vector<160x4xf32>
    %c4 = arith.constant 4 : index
    %c0_34 = arith.constant 0 : index
    %25 = vector.load %arg5[%c4, %c0_34] : memref<36x8xf32, #tpu.memory_space<vmem>>, vector<4x8xf32>
    %cst_35 = arith.constant dense<0.000000e+00> : vector<160x8xf32>
    %26 = tpu.matmul %24, %25, %cst_35 {dimension_numbers = #tpu.dot_dimension_numbers<[1], [0], [0], [1], [0, 0, 1, 1], [], []>} : vector<160x4xf32>, vector<4x8xf32>, vector<160x8xf32> -> vector<160x8xf32>
    %27 = arith.addf %22, %26 : vector<160x8xf32>
    %c0_36 = arith.constant 0 : index
    %c2_37 = arith.constant 2 : index
    %c0_38 = arith.constant 0 : index
    %28 = vector.load %arg10[%c0_36, %c2_37, %c0_38] : memref<12x18x4xf32, #tpu.memory_space<vmem>>, vector<10x16x4xf32>
    %29 = vector.shape_cast %28 : vector<10x16x4xf32> to vector<160x4xf32>
    %c8 = arith.constant 8 : index
    %c0_39 = arith.constant 0 : index
    %30 = vector.load %arg5[%c8, %c0_39] : memref<36x8xf32, #tpu.memory_space<vmem>>, vector<4x8xf32>
    %cst_40 = arith.constant dense<0.000000e+00> : vector<160x8xf32>
    %31 = tpu.matmul %29, %30, %cst_40 {dimension_numbers = #tpu.dot_dimension_numbers<[1], [0], [0], [1], [0, 0, 1, 1], [], []>} : vector<160x4xf32>, vector<4x8xf32>, vector<160x8xf32> -> vector<160x8xf32>
    %32 = arith.addf %27, %31 : vector<160x8xf32>
    %c1_41 = arith.constant 1 : index
    %c0_42 = arith.constant 0 : index
    %c0_43 = arith.constant 0 : index
    %33 = vector.load %arg10[%c1_41, %c0_42, %c0_43] : memref<12x18x4xf32, #tpu.memory_space<vmem>>, vector<10x16x4xf32>
    %34 = vector.shape_cast %33 : vector<10x16x4xf32> to vector<160x4xf32>
    %c12 = arith.constant 12 : index
    %c0_44 = arith.constant 0 : index
    %35 = vector.load %arg5[%c12, %c0_44] : memref<36x8xf32, #tpu.memory_space<vmem>>, vector<4x8xf32>
    %cst_45 = arith.constant dense<0.000000e+00> : vector<160x8xf32>
    %36 = tpu.matmul %34, %35, %cst_45 {dimension_numbers = #tpu.dot_dimension_numbers<[1], [0], [0], [1], [0, 0, 1, 1], [], []>} : vector<160x4xf32>, vector<4x8xf32>, vector<160x8xf32> -> vector<160x8xf32>
    %37 = arith.addf %32, %36 : vector<160x8xf32>
    %c1_46 = arith.constant 1 : index
    %c1_47 = arith.constant 1 : index
    %c0_48 = arith.constant 0 : index
    %38 = vector.load %arg10[%c1_46, %c1_47, %c0_48] : memref<12x18x4xf32, #tpu.memory_space<vmem>>, vector<10x16x4xf32>
    %39 = vector.shape_cast %38 : vector<10x16x4xf32> to vector<160x4xf32>
    %c16 = arith.constant 16 : index
    %c0_49 = arith.constant 0 : index
    %40 = vector.load %arg5[%c16, %c0_49] : memref<36x8xf32, #tpu.memory_space<vmem>>, vector<4x8xf32>
    %cst_50 = arith.constant dense<0.000000e+00> : vector<160x8xf32>
    %41 = tpu.matmul %39, %40, %cst_50 {dimension_numbers = #tpu.dot_dimension_numbers<[1], [0], [0], [1], [0, 0, 1, 1], [], []>} : vector<160x4xf32>, vector<4x8xf32>, vector<160x8xf32> -> vector<160x8xf32>
    %42 = arith.addf %37, %41 : vector<160x8xf32>
    %c1_51 = arith.constant 1 : index
    %c2_52 = arith.constant 2 : index
    %c0_53 = arith.constant 0 : index
    %43 = vector.load %arg10[%c1_51, %c2_52, %c0_53] : memref<12x18x4xf32, #tpu.memory_space<vmem>>, vector<10x16x4xf32>
    %44 = vector.shape_cast %43 : vector<10x16x4xf32> to vector<160x4xf32>
    %c20 = arith.constant 20 : index
    %c0_54 = arith.constant 0 : index
    %45 = vector.load %arg5[%c20, %c0_54] : memref<36x8xf32, #tpu.memory_space<vmem>>, vector<4x8xf32>
    %cst_55 = arith.constant dense<0.000000e+00> : vector<160x8xf32>
    %46 = tpu.matmul %44, %45, %cst_55 {dimension_numbers = #tpu.dot_dimension_numbers<[1], [0], [0], [1], [0, 0, 1, 1], [], []>} : vector<160x4xf32>, vector<4x8xf32>, vector<160x8xf32> -> vector<160x8xf32>
    %47 = arith.addf %42, %46 : vector<160x8xf32>
    %c2_56 = arith.constant 2 : index
    %c0_57 = arith.constant 0 : index
    %c0_58 = arith.constant 0 : index
    %48 = vector.load %arg10[%c2_56, %c0_57, %c0_58] : memref<12x18x4xf32, #tpu.memory_space<vmem>>, vector<10x16x4xf32>
    %49 = vector.shape_cast %48 : vector<10x16x4xf32> to vector<160x4xf32>
    %c24 = arith.constant 24 : index
    %c0_59 = arith.constant 0 : index
    %50 = vector.load %arg5[%c24, %c0_59] : memref<36x8xf32, #tpu.memory_space<vmem>>, vector<4x8xf32>
    %cst_60 = arith.constant dense<0.000000e+00> : vector<160x8xf32>
    %51 = tpu.matmul %49, %50, %cst_60 {dimension_numbers = #tpu.dot_dimension_numbers<[1], [0], [0], [1], [0, 0, 1, 1], [], []>} : vector<160x4xf32>, vector<4x8xf32>, vector<160x8xf32> -> vector<160x8xf32>
    %52 = arith.addf %47, %51 : vector<160x8xf32>
    %c2_61 = arith.constant 2 : index
    %c1_62 = arith.constant 1 : index
    %c0_63 = arith.constant 0 : index
    %53 = vector.load %arg10[%c2_61, %c1_62, %c0_63] : memref<12x18x4xf32, #tpu.memory_space<vmem>>, vector<10x16x4xf32>
    %54 = vector.shape_cast %53 : vector<10x16x4xf32> to vector<160x4xf32>
    %c28 = arith.constant 28 : index
    %c0_64 = arith.constant 0 : index
    %55 = vector.load %arg5[%c28, %c0_64] : memref<36x8xf32, #tpu.memory_space<vmem>>, vector<4x8xf32>
    %cst_65 = arith.constant dense<0.000000e+00> : vector<160x8xf32>
    %56 = tpu.matmul %54, %55, %cst_65 {dimension_numbers = #tpu.dot_dimension_numbers<[1], [0], [0], [1], [0, 0, 1, 1], [], []>} : vector<160x4xf32>, vector<4x8xf32>, vector<160x8xf32> -> vector<160x8xf32>
    %57 = arith.addf %52, %56 : vector<160x8xf32>
    %c2_66 = arith.constant 2 : index
    %c2_67 = arith.constant 2 : index
    %c0_68 = arith.constant 0 : index
    %58 = vector.load %arg10[%c2_66, %c2_67, %c0_68] : memref<12x18x4xf32, #tpu.memory_space<vmem>>, vector<10x16x4xf32>
    %59 = vector.shape_cast %58 : vector<10x16x4xf32> to vector<160x4xf32>
    %c32 = arith.constant 32 : index
    %c0_69 = arith.constant 0 : index
    %60 = vector.load %arg5[%c32, %c0_69] : memref<36x8xf32, #tpu.memory_space<vmem>>, vector<4x8xf32>
    %cst_70 = arith.constant dense<0.000000e+00> : vector<160x8xf32>
    %61 = tpu.matmul %59, %60, %cst_70 {dimension_numbers = #tpu.dot_dimension_numbers<[1], [0], [0], [1], [0, 0, 1, 1], [], []>} : vector<160x4xf32>, vector<4x8xf32>, vector<160x8xf32> -> vector<160x8xf32>
    %62 = arith.addf %57, %61 : vector<160x8xf32>
    %c0_71 = arith.constant 0 : index
    %c0_72 = arith.constant 0 : index
    %63 = vector.load %arg6[%c0_71, %c0_72] : memref<1x8xf32, #tpu.memory_space<vmem>>, vector<1x8xf32>
    %64 = vector.broadcast %63 : vector<1x8xf32> to vector<160x8xf32>
    %65 = arith.addf %62, %64 : vector<160x8xf32>
    %cst_73 = arith.constant 0.000000e+00 : f32
    %66 = vector.broadcast %cst_73 : f32 to vector<160x8xf32>
    %67 = arith.maximumf %65, %66 : vector<160x8xf32>
    %68 = vector.shape_cast %67 : vector<160x8xf32> to vector<10x16x8xf32>
    %cst_74 = arith.constant 0.000000e+00 : f32
    %69 = vector.broadcast %cst_74 : f32 to vector<10x1x8xf32>
    %c0_75 = arith.constant 0 : index
    %c0_76 = arith.constant 0 : index
    %c0_77 = arith.constant 0 : index
    %70 = vector.load %arg11[%c0_75, %c0_76, %c0_77] : memref<10x18x8xf32, #tpu.memory_space<vmem>>, vector<10x1x8xf32>
    tpu.vector_store %arg11[%c0_75, %c0_76, %c0_77], %69 {strides = array<i32>} : memref<10x18x8xf32, #tpu.memory_space<vmem>>, vector<10x1x8xf32>,
    %c0_78 = arith.constant 0 : index
    %c17_79 = arith.constant 17 : index
    %c0_80 = arith.constant 0 : index
    %71 = vector.load %arg11[%c0_78, %c17_79, %c0_80] : memref<10x18x8xf32, #tpu.memory_space<vmem>>, vector<10x1x8xf32>
    tpu.vector_store %arg11[%c0_78, %c17_79, %c0_80], %69 {strides = array<i32>} : memref<10x18x8xf32, #tpu.memory_space<vmem>>, vector<10x1x8xf32>,
    %c0_81 = arith.constant 0 : index
    %c1_82 = arith.constant 1 : index
    %c0_83 = arith.constant 0 : index
    %72 = vector.load %arg11[%c0_81, %c1_82, %c0_83] : memref<10x18x8xf32, #tpu.memory_space<vmem>>, vector<10x16x8xf32>
    tpu.vector_store %arg11[%c0_81, %c1_82, %c0_83], %68 {strides = array<i32>} : memref<10x18x8xf32, #tpu.memory_space<vmem>>, vector<10x16x8xf32>,
    %cst_84 = arith.constant 0.000000e+00 : f32
    %73 = vector.broadcast %cst_84 : f32 to vector<1x16x8xf32>
    %c0_i32_85 = arith.constant 0 : i32
    %74 = arith.cmpi eq, %arg1, %c0_i32_85 : i32
    %75 = arith.extui %74 : i1 to i32
    %c0_i32_86 = arith.constant 0 : i32
    %76 = arith.cmpi ne, %75, %c0_i32_86 : i32
    scf.if %76 {
      %c0_146 = arith.constant 0 : index
      %c1_147 = arith.constant 1 : index
      %c0_148 = arith.constant 0 : index
      %133 = vector.load %arg11[%c0_146, %c1_147, %c0_148] : memref<10x18x8xf32, #tpu.memory_space<vmem>>, vector<1x16x8xf32>
      tpu.vector_store %arg11[%c0_146, %c1_147, %c0_148], %73 {strides = array<i32>} : memref<10x18x8xf32, #tpu.memory_space<vmem>>, vector<1x16x8xf32>,
    } else {
    }
    %c1_i32_87 = arith.constant 1 : i32
    %77 = arith.cmpi eq, %arg1, %c1_i32_87 : i32
    %78 = arith.extui %77 : i1 to i32
    %c0_i32_88 = arith.constant 0 : i32
    %79 = arith.cmpi ne, %78, %c0_i32_88 : i32
    scf.if %79 {
      %c9 = arith.constant 9 : index
      %c1_146 = arith.constant 1 : index
      %c0_147 = arith.constant 0 : index
      %133 = vector.load %arg11[%c9, %c1_146, %c0_147] : memref<10x18x8xf32, #tpu.memory_space<vmem>>, vector<1x16x8xf32>
      tpu.vector_store %arg11[%c9, %c1_146, %c0_147], %73 {strides = array<i32>} : memref<10x18x8xf32, #tpu.memory_space<vmem>>, vector<1x16x8xf32>,
    } else {
    }
    %c0_89 = arith.constant 0 : index
    %c0_90 = arith.constant 0 : index
    %c0_91 = arith.constant 0 : index
    %80 = vector.load %arg11[%c0_89, %c0_90, %c0_91] : memref<10x18x8xf32, #tpu.memory_space<vmem>>, vector<8x16x8xf32>
    %81 = vector.shape_cast %80 : vector<8x16x8xf32> to vector<128x8xf32>
    %c0_92 = arith.constant 0 : index
    %c0_93 = arith.constant 0 : index
    %82 = vector.load %arg7[%c0_92, %c0_93] : memref<72x8xf32, #tpu.memory_space<vmem>>, vector<8x8xf32>
    %cst_94 = arith.constant dense<0.000000e+00> : vector<128x8xf32>
    %83 = tpu.matmul %81, %82, %cst_94 {dimension_numbers = #tpu.dot_dimension_numbers<[1], [0], [0], [1], [0, 0, 1, 1], [], []>} : vector<128x8xf32>, vector<8x8xf32>, vector<128x8xf32> -> vector<128x8xf32>
    %c0_95 = arith.constant 0 : index
    %c1_96 = arith.constant 1 : index
    %c0_97 = arith.constant 0 : index
    %84 = vector.load %arg11[%c0_95, %c1_96, %c0_97] : memref<10x18x8xf32, #tpu.memory_space<vmem>>, vector<8x16x8xf32>
    %85 = vector.shape_cast %84 : vector<8x16x8xf32> to vector<128x8xf32>
    %c8_98 = arith.constant 8 : index
    %c0_99 = arith.constant 0 : index
    %86 = vector.load %arg7[%c8_98, %c0_99] : memref<72x8xf32, #tpu.memory_space<vmem>>, vector<8x8xf32>
    %cst_100 = arith.constant dense<0.000000e+00> : vector<128x8xf32>
    %87 = tpu.matmul %85, %86, %cst_100 {dimension_numbers = #tpu.dot_dimension_numbers<[1], [0], [0], [1], [0, 0, 1, 1], [], []>} : vector<128x8xf32>, vector<8x8xf32>, vector<128x8xf32> -> vector<128x8xf32>
    %88 = arith.addf %83, %87 : vector<128x8xf32>
    %c0_101 = arith.constant 0 : index
    %c2_102 = arith.constant 2 : index
    %c0_103 = arith.constant 0 : index
    %89 = vector.load %arg11[%c0_101, %c2_102, %c0_103] : memref<10x18x8xf32, #tpu.memory_space<vmem>>, vector<8x16x8xf32>
    %90 = vector.shape_cast %89 : vector<8x16x8xf32> to vector<128x8xf32>
    %c16_104 = arith.constant 16 : index
    %c0_105 = arith.constant 0 : index
    %91 = vector.load %arg7[%c16_104, %c0_105] : memref<72x8xf32, #tpu.memory_space<vmem>>, vector<8x8xf32>
    %cst_106 = arith.constant dense<0.000000e+00> : vector<128x8xf32>
    %92 = tpu.matmul %90, %91, %cst_106 {dimension_numbers = #tpu.dot_dimension_numbers<[1], [0], [0], [1], [0, 0, 1, 1], [], []>} : vector<128x8xf32>, vector<8x8xf32>, vector<128x8xf32> -> vector<128x8xf32>
    %93 = arith.addf %88, %92 : vector<128x8xf32>
    %c1_107 = arith.constant 1 : index
    %c0_108 = arith.constant 0 : index
    %c0_109 = arith.constant 0 : index
    %94 = vector.load %arg11[%c1_107, %c0_108, %c0_109] : memref<10x18x8xf32, #tpu.memory_space<vmem>>, vector<8x16x8xf32>
    %95 = vector.shape_cast %94 : vector<8x16x8xf32> to vector<128x8xf32>
    %c24_110 = arith.constant 24 : index
    %c0_111 = arith.constant 0 : index
    %96 = vector.load %arg7[%c24_110, %c0_111] : memref<72x8xf32, #tpu.memory_space<vmem>>, vector<8x8xf32>
    %cst_112 = arith.constant dense<0.000000e+00> : vector<128x8xf32>
    %97 = tpu.matmul %95, %96, %cst_112 {dimension_numbers = #tpu.dot_dimension_numbers<[1], [0], [0], [1], [0, 0, 1, 1], [], []>} : vector<128x8xf32>, vector<8x8xf32>, vector<128x8xf32> -> vector<128x8xf32>
    %98 = arith.addf %93, %97 : vector<128x8xf32>
    %c1_113 = arith.constant 1 : index
    %c1_114 = arith.constant 1 : index
    %c0_115 = arith.constant 0 : index
    %99 = vector.load %arg11[%c1_113, %c1_114, %c0_115] : memref<10x18x8xf32, #tpu.memory_space<vmem>>, vector<8x16x8xf32>
    %100 = vector.shape_cast %99 : vector<8x16x8xf32> to vector<128x8xf32>
    %c32_116 = arith.constant 32 : index
    %c0_117 = arith.constant 0 : index
    %101 = vector.load %arg7[%c32_116, %c0_117] : memref<72x8xf32, #tpu.memory_space<vmem>>, vector<8x8xf32>
    %cst_118 = arith.constant dense<0.000000e+00> : vector<128x8xf32>
    %102 = tpu.matmul %100, %101, %cst_118 {dimension_numbers = #tpu.dot_dimension_numbers<[1], [0], [0], [1], [0, 0, 1, 1], [], []>} : vector<128x8xf32>, vector<8x8xf32>, vector<128x8xf32> -> vector<128x8xf32>
    %103 = arith.addf %98, %102 : vector<128x8xf32>
    %c1_119 = arith.constant 1 : index
    %c2_120 = arith.constant 2 : index
    %c0_121 = arith.constant 0 : index
    %104 = vector.load %arg11[%c1_119, %c2_120, %c0_121] : memref<10x18x8xf32, #tpu.memory_space<vmem>>, vector<8x16x8xf32>
    %105 = vector.shape_cast %104 : vector<8x16x8xf32> to vector<128x8xf32>
    %c40 = arith.constant 40 : index
    %c0_122 = arith.constant 0 : index
    %106 = vector.load %arg7[%c40, %c0_122] : memref<72x8xf32, #tpu.memory_space<vmem>>, vector<8x8xf32>
    %cst_123 = arith.constant dense<0.000000e+00> : vector<128x8xf32>
    %107 = tpu.matmul %105, %106, %cst_123 {dimension_numbers = #tpu.dot_dimension_numbers<[1], [0], [0], [1], [0, 0, 1, 1], [], []>} : vector<128x8xf32>, vector<8x8xf32>, vector<128x8xf32> -> vector<128x8xf32>
    %108 = arith.addf %103, %107 : vector<128x8xf32>
    %c2_124 = arith.constant 2 : index
    %c0_125 = arith.constant 0 : index
    %c0_126 = arith.constant 0 : index
    %109 = vector.load %arg11[%c2_124, %c0_125, %c0_126] : memref<10x18x8xf32, #tpu.memory_space<vmem>>, vector<8x16x8xf32>
    %110 = vector.shape_cast %109 : vector<8x16x8xf32> to vector<128x8xf32>
    %c48 = arith.constant 48 : index
    %c0_127 = arith.constant 0 : index
    %111 = vector.load %arg7[%c48, %c0_127] : memref<72x8xf32, #tpu.memory_space<vmem>>, vector<8x8xf32>
    %cst_128 = arith.constant dense<0.000000e+00> : vector<128x8xf32>
    %112 = tpu.matmul %110, %111, %cst_128 {dimension_numbers = #tpu.dot_dimension_numbers<[1], [0], [0], [1], [0, 0, 1, 1], [], []>} : vector<128x8xf32>, vector<8x8xf32>, vector<128x8xf32> -> vector<128x8xf32>
    %113 = arith.addf %108, %112 : vector<128x8xf32>
    %c2_129 = arith.constant 2 : index
    %c1_130 = arith.constant 1 : index
    %c0_131 = arith.constant 0 : index
    %114 = vector.load %arg11[%c2_129, %c1_130, %c0_131] : memref<10x18x8xf32, #tpu.memory_space<vmem>>, vector<8x16x8xf32>
    %115 = vector.shape_cast %114 : vector<8x16x8xf32> to vector<128x8xf32>
    %c56 = arith.constant 56 : index
    %c0_132 = arith.constant 0 : index
    %116 = vector.load %arg7[%c56, %c0_132] : memref<72x8xf32, #tpu.memory_space<vmem>>, vector<8x8xf32>
    %cst_133 = arith.constant dense<0.000000e+00> : vector<128x8xf32>
    %117 = tpu.matmul %115, %116, %cst_133 {dimension_numbers = #tpu.dot_dimension_numbers<[1], [0], [0], [1], [0, 0, 1, 1], [], []>} : vector<128x8xf32>, vector<8x8xf32>, vector<128x8xf32> -> vector<128x8xf32>
    %118 = arith.addf %113, %117 : vector<128x8xf32>
    %c2_134 = arith.constant 2 : index
    %c2_135 = arith.constant 2 : index
    %c0_136 = arith.constant 0 : index
    %119 = vector.load %arg11[%c2_134, %c2_135, %c0_136] : memref<10x18x8xf32, #tpu.memory_space<vmem>>, vector<8x16x8xf32>
    %120 = vector.shape_cast %119 : vector<8x16x8xf32> to vector<128x8xf32>
    %c64 = arith.constant 64 : index
    %c0_137 = arith.constant 0 : index
    %121 = vector.load %arg7[%c64, %c0_137] : memref<72x8xf32, #tpu.memory_space<vmem>>, vector<8x8xf32>
    %cst_138 = arith.constant dense<0.000000e+00> : vector<128x8xf32>
    %122 = tpu.matmul %120, %121, %cst_138 {dimension_numbers = #tpu.dot_dimension_numbers<[1], [0], [0], [1], [0, 0, 1, 1], [], []>} : vector<128x8xf32>, vector<8x8xf32>, vector<128x8xf32> -> vector<128x8xf32>
    %123 = arith.addf %118, %122 : vector<128x8xf32>
    %c0_139 = arith.constant 0 : index
    %c0_140 = arith.constant 0 : index
    %124 = vector.load %arg8[%c0_139, %c0_140] : memref<1x8xf32, #tpu.memory_space<vmem>>, vector<1x8xf32>
    %125 = vector.broadcast %124 : vector<1x8xf32> to vector<128x8xf32>
    %126 = arith.addf %123, %125 : vector<128x8xf32>
    %cst_141 = arith.constant 0.000000e+00 : f32
    %127 = vector.broadcast %cst_141 : f32 to vector<128x8xf32>
    %128 = arith.maximumf %126, %127 : vector<128x8xf32>
    %129 = vector.shape_cast %128 : vector<128x8xf32> to vector<8x16x8xf32>
    %c0_142 = arith.constant 0 : index
    %c0_143 = arith.constant 0 : index
    %c0_144 = arith.constant 0 : index
    %c0_145 = arith.constant 0 : index
    %130 = vector.load %arg9[%c0_142, %c0_143, %c0_144, %c0_145] : memref<1x8x16x8xf32, #tpu.memory_space<vmem>>, vector<1x8x16x8xf32>
    %131 = vector.shape_cast %130 : vector<1x8x16x8xf32> to vector<8x16x8xf32>
    %132 = vector.shape_cast %129 : vector<8x16x8xf32> to vector<1x8x16x8xf32>
    tpu.vector_store %arg9[%c0_142, %c0_143, %c0_144, %c0_145], %132 {strides = array<i32>} : memref<1x8x16x8xf32, #tpu.memory_space<vmem>>, vector<1x8x16x8xf32>,
    return
  }
  func.func @transform_0(%arg0: i32, %arg1: i32) -> (i32, i32, i32, i32) {
    %c0_i32 = arith.constant 0 : i32
    %c0_i32_0 = arith.constant 0 : i32
    %c0_i32_1 = arith.constant 0 : i32
    return %arg0, %arg1, %c0_i32, %c0_i32_0 : i32, i32, i32, i32
  }
  func.func @transform_1(%arg0: i32, %arg1: i32) -> (i32, i32, i32, i32) {
    %c4_i32 = arith.constant 4 : i32
    %0 = arith.muli %arg1, %c4_i32 : i32
    %c1_i32 = arith.constant 1 : i32
    %1 = arith.subi %0, %c1_i32 : i32
    %c0_i32 = arith.constant 0 : i32
    %2 = arith.maxsi %1, %c0_i32 : i32
    %c0_i32_0 = arith.constant 0 : i32
    %c0_i32_1 = arith.constant 0 : i32
    %c0_i32_2 = arith.constant 0 : i32
    return %arg0, %2, %c0_i32_0, %c0_i32_1 : i32, i32, i32, i32
  }
  func.func @transform_2(%arg0: i32, %arg1: i32) -> (i32, i32, i32, i32) {
    %c1_i32 = arith.constant 1 : i32
    %0 = arith.addi %arg1, %c1_i32 : i32
    %c4_i32 = arith.constant 4 : i32
    %1 = arith.muli %0, %c4_i32 : i32
    %c7_i32 = arith.constant 7 : i32
    %2 = arith.minsi %1, %c7_i32 : i32
    %c0_i32 = arith.constant 0 : i32
    %c0_i32_0 = arith.constant 0 : i32
    %c0_i32_1 = arith.constant 0 : i32
    return %arg0, %2, %c0_i32, %c0_i32_0 : i32, i32, i32, i32
  }
  func.func @transform_3(%arg0: i32, %arg1: i32) -> (i32, i32) {
    %c0_i32 = arith.constant 0 : i32
    %c0_i32_0 = arith.constant 0 : i32
    %c0_i32_1 = arith.constant 0 : i32
    return %c0_i32, %c0_i32_0 : i32, i32
  }
  func.func @transform_4(%arg0: i32, %arg1: i32) -> (i32, i32) {
    %c0_i32 = arith.constant 0 : i32
    %c0_i32_0 = arith.constant 0 : i32
    %c0_i32_1 = arith.constant 0 : i32
    return %c0_i32, %c0_i32_0 : i32, i32
  }
  func.func @transform_5(%arg0: i32, %arg1: i32) -> (i32, i32) {
    %c0_i32 = arith.constant 0 : i32
    %c0_i32_0 = arith.constant 0 : i32
    %c0_i32_1 = arith.constant 0 : i32
    return %c0_i32, %c0_i32_0 : i32, i32
  }
  func.func @transform_6(%arg0: i32, %arg1: i32) -> (i32, i32) {
    %c0_i32 = arith.constant 0 : i32
    %c0_i32_0 = arith.constant 0 : i32
    %c0_i32_1 = arith.constant 0 : i32
    return %c0_i32, %c0_i32_0 : i32, i32
  }
  func.func @transform_7(%arg0: i32, %arg1: i32) -> (i32, i32, i32, i32) {
    %c0_i32 = arith.constant 0 : i32
    %c0_i32_0 = arith.constant 0 : i32
    %c0_i32_1 = arith.constant 0 : i32
    return %arg0, %arg1, %c0_i32, %c0_i32_0 : i32, i32, i32, i32
  }
}

</mosaic_0001>

<llo_original>
// kernel: tpu_custom_call.1
$region0: #{tpu_custom_call.1}
  #allocation0 [shape = 'u32[]', space=smem, size = 0x4, offset = 0x4, fixed_abs, tag = 'smem constant byte address 0x4 - core index']
  #allocation1 [shape = 'u32[72,128]{1,0:T(1,128)}', space=vmem, size = 0x9000, scoped, tag = 'internal scratch']
  #allocation2 [shape = 'f32[12,18,4]{2,1,0:T(8,128)}', space=vmem, size = 0x24000, scoped, tag = 'scratch operand']
  #allocation3 [shape = 'f32[10,18,8]{2,1,0:T(8,128)}', space=vmem, size = 0x1e000, scoped, tag = 'scratch operand']
  %s0 = inlined_call_operand.vmem [shape: f32[2,16,16,4], index: 0, kind: input, shape index: {}]
  %s1 = inlined_call_operand.vmem [shape: f32[2,16,16,4], index: 1, kind: input, shape index: {}]
  %s2 = inlined_call_operand.vmem [shape: f32[2,16,16,4], index: 2, kind: input, shape index: {}]
  %s3 = inlined_call_operand.vmem [shape: f32[36,8], index: 3, kind: input, shape index: {}]
  %s4 = inlined_call_operand.vmem [shape: f32[1,8], index: 4, kind: input, shape index: {}]
  %s5 = inlined_call_operand.vmem [shape: f32[72,8], index: 5, kind: input, shape index: {}]
  %s6 = inlined_call_operand.vmem [shape: f32[1,8], index: 6, kind: input, shape index: {}]
  %s7 = inlined_call_operand.vmem [shape: f32[2,16,16,8], index: 7, kind: output, shape index: {}]
  %s8 = sld [smem:[#allocation0]]
  $region77: #{tpu_custom_call.1} parent=0
    _
  %s10 = ssub.s32 1, %s8
  %s11 = scalar_select 0, %s10, %s8
  loop: start=0, step=1, limit=6
  $region2: #{tpu_custom_call.1} parent=0 // loop_pre_header
    _
  $region3: #{tpu_custom_call.1} parent=0 // loop_header
    %s13 = sphi 0, %s17
    %p14 = scmp.ge.s32.totalorder %s13, 6
    %s20 = sphi 0, %s32
    %s21 = sphi 0, %s28
    %s22 = sphi 0, %s20
    %s23 = sphi 0, %s21
    %s24 = sphi 0, %s22
    %s25 = sphi 0, %s23
    %s37 = sphi 0, %s39
    %s40 = sphi 0, %s37
    %s41 = sphi 0, %s40
    %s57 = sphi 0, %s41
    %s73 = sphi 0, %s75
    %s76 = sphi 0, %s73
    %s77 = sphi 0, %s76
    %s93 = sphi 0, %s77
    %s109 = sphi 0, %s111
    %s112 = sphi 0, %s109
    %s113 = sphi 0, %s112
    %s129 = sphi 0, %s113
    %s133 = sphi 0, %s133
    %s135 = sphi 0, %s133
    %s136 = sphi 0, %s135
    %s150 = sphi 0, %s136
    %s154 = sphi 0, %s154
    %s156 = sphi 0, %s154
    %s157 = sphi 0, %s156
    %s171 = sphi 0, %s157
    %s175 = sphi 0, %s175
    %s177 = sphi 0, %s175
    %s178 = sphi 0, %s177
    %s192 = sphi 0, %s178
    %s196 = sphi 0, %s196
    %s198 = sphi 0, %s196
    %s199 = sphi 0, %s198
    %s213 = sphi 0, %s199
    %s221 = sphi 0, %s223
    %s224 = sphi 0, %s221
    %s225 = sphi 0, %s224
    %s241 = sphi 0, %s225
  $region4: #{tpu_custom_call.1} parent=0 // loop_header_branch
    %16 = sbr.rel (%p14) target = $region8
  $region5: #{tpu_custom_call.1} parent=0 // loop_body
    %s18 = ssub.s32 %s13, 1
    %s19 = ssub.s32 %s13, 2
    %s26 = sadd.s32 1, %s21
    %p27 = scmp.ge.s32.totalorder %s26, 2
    %s28 = scalar_select %p27, 0, %s26
    %s29 = sadd.s32 1, %s20
    %s30 = scalar_select %p27, %s29, %s20
    %p31 = scmp.ge.s32.totalorder %s30, 2
    %s32 = scalar_select %p31, 0, %s30
    %s33 = ssub.s32 %s20, %s32
    %s34 = ssub.s32 %s21, %s28
    %s35 = sor.u32 %s33, %s34
    %p36 = scmp.eq.s32.totalorder %s35, 0
    %s38 = sadd.s32 %s37, 1
    %s39 = scalar_select %p36, %s37, %s38
    %p42 = pneg %p36
    %p43 = scmp.eq.s32.totalorder %s13, 3
    %p44 = por %p42, %p43
    %p45 = scmp.ne.s32.totalorder %s37, %s40
    %p46 = scmp.eq.s32.totalorder %s13, 0
    %p47 = por %p45, %p46
    %p48 = scmp.ne.s32.totalorder %s37, %s40
    %p49 = scmp.eq.s32.totalorder %s18, 3
    %p50 = por %p48, %p49
    %p51 = scmp.ne.s32.totalorder %s40, %s41
    %p52 = scmp.eq.s32.totalorder %s18, 0
    %p53 = por %p51, %p52
    %p54 = scmp.ne.s32.totalorder %s40, %s41
    %p55 = scmp.eq.s32.totalorder %s19, 3
    %p56 = por %p54, %p55
    %p58 = scmp.ne.s32.totalorder %s41, %s57
    %p59 = scmp.eq.s32.totalorder %s19, 0
    %p60 = por %p58, %p59
    %s61 = smul.u32 %s21, 4
    %s62 = ssub.s32 %s61, 1
    %p63 = scmp.gt.s32.totalorder %s62, 0
    %s64 = scalar_select %p63, %s62, 0
    %s65 = smul.u32 %s28, 4
    %s66 = ssub.s32 %s65, 1
    %p67 = scmp.gt.s32.totalorder %s66, 0
    %s68 = scalar_select %p67, %s66, 0
    %s69 = ssub.s32 %s20, %s32
    %s70 = ssub.s32 %s64, %s68
    %s71 = sor.u32 %s69, %s70
    %p72 = scmp.eq.s32.totalorder %s71, 0
    %s74 = sadd.s32 %s73, 1
    %s75 = scalar_select %p72, %s73, %s74
    %p78 = pneg %p72
    %p79 = scmp.eq.s32.totalorder %s13, 3
    %p80 = por %p78, %p79
    %p81 = scmp.ne.s32.totalorder %s73, %s76
    %p82 = scmp.eq.s32.totalorder %s13, 0
    %p83 = por %p81, %p82
    %p84 = scmp.ne.s32.totalorder %s73, %s76
    %p85 = scmp.eq.s32.totalorder %s18, 3
    %p86 = por %p84, %p85
    %p87 = scmp.ne.s32.totalorder %s76, %s77
    %p88 = scmp.eq.s32.totalorder %s18, 0
    %p89 = por %p87, %p88
    %p90 = scmp.ne.s32.totalorder %s76, %s77
    %p91 = scmp.eq.s32.totalorder %s19, 3
    %p92 = por %p90, %p91
    %p94 = scmp.ne.s32.totalorder %s77, %s93
    %p95 = scmp.eq.s32.totalorder %s19, 0
    %p96 = por %p94, %p95
    %s97 = sadd.s32 %s21, 1
    %s98 = smul.u32 %s97, 4
    %p99 = scmp.lt.s32.totalorder %s98, 7
    %s100 = scalar_select %p99, %s98, 7
    %s101 = sadd.s32 %s28, 1
    %s102 = smul.u32 %s101, 4
    %p103 = scmp.lt.s32.totalorder %s102, 7
    %s104 = scalar_select %p103, %s102, 7
    %s105 = ssub.s32 %s20, %s32
    %s106 = ssub.s32 %s100, %s104
    %s107 = sor.u32 %s105, %s106
    %p108 = scmp.eq.s32.totalorder %s107, 0
    %s110 = sadd.s32 %s109, 1
    %s111 = scalar_select %p108, %s109, %s110
    %p114 = pneg %p108
    %p115 = scmp.eq.s32.totalorder %s13, 3
    %p116 = por %p114, %p115
    %p117 = scmp.ne.s32.totalorder %s109, %s112
    %p118 = scmp.eq.s32.totalorder %s13, 0
    %p119 = por %p117, %p118
    %p120 = scmp.ne.s32.totalorder %s109, %s112
    %p121 = scmp.eq.s32.totalorder %s18, 3
    %p122 = por %p120, %p121
    %p123 = scmp.ne.s32.totalorder %s112, %s113
    %p124 = scmp.eq.s32.totalorder %s18, 0
    %p125 = por %p123, %p124
    %p126 = scmp.ne.s32.totalorder %s112, %s113
    %p127 = scmp.eq.s32.totalorder %s19, 3
    %p128 = por %p126, %p127
    %p130 = scmp.ne.s32.totalorder %s113, %s129
    %p131 = scmp.eq.s32.totalorder %s19, 0
    %p132 = por %p130, %p131
    %s134 = sadd.s32 %s133, 1
    %p137 = scmp.eq.s32.totalorder %s13, 3
    %p138 = scmp.ne.s32.totalorder %s133, %s135
    %p139 = scmp.eq.s32.totalorder %s13, 0
    %p140 = por %p138, %p139
    %p141 = scmp.ne.s32.totalorder %s133, %s135
    %p142 = scmp.eq.s32.totalorder %s18, 3
    %p143 = por %p141, %p142
    %p144 = scmp.ne.s32.totalorder %s135, %s136
    %p145 = scmp.eq.s32.totalorder %s18, 0
    %p146 = por %p144, %p145
    %p147 = scmp.ne.s32.totalorder %s135, %s136
    %p148 = scmp.eq.s32.totalorder %s19, 3
    %p149 = por %p147, %p148
    %p151 = scmp.ne.s32.totalorder %s136, %s150
    %p152 = scmp.eq.s32.totalorder %s19, 0
    %p153 = por %p151, %p152
    %s155 = sadd.s32 %s154, 1
    %p158 = scmp.eq.s32.totalorder %s13, 3
    %p159 = scmp.ne.s32.totalorder %s154, %s156
    %p160 = scmp.eq.s32.totalorder %s13, 0
    %p161 = por %p159, %p160
    %p162 = scmp.ne.s32.totalorder %s154, %s156
    %p163 = scmp.eq.s32.totalorder %s18, 3
    %p164 = por %p162, %p163
    %p165 = scmp.ne.s32.totalorder %s156, %s157
    %p166 = scmp.eq.s32.totalorder %s18, 0
    %p167 = por %p165, %p166
    %p168 = scmp.ne.s32.totalorder %s156, %s157
    %p169 = scmp.eq.s32.totalorder %s19, 3
    %p170 = por %p168, %p169
    %p172 = scmp.ne.s32.totalorder %s157, %s171
    %p173 = scmp.eq.s32.totalorder %s19, 0
    %p174 = por %p172, %p173
    %s176 = sadd.s32 %s175, 1
    %p179 = scmp.eq.s32.totalorder %s13, 3
    %p180 = scmp.ne.s32.totalorder %s175, %s177
    %p181 = scmp.eq.s32.totalorder %s13, 0
    %p182 = por %p180, %p181
    %p183 = scmp.ne.s32.totalorder %s175, %s177
    %p184 = scmp.eq.s32.totalorder %s18, 3
    %p185 = por %p183, %p184
    %p186 = scmp.ne.s32.totalorder %s177, %s178
    %p187 = scmp.eq.s32.totalorder %s18, 0
    %p188 = por %p186, %p187
    %p189 = scmp.ne.s32.totalorder %s177, %s178
    %p190 = scmp.eq.s32.totalorder %s19, 3
    %p191 = por %p189, %p190
    %p193 = scmp.ne.s32.totalorder %s178, %s192
    %p194 = scmp.eq.s32.totalorder %s19, 0
    %p195 = por %p193, %p194
    %s197 = sadd.s32 %s196, 1
    %p200 = scmp.eq.s32.totalorder %s13, 3
    %p201 = scmp.ne.s32.totalorder %s196, %s198
    %p202 = scmp.eq.s32.totalorder %s13, 0
    %p203 = por %p201, %p202
    %p204 = scmp.ne.s32.totalorder %s196, %s198
    %p205 = scmp.eq.s32.totalorder %s18, 3
    %p206 = por %p204, %p205
    %p207 = scmp.ne.s32.totalorder %s198, %s199
    %p208 = scmp.eq.s32.totalorder %s18, 0
    %p209 = por %p207, %p208
    %p210 = scmp.ne.s32.totalorder %s198, %s199
    %p211 = scmp.eq.s32.totalorder %s19, 3
    %p212 = por %p210, %p211
    %p214 = scmp.ne.s32.totalorder %s199, %s213
    %p215 = scmp.eq.s32.totalorder %s19, 0
    %p216 = por %p214, %p215
    %s217 = ssub.s32 %s20, %s32
    %s218 = ssub.s32 %s21, %s28
    %s219 = sor.u32 %s217, %s218
    %p220 = scmp.eq.s32.totalorder %s219, 0
    %s222 = sadd.s32 %s221, 1
    %s223 = scalar_select %p220, %s221, %s222
    %p226 = pneg %p220
    %p227 = scmp.eq.s32.totalorder %s13, 3
    %p228 = por %p226, %p227
    %p229 = scmp.ne.s32.totalorder %s221, %s224
    %p230 = scmp.eq.s32.totalorder %s13, 0
    %p231 = por %p229, %p230
    %p232 = scmp.ne.s32.totalorder %s221, %s224
    %p233 = scmp.eq.s32.totalorder %s18, 3
    %p234 = por %p232, %p233
    %p235 = scmp.ne.s32.totalorder %s224, %s225
    %p236 = scmp.eq.s32.totalorder %s18, 0
    %p237 = por %p235, %p236
    %p238 = scmp.ne.s32.totalorder %s224, %s225
    %p239 = scmp.eq.s32.totalorder %s19, 3
    %p240 = por %p238, %p239
    %p242 = scmp.ne.s32.totalorder %s225, %s241
    %p243 = scmp.eq.s32.totalorder %s19, 0
    %p244 = por %p242, %p243
    %p245 = scmp.le.s32.totalorder 1, %s13
    %p246 = scmp.lt.s32.totalorder %s13, 5
    %p247 = pnand %p245, %p246
    %p248 = pneg %p247
    // Predicated region
    $region9: #{tpu_custom_call.1} parent=5 // pred_check
      _
    $region10: #{tpu_custom_call.1} parent=5 // pred_check_branch
      %250 = sbr.rel (%p247) target = $region12
    $region11: #{tpu_custom_call.1} parent=5 // pred_region
      %s251 = ssub.s32 %s13, 1
      // Predicated region
      $region13: #{tpu_custom_call.1} parent=11 // pred_check
        %p252 = pneg %p146
      $region14: #{tpu_custom_call.1} parent=11 // pred_check_branch
        %254 = sbr.rel (%p252) target = $region16
      $region15: #{tpu_custom_call.1} parent=11 // pred_region
        _
      $region16: #{tpu_custom_call.1} parent=11 // pred_fallthru
        _
      // Predicated region
      $region17: #{tpu_custom_call.1} parent=11 // pred_check
        %p255 = pneg %p167
      $region18: #{tpu_custom_call.1} parent=11 // pred_check_branch
        %257 = sbr.rel (%p255) target = $region20
      $region19: #{tpu_custom_call.1} parent=11 // pred_region
        _
      $region20: #{tpu_custom_call.1} parent=11 // pred_fallthru
        _
      // Predicated region
      $region21: #{tpu_custom_call.1} parent=11 // pred_check
        %p258 = pneg %p188
      $region22: #{tpu_custom_call.1} parent=11 // pred_check_branch
        %260 = sbr.rel (%p258) target = $region24
      $region23: #{tpu_custom_call.1} parent=11 // pred_region
        _
      $region24: #{tpu_custom_call.1} parent=11 // pred_fallthru
        _
      // Predicated region
      $region25: #{tpu_custom_call.1} parent=11 // pred_check
        %p261 = pneg %p209
      $region26: #{tpu_custom_call.1} parent=11 // pred_check_branch
        %263 = sbr.rel (%p261) target = $region28
      $region27: #{tpu_custom_call.1} parent=11 // pred_region
        _
      $region28: #{tpu_custom_call.1} parent=11 // pred_fallthru
        _
    $region12: #{tpu_custom_call.1} parent=5 // pred_fallthru
      _
    %p264 = scmp.lt.s32.totalorder %s13, 4
    // Predicated region
    $region29: #{tpu_custom_call.1} parent=5 // pred_check
      %p265 = pneg %p264
    $region30: #{tpu_custom_call.1} parent=5 // pred_check_branch
      %267 = sbr.rel (%p265) target = $region32
    $region31: #{tpu_custom_call.1} parent=5 // pred_region
      // Predicated region
      $region33: #{tpu_custom_call.1} parent=31 // pred_check
        %p268 = pneg %p47
      $region34: #{tpu_custom_call.1} parent=31 // pred_check_branch
        %270 = sbr.rel (%p268) target = $region36
      $region35: #{tpu_custom_call.1} parent=31 // pred_region
        %s271 = smul.u32 8, %s21
        %p272 = scmp.lt.s32.totalorder %s20, 1
        %s273 = scalar_select %p272, %s20, 1
        %p274 = scmp.lt.s32.totalorder %s271, 15
        %s275 = scalar_select %p274, %s271, 15
        %s276 = smul.addr %s275, 2
        %s277 = smul.addr %s273, 32
        %s278 = sadd.s32 %s276, %s277
        %s279 = smul.addr %s278, 8
        %s280 = scalar_lea.vmem %s0, %s279
        %s281 = smul.u32 8, %s21
      $region36: #{tpu_custom_call.1} parent=31 // pred_fallthru
        _
      // Predicated region
      $region37: #{tpu_custom_call.1} parent=31 // pred_check
        %p282 = pneg %p83
      $region38: #{tpu_custom_call.1} parent=31 // pred_check_branch
        %284 = sbr.rel (%p282) target = $region40
      $region39: #{tpu_custom_call.1} parent=31 // pred_region
        %s285 = smul.u32 %s21, 4
        %s286 = ssub.s32 %s285, 1
        %p287 = scmp.gt.s32.totalorder %s286, 0
        %s288 = scalar_select %p287, %s286, 0
        %s289 = smul.u32 2, %s288
        %p290 = scmp.lt.s32.totalorder %s20, 1
        %s291 = scalar_select %p290, %s20, 1
        %p292 = scmp.lt.s32.totalorder %s289, 15
        %s293 = scalar_select %p292, %s289, 15
        %s294 = smul.addr %s293, 2
        %s295 = smul.addr %s291, 32
        %s296 = sadd.s32 %s294, %s295
        %s297 = smul.addr %s296, 8
        %s298 = scalar_lea.vmem %s1, %s297
        %s299 = smul.u32 %s21, 4
        %s300 = ssub.s32 %s299, 1
        %p301 = scmp.gt.s32.totalorder %s300, 0
        %s302 = scalar_select %p301, %s300, 0
        %s303 = smul.u32 2, %s302
      $region40: #{tpu_custom_call.1} parent=31 // pred_fallthru
        _
      // Predicated region
      $region41: #{tpu_custom_call.1} parent=31 // pred_check
        %p304 = pneg %p119
      $region42: #{tpu_custom_call.1} parent=31 // pred_check_branch
        %306 = sbr.rel (%p304) target = $region44
      $region43: #{tpu_custom_call.1} parent=31 // pred_region
        %s307 = sadd.s32 %s21, 1
        %s308 = smul.u32 %s307, 4
        %p309 = scmp.lt.s32.totalorder %s308, 7
        %s310 = scalar_select %p309, %s308, 7
        %s311 = smul.u32 2, %s310
        %p312 = scmp.lt.s32.totalorder %s20, 1
        %s313 = scalar_select %p312, %s20, 1
        %p314 = scmp.lt.s32.totalorder %s311, 15
        %s315 = scalar_select %p314, %s311, 15
        %s316 = smul.addr %s315, 2
        %s317 = smul.addr %s313, 32
        %s318 = sadd.s32 %s316, %s317
        %s319 = smul.addr %s318, 8
        %s320 = scalar_lea.vmem %s2, %s319
        %s321 = sadd.s32 %s21, 1
        %s322 = smul.u32 %s321, 4
        %p323 = scmp.lt.s32.totalorder %s322, 7
        %s324 = scalar_select %p323, %s322, 7
        %s325 = smul.u32 2, %s324
      $region44: #{tpu_custom_call.1} parent=31 // pred_fallthru
        _
    $region32: #{tpu_custom_call.1} parent=5 // pred_fallthru
      _
    %p326 = scmp.le.s32.totalorder 1, %s13
    %p327 = scmp.lt.s32.totalorder %s13, 5
    %p328 = pnand %p326, %p327
    %p329 = pneg %p328
    // Predicated region
    $region45: #{tpu_custom_call.1} parent=5 // pred_check
      _
    $region46: #{tpu_custom_call.1} parent=5 // pred_check_branch
      %331 = sbr.rel (%p328) target = $region48
    $region47: #{tpu_custom_call.1} parent=5 // pred_region
      %s332 = ssub.s32 %s13, 1
      %s333 = smul.u32 8, %s23
      %p334 = scmp.lt.s32.totalorder %s22, 1
      %s335 = scalar_select %p334, %s22, 1
      %p336 = scmp.lt.s32.totalorder %s333, 15
      %s337 = scalar_select %p336, %s333, 15
      %s338 = smul.addr %s337, 2
      %s339 = smul.addr %s335, 32
      %s340 = sadd.s32 %s338, %s339
      %s341 = smul.addr %s340, 8
      %s342 = scalar_lea.vmem %s0, %s341
      %p343 = pneg %p53
      %p344 = pneg %p50
      %s345 = smul.u32 %s23, 4
      %s346 = ssub.s32 %s345, 1
      %p347 = scmp.gt.s32.totalorder %s346, 0
      %s348 = scalar_select %p347, %s346, 0
      %s349 = smul.u32 2, %s348
      %p350 = scmp.lt.s32.totalorder %s22, 1
      %s351 = scalar_select %p350, %s22, 1
      %p352 = scmp.lt.s32.totalorder %s349, 15
      %s353 = scalar_select %p352, %s349, 15
      %s354 = smul.addr %s353, 2
      %s355 = smul.addr %s351, 32
      %s356 = sadd.s32 %s354, %s355
      %s357 = smul.addr %s356, 8
      %s358 = scalar_lea.vmem %s1, %s357
      %p359 = pneg %p89
      %p360 = pneg %p86
      %s361 = sadd.s32 %s23, 1
      %s362 = smul.u32 %s361, 4
      %p363 = scmp.lt.s32.totalorder %s362, 7
      %s364 = scalar_select %p363, %s362, 7
      %s365 = smul.u32 2, %s364
      %p366 = scmp.lt.s32.totalorder %s22, 1
      %s367 = scalar_select %p366, %s22, 1
      %p368 = scmp.lt.s32.totalorder %s365, 15
      %s369 = scalar_select %p368, %s365, 15
      %s370 = smul.addr %s369, 2
      %s371 = smul.addr %s367, 32
      %s372 = sadd.s32 %s370, %s371
      %s373 = smul.addr %s372, 8
      %s374 = scalar_lea.vmem %s2, %s373
      %p375 = pneg %p125
      %p376 = pneg %p122
      %p377 = pneg %p146
      %p378 = pneg %p143
      %p379 = pneg %p167
      %p380 = pneg %p164
      %p381 = pneg %p188
      %p382 = pneg %p185
      %p383 = pneg %p209
      %p384 = pneg %p206
      %p385 = pneg %p237
      %p386 = pneg %p234
      %s387 = smul.u32 8, %s23
      %p388 = scmp.lt.s32.totalorder %s22, 1
      %s389 = scalar_select %p388, %s22, 1
      %p390 = scmp.lt.s32.totalorder %s387, 15
      %s391 = scalar_select %p390, %s387, 15
      %s392 = smul.addr %s391, 2
      %s393 = smul.addr %s389, 32
      %s394 = sadd.s32 %s392, %s393
      %s395 = smul.addr %s394, 8
      %s396 = scalar_lea.vmem %s7, %s395
      %s397 = smul.u32 8, %s23
      %p398 = scmp.lt.s32.totalorder %s22, 1
      %s399 = scalar_select %p398, %s22, 1
      %p400 = scmp.lt.s32.totalorder %s397, 15
      %s401 = scalar_select %p400, %s397, 15
      %s402 = smul.addr %s401, 2
      %s403 = smul.addr %s399, 32
      %s404 = sadd.s32 %s402, %s403
      %s405 = smul.addr %s404, 8
      %s406 = scalar_lea.vmem %s0, %s405
      %s407 = smul.u32 8, %s23
      %s408 = smul.u32 %s23, 4
      %s409 = ssub.s32 %s408, 1
      %p410 = scmp.gt.s32.totalorder %s409, 0
      %s411 = scalar_select %p410, %s409, 0
      %s412 = smul.u32 2, %s411
      %p413 = scmp.lt.s32.totalorder %s22, 1
      %s414 = scalar_select %p413, %s22, 1
      %p415 = scmp.lt.s32.totalorder %s412, 15
      %s416 = scalar_select %p415, %s412, 15
      %s417 = smul.addr %s416, 2
      %s418 = smul.addr %s414, 32
      %s419 = sadd.s32 %s417, %s418
      %s420 = smul.addr %s419, 8
      %s421 = scalar_lea.vmem %s1, %s420
      %s422 = smul.u32 %s23, 4
      %s423 = ssub.s32 %s422, 1
      %p424 = scmp.gt.s32.totalorder %s423, 0
      %s425 = scalar_select %p424, %s423, 0
      %s426 = smul.u32 2, %s425
      %s427 = sadd.s32 %s23, 1
      %s428 = smul.u32 %s427, 4
      %p429 = scmp.lt.s32.totalorder %s428, 7
      %s430 = scalar_select %p429, %s428, 7
      %s431 = smul.u32 2, %s430
      %p432 = scmp.lt.s32.totalorder %s22, 1
      %s433 = scalar_select %p432, %s22, 1
      %p434 = scmp.lt.s32.totalorder %s431, 15
      %s435 = scalar_select %p434, %s431, 15
      %s436 = smul.addr %s435, 2
      %s437 = smul.addr %s433, 32
      %s438 = sadd.s32 %s436, %s437
      %s439 = smul.addr %s438, 8
      %s440 = scalar_lea.vmem %s2, %s439
      %s441 = sadd.s32 %s23, 1
      %s442 = smul.u32 %s441, 4
      %p443 = scmp.lt.s32.totalorder %s442, 7
      %s444 = scalar_select %p443, %s442, 7
      %s445 = smul.u32 2, %s444
      %s446 = smul.u32 8, %s23
      %p447 = scmp.lt.s32.totalorder %s22, 1
      %s448 = scalar_select %p447, %s22, 1
      %p449 = scmp.lt.s32.totalorder %s446, 15
      %s450 = scalar_select %p449, %s446, 15
      %s451 = smul.addr %s450, 2
      %s452 = smul.addr %s448, 32
      %s453 = sadd.s32 %s451, %s452
      %s454 = smul.addr %s453, 8
      %s455 = scalar_lea.vmem %s7, %s454
      %s456 = smul.u32 8, %s23
      %vm457 = vcmask 24576
      %458 = vst.msk [vmem:[#allocation2] sm:$0x1] %vm457, 0.0
      %459 = vst.msk [vmem:[#allocation2 + $0x18] sm:$0x1] %vm457, 0.0
      %460 = vst.msk [vmem:[#allocation2 + $0x30] sm:$0x1] %vm457, 0.0
      %461 = vst.msk [vmem:[#allocation2 + $0x48] sm:$0x1] %vm457, 0.0
      %462 = vst.msk [vmem:[#allocation2 + $0x60] sm:$0x1] %vm457, 0.0
      %463 = vst.msk [vmem:[#allocation2 + $0x78] sm:$0x1] %vm457, 0.0
      %464 = vst.msk [vmem:[#allocation2 + $0x90] sm:$0x1] %vm457, 0.0
      %465 = vst.msk [vmem:[#allocation2 + $0xa8] sm:$0x1] %vm457, 0.0
      %466 = vst.msk [vmem:[#allocation2 + $0xc0] sm:$0x1] %vm457, 0.0
      %467 = vst.msk [vmem:[#allocation2 + $0xd8] sm:$0x1] %vm457, 0.0
      %468 = vst.msk [vmem:[#allocation2 + $0xf0] sm:$0x1] %vm457, 0.0
      %469 = vst.msk [vmem:[#allocation2 + $0x108] sm:$0x1] %vm457, 0.0
      %470 = vst.msk [vmem:[#allocation2 + $0x11] sm:$0x1] %vm457, 0.0
      %471 = vst.msk [vmem:[#allocation2 + $0x29] sm:$0x1] %vm457, 0.0
      %472 = vst.msk [vmem:[#allocation2 + $0x41] sm:$0x1] %vm457, 0.0
      %473 = vst.msk [vmem:[#allocation2 + $0x59] sm:$0x1] %vm457, 0.0
      %474 = vst.msk [vmem:[#allocation2 + $0x71] sm:$0x1] %vm457, 0.0
      %475 = vst.msk [vmem:[#allocation2 + $0x89] sm:$0x1] %vm457, 0.0
      %476 = vst.msk [vmem:[#allocation2 + $0xa1] sm:$0x1] %vm457, 0.0
      %477 = vst.msk [vmem:[#allocation2 + $0xb9] sm:$0x1] %vm457, 0.0
      %478 = vst.msk [vmem:[#allocation2 + $0xd1] sm:$0x1] %vm457, 0.0
      %479 = vst.msk [vmem:[#allocation2 + $0xe9] sm:$0x1] %vm457, 0.0
      %480 = vst.msk [vmem:[#allocation2 + $0x101] sm:$0x1] %vm457, 0.0
      %481 = vst.msk [vmem:[#allocation2 + $0x119] sm:$0x1] %vm457, 0.0
      %v482 = vld [vmem:[%s421] sm:$0xff]
      %v483 = vld [vmem:[%s421 + $0x8] sm:$0xff]
      %v484 = vld [vmem:[%s421 + $0x10] sm:$0xff]
      %v485 = vld [vmem:[%s421 + $0x18] sm:$0xff]
      %vm486 = vcmask 31744
      %487 = vst.msk [vmem:[#allocation2 + $0x1] sm:$0xff] %vm486, %v482
      %488 = vst.msk [vmem:[#allocation2 + $0x9] sm:$0xff] %vm486, %v483
      %489 = vst.msk [vmem:[#allocation2 + $0x19] sm:$0xff] %vm486, %v484
      %490 = vst.msk [vmem:[#allocation2 + $0x21] sm:$0xff] %vm486, %v485
      %v491 = vld [vmem:[%s406] sm:$0xff]
      %v492 = vld [vmem:[%s406 + $0x8] sm:$0xff]
      %v493 = vld [vmem:[%s406 + $0x10] sm:$0xff]
      %v494 = vld [vmem:[%s406 + $0x18] sm:$0xff]
      %v495 = vld [vmem:[%s406 + $0x20] sm:$0xff]
      %v496 = vld [vmem:[%s406 + $0x28] sm:$0xff]
      %v497 = vld [vmem:[%s406 + $0x30] sm:$0xff]
      %v498 = vld [vmem:[%s406 + $0x38] sm:$0xff]
      %v499 = vld [vmem:[%s406 + $0x40] sm:$0xff]
      %v500 = vld [vmem:[%s406 + $0x48] sm:$0xff]
      %v501 = vld [vmem:[%s406 + $0x50] sm:$0xff]
      %v502 = vld [vmem:[%s406 + $0x58] sm:$0xff]
      %v503 = vld [vmem:[%s406 + $0x60] sm:$0xff]
      %v504 = vld [vmem:[%s406 + $0x68] sm:$0xff]
      %v505 = vld [vmem:[%s406 + $0x70] sm:$0xff]
      %v506 = vld [vmem:[%s406 + $0x78] sm:$0xff]
      %s507 = scalar_lea.vmem [#allocation2], 48
      %508 = vst.msk [vmem:[%s507 + $0x1] sm:$0xff] %vm486, %v491
      %509 = vst.msk [vmem:[%s507 + $0x9] sm:$0xff] %vm486, %v492
      %510 = vst.msk [vmem:[%s507 + $0x19] sm:$0xff] %vm486, %v493
      %511 = vst.msk [vmem:[%s507 + $0x21] sm:$0xff] %vm486, %v494
      %512 = vst.msk [vmem:[%s507 + $0x31] sm:$0xff] %vm486, %v495
      %513 = vst.msk [vmem:[%s507 + $0x39] sm:$0xff] %vm486, %v496
      %514 = vst.msk [vmem:[%s507 + $0x49] sm:$0xff] %vm486, %v497
      %515 = vst.msk [vmem:[%s507 + $0x51] sm:$0xff] %vm486, %v498
      %516 = vst.msk [vmem:[%s507 + $0x61] sm:$0xff] %vm486, %v499
      %517 = vst.msk [vmem:[%s507 + $0x69] sm:$0xff] %vm486, %v500
      %518 = vst.msk [vmem:[%s507 + $0x79] sm:$0xff] %vm486, %v501
      %519 = vst.msk [vmem:[%s507 + $0x81] sm:$0xff] %vm486, %v502
      %520 = vst.msk [vmem:[%s507 + $0x91] sm:$0xff] %vm486, %v503
      %521 = vst.msk [vmem:[%s507 + $0x99] sm:$0xff] %vm486, %v504
      %522 = vst.msk [vmem:[%s507 + $0xa9] sm:$0xff] %vm486, %v505
      %523 = vst.msk [vmem:[%s507 + $0xb1] sm:$0xff] %vm486, %v506
      %v524 = vld [vmem:[%s440] sm:$0xff]
      %v525 = vld [vmem:[%s440 + $0x8] sm:$0xff]
      %v526 = vld [vmem:[%s440 + $0x10] sm:$0xff]
      %v527 = vld [vmem:[%s440 + $0x18] sm:$0xff]
      %s528 = scalar_lea.vmem [#allocation2], 240
      %529 = vst.msk [vmem:[%s528 + $0x1] sm:$0xff] %vm486, %v524
      %530 = vst.msk [vmem:[%s528 + $0x9] sm:$0xff] %vm486, %v525
      %531 = vst.msk [vmem:[%s528 + $0x19] sm:$0xff] %vm486, %v526
      %532 = vst.msk [vmem:[%s528 + $0x21] sm:$0xff] %vm486, %v527
      %p533 = scmp.eq.s32.totalorder %s23, 0
      // Predicated region
      $region49: #{tpu_custom_call.1} parent=47 // pred_check
        %p534 = pneg %p533
      $region50: #{tpu_custom_call.1} parent=47 // pred_check_branch
        %536 = sbr.rel (%p534) target = $region52
      $region51: #{tpu_custom_call.1} parent=47 // pred_region
        %537 = vst.msk [vmem:[#allocation2 + $0x1] sm:$0xff] %vm486, 0.0
        %538 = vst.msk [vmem:[#allocation2 + $0x9] sm:$0xff] %vm486, 0.0
        %539 = vst.msk [vmem:[#allocation2 + $0x19] sm:$0xff] %vm486, 0.0
        %540 = vst.msk [vmem:[#allocation2 + $0x21] sm:$0xff] %vm486, 0.0
      $region52: #{tpu_custom_call.1} parent=47 // pred_fallthru
        _
      %p541 = scmp.eq.s32.totalorder %s23, 1
      // Predicated region
      $region53: #{tpu_custom_call.1} parent=47 // pred_check
        %p542 = pneg %p541
      $region54: #{tpu_custom_call.1} parent=47 // pred_check_branch
        %544 = sbr.rel (%p542) target = $region56
      $region55: #{tpu_custom_call.1} parent=47 // pred_region
        %545 = vst.msk [vmem:[%s528 + $0x1] sm:$0xff] %vm486, 0.0
        %546 = vst.msk [vmem:[%s528 + $0x9] sm:$0xff] %vm486, 0.0
        %547 = vst.msk [vmem:[%s528 + $0x19] sm:$0xff] %vm486, 0.0
        %548 = vst.msk [vmem:[%s528 + $0x21] sm:$0xff] %vm486, 0.0
      $region56: #{tpu_custom_call.1} parent=47 // pred_fallthru
        _
      %v549 = vld [vmem:[#allocation2] sm:$0xff]
      %v550 = vld [vmem:[#allocation2 + $0x8] sm:$0xff]
      %v551 = vld [vmem:[#allocation2 + $0x18] sm:$0xff]
      %v552 = vld [vmem:[#allocation2 + $0x20] sm:$0xff]
      %v553 = vld [vmem:[#allocation2 + $0x30] sm:$0xff]
      %v554 = vld [vmem:[#allocation2 + $0x38] sm:$0xff]
      %v555 = vld [vmem:[#allocation2 + $0x48] sm:$0xff]
      %v556 = vld [vmem:[#allocation2 + $0x50] sm:$0xff]
      %v557 = vld [vmem:[#allocation2 + $0x60] sm:$0xff]
      %v558 = vld [vmem:[#allocation2 + $0x68] sm:$0xff]
      %v559 = vld [vmem:[#allocation2 + $0x78] sm:$0xff]
      %v560 = vld [vmem:[#allocation2 + $0x80] sm:$0xff]
      %v561 = vld [vmem:[#allocation2 + $0x90] sm:$0xff]
      %v562 = vld [vmem:[#allocation2 + $0x98] sm:$0xff]
      %v563 = vld [vmem:[#allocation2 + $0xa8] sm:$0xff]
      %v564 = vld [vmem:[#allocation2 + $0xb0] sm:$0xff]
      %v565 = vld [vmem:[#allocation2 + $0xc0] sm:$0xff]
      %v566 = vld [vmem:[#allocation2 + $0xc8] sm:$0xff]
      %v567 = vld [vmem:[#allocation2 + $0xd8] sm:$0xff]
      %v568 = vld [vmem:[#allocation2 + $0xe0] sm:$0xff]
      %v569 = vld [vmem:[%s3] sm:$0xf]
      %v570 = vld [vmem:[#allocation2 + $0x1] sm:$0xff]
      %v571 = vld [vmem:[#allocation2 + $0x9] sm:$0xff]
      %v572 = vld [vmem:[#allocation2 + $0x19] sm:$0xff]
      %v573 = vld [vmem:[#allocation2 + $0x21] sm:$0xff]
      %v574 = vld [vmem:[#allocation2 + $0x31] sm:$0xff]
      %v575 = vld [vmem:[#allocation2 + $0x39] sm:$0xff]
      %v576 = vld [vmem:[#allocation2 + $0x49] sm:$0xff]
      %v577 = vld [vmem:[#allocation2 + $0x51] sm:$0xff]
      %v578 = vld [vmem:[#allocation2 + $0x61] sm:$0xff]
      %v579 = vld [vmem:[#allocation2 + $0x69] sm:$0xff]
      %v580 = vld [vmem:[#allocation2 + $0x79] sm:$0xff]
      %v581 = vld [vmem:[#allocation2 + $0x81] sm:$0xff]
      %v582 = vld [vmem:[#allocation2 + $0x91] sm:$0xff]
      %v583 = vld [vmem:[#allocation2 + $0x99] sm:$0xff]
      %v584 = vld [vmem:[#allocation2 + $0xa9] sm:$0xff]
      %v585 = vld [vmem:[#allocation2 + $0xb1] sm:$0xff]
      %v586 = vld [vmem:[#allocation2 + $0xc1] sm:$0xff]
      %v587 = vld [vmem:[#allocation2 + $0xc9] sm:$0xff]
      %v588 = vld [vmem:[#allocation2 + $0xd9] sm:$0xff]
      %v589 = vld [vmem:[#allocation2 + $0xe1] sm:$0xff]
      %v590 = vld [vmem:[%s3 + $0x4] sm:$0xf]
      %v592 = vsel %vm486, %v570, 0
      %v595 = vsel %vm486, %v571, 0
      %v598 = vsel %vm486, %v572, 0
      %v601 = vsel %vm486, %v573, 0
      %v604 = vsel %vm486, %v574, 0
      %v607 = vsel %vm486, %v575, 0
      %v610 = vsel %vm486, %v576, 0
      %v613 = vsel %vm486, %v577, 0
      %v616 = vsel %vm486, %v578, 0
      %v619 = vsel %vm486, %v579, 0
      %v622 = vsel %vm486, %v580, 0
      %v625 = vsel %vm486, %v581, 0
      %v628 = vsel %vm486, %v582, 0
      %v631 = vsel %vm486, %v583, 0
      %v634 = vsel %vm486, %v584, 0
      %v637 = vsel %vm486, %v585, 0
      %v640 = vsel %vm486, %v586, 0
      %v643 = vsel %vm486, %v587, 0
      %v646 = vsel %vm486, %v588, 0
      %v649 = vsel %vm486, %v589, 0
      %vm651 = vcmask 1043456
      %v653 = vsel %vm651, %v590, 0
      %655 = vmatpush.msra.mxu0 0.0
      %656 = vmatpush.msra.mxu0 0.0
      %657 = vmatpush.msra.mxu0 0.0
      %658 = vmatpush.msra.mxu0 0.0
      %659 = vmatpush.msra.mxu0 0.0
      %660 = vmatpush.msra.mxu0 0.0
      %661 = vmatpush.msra.mxu0 0.0
      %662 = vmatpush.msra.mxu0 0.0
      %663 = vmatpush.msra.mxu0 0.0
      %664 = vmatpush.msra.mxu0 0.0
      %665 = vmatpush.msra.mxu0 0.0
      %666 = vmatpush.msra.mxu0 0.0
      %667 = vmatpush.msra.mxu0 0.0
      %668 = vmatpush.msra.mxu0 0.0
      %669 = vmatpush.msra.mxu0 0.0
      %670 = vmatpush.msra.mxu0 %v653
      %671 = vmatmul.f32.gmra.mxu0 %v592
      %v672 = vpop.f32.mrf.mxu0
      %v673 = vadd.f32 0.0, %v672
      %674 = vmatmul.f32.gmra.mxu0 %v595
      %v675 = vpop.f32.mrf.mxu0
      %v676 = vadd.f32 0.0, %v675
      %677 = vmatmul.f32.gmra.mxu0 %v598
      %v678 = vpop.f32.mrf.mxu0
      %v679 = vadd.f32 0.0, %v678
      %680 = vmatmul.f32.gmra.mxu0 %v601
      %v681 = vpop.f32.mrf.mxu0
      %v682 = vadd.f32 0.0, %v681
      %683 = vmatmul.f32.gmra.mxu0 %v604
      %v684 = vpop.f32.mrf.mxu0
      %v685 = vadd.f32 0.0, %v684
      %686 = vmatmul.f32.gmra.mxu0 %v607
      %v687 = vpop.f32.mrf.mxu0
      %v688 = vadd.f32 0.0, %v687
      %689 = vmatmul.f32.gmra.mxu0 %v610
      %v690 = vpop.f32.mrf.mxu0
      %v691 = vadd.f32 0.0, %v690
      %692 = vmatmul.f32.gmra.mxu0 %v613
      %v693 = vpop.f32.mrf.mxu0
      %v694 = vadd.f32 0.0, %v693
      %695 = vmatmul.f32.gmra.mxu0 %v616
      %v696 = vpop.f32.mrf.mxu0
      %v697 = vadd.f32 0.0, %v696
      %698 = vmatmul.f32.gmra.mxu0 %v619
      %v699 = vpop.f32.mrf.mxu0
      %v700 = vadd.f32 0.0, %v699
      %701 = vmatmul.f32.gmra.mxu0 %v622
      %v702 = vpop.f32.mrf.mxu0
      %v703 = vadd.f32 0.0, %v702
      %704 = vmatmul.f32.gmra.mxu0 %v625
      %v705 = vpop.f32.mrf.mxu0
      %v706 = vadd.f32 0.0, %v705
      %707 = vmatmul.f32.gmra.mxu0 %v628
      %v708 = vpop.f32.mrf.mxu0
      %v709 = vadd.f32 0.0, %v708
      %710 = vmatmul.f32.gmra.mxu0 %v631
      %v711 = vpop.f32.mrf.mxu0
      %v712 = vadd.f32 0.0, %v711
      %713 = vmatmul.f32.gmra.mxu0 %v634
      %v714 = vpop.f32.mrf.mxu0
      %v715 = vadd.f32 0.0, %v714
      %716 = vmatmul.f32.gmra.mxu0 %v637
      %v717 = vpop.f32.mrf.mxu0
      %v718 = vadd.f32 0.0, %v717
      %719 = vmatmul.f32.gmra.mxu0 %v640
      %v720 = vpop.f32.mrf.mxu0
      %v721 = vadd.f32 0.0, %v720
      %722 = vmatmul.f32.gmra.mxu0 %v643
      %v723 = vpop.f32.mrf.mxu0
      %v724 = vadd.f32 0.0, %v723
      %725 = vmatmul.f32.gmra.mxu0 %v646
      %v726 = vpop.f32.mrf.mxu0
      %v727 = vadd.f32 0.0, %v726
      %728 = vmatmul.f32.gmra.mxu0 %v649
      %v729 = vpop.f32.mrf.mxu0
      %v730 = vadd.f32 0.0, %v729
      %731 = vdwg.mxu0
      %v733 = vsel %vm486, %v549, 0
      %v736 = vsel %vm486, %v550, 0
      %v739 = vsel %vm486, %v551, 0
      %v742 = vsel %vm486, %v552, 0
      %v745 = vsel %vm486, %v553, 0
      %v748 = vsel %vm486, %v554, 0
      %v751 = vsel %vm486, %v555, 0
      %v754 = vsel %vm486, %v556, 0
      %v757 = vsel %vm486, %v557, 0
      %v760 = vsel %vm486, %v558, 0
      %v763 = vsel %vm486, %v559, 0
      %v766 = vsel %vm486, %v560, 0
      %v769 = vsel %vm486, %v561, 0
      %v772 = vsel %vm486, %v562, 0
      %v775 = vsel %vm486, %v563, 0
      %v778 = vsel %vm486, %v564, 0
      %v781 = vsel %vm486, %v565, 0
      %v784 = vsel %vm486, %v566, 0
      %v787 = vsel %vm486, %v567, 0
      %v790 = vsel %vm486, %v568, 0
      %v793 = vsel %vm651, %v569, 0
      %795 = vmatpush.msra.mxu0 0.0
      %796 = vmatpush.msra.mxu0 0.0
      %797 = vmatpush.msra.mxu0 0.0
      %798 = vmatpush.msra.mxu0 0.0
      %799 = vmatpush.msra.mxu0 0.0
      %800 = vmatpush.msra.mxu0 0.0
      %801 = vmatpush.msra.mxu0 0.0
      %802 = vmatpush.msra.mxu0 0.0
      %803 = vmatpush.msra.mxu0 0.0
      %804 = vmatpush.msra.mxu0 0.0
      %805 = vmatpush.msra.mxu0 0.0
      %806 = vmatpush.msra.mxu0 0.0
      %807 = vmatpush.msra.mxu0 0.0
      %808 = vmatpush.msra.mxu0 0.0
      %809 = vmatpush.msra.mxu0 0.0
      %810 = vmatpush.msra.mxu0 %v793
      %811 = vmatmul.f32.gmra.mxu0 %v733
      %v812 = vpop.f32.mrf.mxu0
      %v813 = vadd.f32 %v673, %v812
      %814 = vmatmul.f32.gmra.mxu0 %v736
      %v815 = vpop.f32.mrf.mxu0
      %v816 = vadd.f32 %v676, %v815
      %817 = vmatmul.f32.gmra.mxu0 %v739
      %v818 = vpop.f32.mrf.mxu0
      %v819 = vadd.f32 %v679, %v818
      %820 = vmatmul.f32.gmra.mxu0 %v742
      %v821 = vpop.f32.mrf.mxu0
      %v822 = vadd.f32 %v682, %v821
      %823 = vmatmul.f32.gmra.mxu0 %v745
      %v824 = vpop.f32.mrf.mxu0
      %v825 = vadd.f32 %v685, %v824
      %826 = vmatmul.f32.gmra.mxu0 %v748
      %v827 = vpop.f32.mrf.mxu0
      %v828 = vadd.f32 %v688, %v827
      %829 = vmatmul.f32.gmra.mxu0 %v751
      %v830 = vpop.f32.mrf.mxu0
      %v831 = vadd.f32 %v691, %v830
      %832 = vmatmul.f32.gmra.mxu0 %v754
      %v833 = vpop.f32.mrf.mxu0
      %v834 = vadd.f32 %v694, %v833
      %835 = vmatmul.f32.gmra.mxu0 %v757
      %v836 = vpop.f32.mrf.mxu0
      %v837 = vadd.f32 %v697, %v836
      %838 = vmatmul.f32.gmra.mxu0 %v760
      %v839 = vpop.f32.mrf.mxu0
      %v840 = vadd.f32 %v700, %v839
      %841 = vmatmul.f32.gmra.mxu0 %v763
      %v842 = vpop.f32.mrf.mxu0
      %v843 = vadd.f32 %v703, %v842
      %844 = vmatmul.f32.gmra.mxu0 %v766
      %v845 = vpop.f32.mrf.mxu0
      %v846 = vadd.f32 %v706, %v845
      %847 = vmatmul.f32.gmra.mxu0 %v769
      %v848 = vpop.f32.mrf.mxu0
      %v849 = vadd.f32 %v709, %v848
      %850 = vmatmul.f32.gmra.mxu0 %v772
      %v851 = vpop.f32.mrf.mxu0
      %v852 = vadd.f32 %v712, %v851
      %853 = vmatmul.f32.gmra.mxu0 %v775
      %v854 = vpop.f32.mrf.mxu0
      %v855 = vadd.f32 %v715, %v854
      %856 = vmatmul.f32.gmra.mxu0 %v778
      %v857 = vpop.f32.mrf.mxu0
      %v858 = vadd.f32 %v718, %v857
      %859 = vmatmul.f32.gmra.mxu0 %v781
      %v860 = vpop.f32.mrf.mxu0
      %v861 = vadd.f32 %v721, %v860
      %862 = vmatmul.f32.gmra.mxu0 %v784
      %v863 = vpop.f32.mrf.mxu0
      %v864 = vadd.f32 %v724, %v863
      %865 = vmatmul.f32.gmra.mxu0 %v787
      %v866 = vpop.f32.mrf.mxu0
      %v867 = vadd.f32 %v727, %v866
      %868 = vmatmul.f32.gmra.mxu0 %v790
      %v869 = vpop.f32.mrf.mxu0
      %v870 = vadd.f32 %v730, %v869
      %871 = vdwg.mxu0
      %v872 = vld [vmem:[#allocation2 + $0x2] sm:$0xff]
      %v873 = vld [vmem:[#allocation2 + $0xa] sm:$0xff]
      %v874 = vld [vmem:[#allocation2 + $0x1a] sm:$0xff]
      %v875 = vld [vmem:[#allocation2 + $0x22] sm:$0xff]
      %v876 = vld [vmem:[#allocation2 + $0x32] sm:$0xff]
      %v877 = vld [vmem:[#allocation2 + $0x3a] sm:$0xff]
      %v878 = vld [vmem:[#allocation2 + $0x4a] sm:$0xff]
      %v879 = vld [vmem:[#allocation2 + $0x52] sm:$0xff]
      %v880 = vld [vmem:[#allocation2 + $0x62] sm:$0xff]
      %v881 = vld [vmem:[#allocation2 + $0x6a] sm:$0xff]
      %v882 = vld [vmem:[#allocation2 + $0x7a] sm:$0xff]
      %v883 = vld [vmem:[#allocation2 + $0x82] sm:$0xff]
      %v884 = vld [vmem:[#allocation2 + $0x92] sm:$0xff]
      %v885 = vld [vmem:[#allocation2 + $0x9a] sm:$0xff]
      %v886 = vld [vmem:[#allocation2 + $0xaa] sm:$0xff]
      %v887 = vld [vmem:[#allocation2 + $0xb2] sm:$0xff]
      %v888 = vld [vmem:[#allocation2 + $0xc2] sm:$0xff]
      %v889 = vld [vmem:[#allocation2 + $0xca] sm:$0xff]
      %v890 = vld [vmem:[#allocation2 + $0xda] sm:$0xff]
      %v891 = vld [vmem:[#allocation2 + $0xe2] sm:$0xff]
      %v892 = vld [vmem:[%s3 + $0x8] sm:$0xf]
      %v894 = vsel %vm486, %v872, 0
      %v897 = vsel %vm486, %v873, 0
      %v900 = vsel %vm486, %v874, 0
      %v903 = vsel %vm486, %v875, 0
      %v906 = vsel %vm486, %v876, 0
      %v909 = vsel %vm486, %v877, 0
      %v912 = vsel %vm486, %v878, 0
      %v915 = vsel %vm486, %v879, 0
      %v918 = vsel %vm486, %v880, 0
      %v921 = vsel %vm486, %v881, 0
      %v924 = vsel %vm486, %v882, 0
      %v927 = vsel %vm486, %v883, 0
      %v930 = vsel %vm486, %v884, 0
      %v933 = vsel %vm486, %v885, 0
      %v936 = vsel %vm486, %v886, 0
      %v939 = vsel %vm486, %v887, 0
      %v942 = vsel %vm486, %v888, 0
      %v945 = vsel %vm486, %v889, 0
      %v948 = vsel %vm486, %v890, 0
      %v951 = vsel %vm486, %v891, 0
      %v954 = vsel %vm651, %v892, 0
      %956 = vmatpush.msra.mxu0 0.0
      %957 = vmatpush.msra.mxu0 0.0
      %958 = vmatpush.msra.mxu0 0.0
      %959 = vmatpush.msra.mxu0 0.0
      %960 = vmatpush.msra.mxu0 0.0
      %961 = vmatpush.msra.mxu0 0.0
      %962 = vmatpush.msra.mxu0 0.0
      %963 = vmatpush.msra.mxu0 0.0
      %964 = vmatpush.msra.mxu0 0.0
      %965 = vmatpush.msra.mxu0 0.0
      %966 = vmatpush.msra.mxu0 0.0
      %967 = vmatpush.msra.mxu0 0.0
      %968 = vmatpush.msra.mxu0 0.0
      %969 = vmatpush.msra.mxu0 0.0
      %970 = vmatpush.msra.mxu0 0.0
      %971 = vmatpush.msra.mxu0 %v954
      %972 = vmatmul.f32.gmra.mxu0 %v894
      %v973 = vpop.f32.mrf.mxu0
      %v974 = vadd.f32 0.0, %v973
      %975 = vmatmul.f32.gmra.mxu0 %v897
      %v976 = vpop.f32.mrf.mxu0
      %v977 = vadd.f32 0.0, %v976
      %978 = vmatmul.f32.gmra.mxu0 %v900
      %v979 = vpop.f32.mrf.mxu0
      %v980 = vadd.f32 0.0, %v979
      %981 = vmatmul.f32.gmra.mxu0 %v903
      %v982 = vpop.f32.mrf.mxu0
      %v983 = vadd.f32 0.0, %v982
      %984 = vmatmul.f32.gmra.mxu0 %v906
      %v985 = vpop.f32.mrf.mxu0
      %v986 = vadd.f32 0.0, %v985
      %987 = vmatmul.f32.gmra.mxu0 %v909
      %v988 = vpop.f32.mrf.mxu0
      %v989 = vadd.f32 0.0, %v988
      %990 = vmatmul.f32.gmra.mxu0 %v912
      %v991 = vpop.f32.mrf.mxu0
      %v992 = vadd.f32 0.0, %v991
      %993 = vmatmul.f32.gmra.mxu0 %v915
      %v994 = vpop.f32.mrf.mxu0
      %v995 = vadd.f32 0.0, %v994
      %996 = vmatmul.f32.gmra.mxu0 %v918
      %v997 = vpop.f32.mrf.mxu0
      %v998 = vadd.f32 0.0, %v997
      %999 = vmatmul.f32.gmra.mxu0 %v921
      %v1000 = vpop.f32.mrf.mxu0
      %v1001 = vadd.f32 0.0, %v1000
      %1002 = vmatmul.f32.gmra.mxu0 %v924
      %v1003 = vpop.f32.mrf.mxu0
      %v1004 = vadd.f32 0.0, %v1003
      %1005 = vmatmul.f32.gmra.mxu0 %v927
      %v1006 = vpop.f32.mrf.mxu0
      %v1007 = vadd.f32 0.0, %v1006
      %1008 = vmatmul.f32.gmra.mxu0 %v930
      %v1009 = vpop.f32.mrf.mxu0
      %v1010 = vadd.f32 0.0, %v1009
      %1011 = vmatmul.f32.gmra.mxu0 %v933
      %v1012 = vpop.f32.mrf.mxu0
      %v1013 = vadd.f32 0.0, %v1012
      %1014 = vmatmul.f32.gmra.mxu0 %v936
      %v1015 = vpop.f32.mrf.mxu0
      %v1016 = vadd.f32 0.0, %v1015
      %1017 = vmatmul.f32.gmra.mxu0 %v939
      %v1018 = vpop.f32.mrf.mxu0
      %v1019 = vadd.f32 0.0, %v1018
      %1020 = vmatmul.f32.gmra.mxu0 %v942
      %v1021 = vpop.f32.mrf.mxu0
      %v1022 = vadd.f32 0.0, %v1021
      %1023 = vmatmul.f32.gmra.mxu0 %v945
      %v1024 = vpop.f32.mrf.mxu0
      %v1025 = vadd.f32 0.0, %v1024
      %1026 = vmatmul.f32.gmra.mxu0 %v948
      %v1027 = vpop.f32.mrf.mxu0
      %v1028 = vadd.f32 0.0, %v1027
      %1029 = vmatmul.f32.gmra.mxu0 %v951
      %v1030 = vpop.f32.mrf.mxu0
      %v1031 = vadd.f32 0.0, %v1030
      %1032 = vdwg.mxu0
      %v1033 = vadd.f32 %v813, %v974
      %v1034 = vadd.f32 %v816, %v977
      %v1035 = vadd.f32 %v819, %v980
      %v1036 = vadd.f32 %v822, %v983
      %v1037 = vadd.f32 %v825, %v986
      %v1038 = vadd.f32 %v828, %v989
      %v1039 = vadd.f32 %v831, %v992
      %v1040 = vadd.f32 %v834, %v995
      %v1041 = vadd.f32 %v837, %v998
      %v1042 = vadd.f32 %v840, %v1001
      %v1043 = vadd.f32 %v843, %v1004
      %v1044 = vadd.f32 %v846, %v1007
      %v1045 = vadd.f32 %v849, %v1010
      %v1046 = vadd.f32 %v852, %v1013
      %v1047 = vadd.f32 %v855, %v1016
      %v1048 = vadd.f32 %v858, %v1019
      %v1049 = vadd.f32 %v861, %v1022
      %v1050 = vadd.f32 %v864, %v1025
      %v1051 = vadd.f32 %v867, %v1028
      %v1052 = vadd.f32 %v870, %v1031
      %s1053 = scalar_lea.vmem [#allocation2], 24
      %v1054 = vld [vmem:[%s1053] sm:$0xff]
      %v1055 = vld [vmem:[%s1053 + $0x8] sm:$0xff]
      %v1056 = vld [vmem:[%s1053 + $0x18] sm:$0xff]
      %v1057 = vld [vmem:[%s1053 + $0x20] sm:$0xff]
      %v1058 = vld [vmem:[%s1053 + $0x30] sm:$0xff]
      %v1059 = vld [vmem:[%s1053 + $0x38] sm:$0xff]
      %v1060 = vld [vmem:[%s1053 + $0x48] sm:$0xff]
      %v1061 = vld [vmem:[%s1053 + $0x50] sm:$0xff]
      %v1062 = vld [vmem:[%s1053 + $0x60] sm:$0xff]
      %v1063 = vld [vmem:[%s1053 + $0x68] sm:$0xff]
      %v1064 = vld [vmem:[%s1053 + $0x78] sm:$0xff]
      %v1065 = vld [vmem:[%s1053 + $0x80] sm:$0xff]
      %v1066 = vld [vmem:[%s1053 + $0x90] sm:$0xff]
      %v1067 = vld [vmem:[%s1053 + $0x98] sm:$0xff]
      %v1068 = vld [vmem:[%s1053 + $0xa8] sm:$0xff]
      %v1069 = vld [vmem:[%s1053 + $0xb0] sm:$0xff]
      %v1070 = vld [vmem:[%s1053 + $0xc0] sm:$0xff]
      %v1071 = vld [vmem:[%s1053 + $0xc8] sm:$0xff]
      %v1072 = vld [vmem:[%s1053 + $0xd8] sm:$0xff]
      %v1073 = vld [vmem:[%s1053 + $0xe0] sm:$0xff]
      %v1074 = vld [vmem:[%s3 + $0xc] sm:$0xf]
      %v1076 = vsel %vm486, %v1054, 0
      %v1079 = vsel %vm486, %v1055, 0
      %v1082 = vsel %vm486, %v1056, 0
      %v1085 = vsel %vm486, %v1057, 0
      %v1088 = vsel %vm486, %v1058, 0
      %v1091 = vsel %vm486, %v1059, 0
      %v1094 = vsel %vm486, %v1060, 0
      %v1097 = vsel %vm486, %v1061, 0
      %v1100 = vsel %vm486, %v1062, 0
      %v1103 = vsel %vm486, %v1063, 0
      %v1106 = vsel %vm486, %v1064, 0
      %v1109 = vsel %vm486, %v1065, 0
      %v1112 = vsel %vm486, %v1066, 0
      %v1115 = vsel %vm486, %v1067, 0
      %v1118 = vsel %vm486, %v1068, 0
      %v1121 = vsel %vm486, %v1069, 0
      %v1124 = vsel %vm486, %v1070, 0
      %v1127 = vsel %vm486, %v1071, 0
      %v1130 = vsel %vm486, %v1072, 0
      %v1133 = vsel %vm486, %v1073, 0
      %v1136 = vsel %vm651, %v1074, 0
      %1138 = vmatpush.msra.mxu0 0.0
      %1139 = vmatpush.msra.mxu0 0.0
      %1140 = vmatpush.msra.mxu0 0.0
      %1141 = vmatpush.msra.mxu0 0.0
      %1142 = vmatpush.msra.mxu0 0.0
      %1143 = vmatpush.msra.mxu0 0.0
      %1144 = vmatpush.msra.mxu0 0.0
      %1145 = vmatpush.msra.mxu0 0.0
      %1146 = vmatpush.msra.mxu0 0.0
      %1147 = vmatpush.msra.mxu0 0.0
      %1148 = vmatpush.msra.mxu0 0.0
      %1149 = vmatpush.msra.mxu0 0.0
      %1150 = vmatpush.msra.mxu0 0.0
      %1151 = vmatpush.msra.mxu0 0.0
      %1152 = vmatpush.msra.mxu0 0.0
      %1153 = vmatpush.msra.mxu0 %v1136
      %1154 = vmatmul.f32.gmra.mxu0 %v1076
      %v1155 = vpop.f32.mrf.mxu0
      %v1156 = vadd.f32 0.0, %v1155
      %1157 = vmatmul.f32.gmra.mxu0 %v1079
      %v1158 = vpop.f32.mrf.mxu0
      %v1159 = vadd.f32 0.0, %v1158
      %1160 = vmatmul.f32.gmra.mxu0 %v1082
      %v1161 = vpop.f32.mrf.mxu0
      %v1162 = vadd.f32 0.0, %v1161
      %1163 = vmatmul.f32.gmra.mxu0 %v1085
      %v1164 = vpop.f32.mrf.mxu0
      %v1165 = vadd.f32 0.0, %v1164
      %1166 = vmatmul.f32.gmra.mxu0 %v1088
      %v1167 = vpop.f32.mrf.mxu0
      %v1168 = vadd.f32 0.0, %v1167
      %1169 = vmatmul.f32.gmra.mxu0 %v1091
      %v1170 = vpop.f32.mrf.mxu0
      %v1171 = vadd.f32 0.0, %v1170
      %1172 = vmatmul.f32.gmra.mxu0 %v1094
      %v1173 = vpop.f32.mrf.mxu0
      %v1174 = vadd.f32 0.0, %v1173
      %1175 = vmatmul.f32.gmra.mxu0 %v1097
      %v1176 = vpop.f32.mrf.mxu0
      %v1177 = vadd.f32 0.0, %v1176
      %1178 = vmatmul.f32.gmra.mxu0 %v1100
      %v1179 = vpop.f32.mrf.mxu0
      %v1180 = vadd.f32 0.0, %v1179
      %1181 = vmatmul.f32.gmra.mxu0 %v1103
      %v1182 = vpop.f32.mrf.mxu0
      %v1183 = vadd.f32 0.0, %v1182
      %1184 = vmatmul.f32.gmra.mxu0 %v1106
      %v1185 = vpop.f32.mrf.mxu0
      %v1186 = vadd.f32 0.0, %v1185
      %1187 = vmatmul.f32.gmra.mxu0 %v1109
      %v1188 = vpop.f32.mrf.mxu0
      %v1189 = vadd.f32 0.0, %v1188
      %1190 = vmatmul.f32.gmra.mxu0 %v1112
      %v1191 = vpop.f32.mrf.mxu0
      %v1192 = vadd.f32 0.0, %v1191
      %1193 = vmatmul.f32.gmra.mxu0 %v1115
      %v1194 = vpop.f32.mrf.mxu0
      %v1195 = vadd.f32 0.0, %v1194
      %1196 = vmatmul.f32.gmra.mxu0 %v1118
      %v1197 = vpop.f32.mrf.mxu0
      %v1198 = vadd.f32 0.0, %v1197
      %1199 = vmatmul.f32.gmra.mxu0 %v1121
      %v1200 = vpop.f32.mrf.mxu0
      %v1201 = vadd.f32 0.0, %v1200
      %1202 = vmatmul.f32.gmra.mxu0 %v1124
      %v1203 = vpop.f32.mrf.mxu0
      %v1204 = vadd.f32 0.0, %v1203
      %1205 = vmatmul.f32.gmra.mxu0 %v1127
      %v1206 = vpop.f32.mrf.mxu0
      %v1207 = vadd.f32 0.0, %v1206
      %1208 = vmatmul.f32.gmra.mxu0 %v1130
      %v1209 = vpop.f32.mrf.mxu0
      %v1210 = vadd.f32 0.0, %v1209
      %1211 = vmatmul.f32.gmra.mxu0 %v1133
      %v1212 = vpop.f32.mrf.mxu0
      %v1213 = vadd.f32 0.0, %v1212
      %1214 = vdwg.mxu0
      %v1215 = vadd.f32 %v1033, %v1156
      %v1216 = vadd.f32 %v1034, %v1159
      %v1217 = vadd.f32 %v1035, %v1162
      %v1218 = vadd.f32 %v1036, %v1165
      %v1219 = vadd.f32 %v1037, %v1168
      %v1220 = vadd.f32 %v1038, %v1171
      %v1221 = vadd.f32 %v1039, %v1174
      %v1222 = vadd.f32 %v1040, %v1177
      %v1223 = vadd.f32 %v1041, %v1180
      %v1224 = vadd.f32 %v1042, %v1183
      %v1225 = vadd.f32 %v1043, %v1186
      %v1226 = vadd.f32 %v1044, %v1189
      %v1227 = vadd.f32 %v1045, %v1192
      %v1228 = vadd.f32 %v1046, %v1195
      %v1229 = vadd.f32 %v1047, %v1198
      %v1230 = vadd.f32 %v1048, %v1201
      %v1231 = vadd.f32 %v1049, %v1204
      %v1232 = vadd.f32 %v1050, %v1207
      %v1233 = vadd.f32 %v1051, %v1210
      %v1234 = vadd.f32 %v1052, %v1213
      %v1235 = vld [vmem:[%s1053 + $0x1] sm:$0xff]
      %v1236 = vld [vmem:[%s1053 + $0x9] sm:$0xff]
      %v1237 = vld [vmem:[%s1053 + $0x19] sm:$0xff]
      %v1238 = vld [vmem:[%s1053 + $0x21] sm:$0xff]
      %v1239 = vld [vmem:[%s1053 + $0x31] sm:$0xff]
      %v1240 = vld [vmem:[%s1053 + $0x39] sm:$0xff]
      %v1241 = vld [vmem:[%s1053 + $0x49] sm:$0xff]
      %v1242 = vld [vmem:[%s1053 + $0x51] sm:$0xff]
      %v1243 = vld [vmem:[%s1053 + $0x61] sm:$0xff]
      %v1244 = vld [vmem:[%s1053 + $0x69] sm:$0xff]
      %v1245 = vld [vmem:[%s1053 + $0x79] sm:$0xff]
      %v1246 = vld [vmem:[%s1053 + $0x81] sm:$0xff]
      %v1247 = vld [vmem:[%s1053 + $0x91] sm:$0xff]
      %v1248 = vld [vmem:[%s1053 + $0x99] sm:$0xff]
      %v1249 = vld [vmem:[%s1053 + $0xa9] sm:$0xff]
      %v1250 = vld [vmem:[%s1053 + $0xb1] sm:$0xff]
      %v1251 = vld [vmem:[%s1053 + $0xc1] sm:$0xff]
      %v1252 = vld [vmem:[%s1053 + $0xc9] sm:$0xff]
      %v1253 = vld [vmem:[%s1053 + $0xd9] sm:$0xff]
      %v1254 = vld [vmem:[%s1053 + $0xe1] sm:$0xff]
      %v1255 = vld [vmem:[%s3 + $0x10] sm:$0xf]
      %v1257 = vsel %vm486, %v1235, 0
      %v1260 = vsel %vm486, %v1236, 0
      %v1263 = vsel %vm486, %v1237, 0
      %v1266 = vsel %vm486, %v1238, 0
      %v1269 = vsel %vm486, %v1239, 0
      %v1272 = vsel %vm486, %v1240, 0
      %v1275 = vsel %vm486, %v1241, 0
      %v1278 = vsel %vm486, %v1242, 0
      %v1281 = vsel %vm486, %v1243, 0
      %v1284 = vsel %vm486, %v1244, 0
      %v1287 = vsel %vm486, %v1245, 0
      %v1290 = vsel %vm486, %v1246, 0
      %v1293 = vsel %vm486, %v1247, 0
      %v1296 = vsel %vm486, %v1248, 0
      %v1299 = vsel %vm486, %v1249, 0
      %v1302 = vsel %vm486, %v1250, 0
      %v1305 = vsel %vm486, %v1251, 0
      %v1308 = vsel %vm486, %v1252, 0
      %v1311 = vsel %vm486, %v1253, 0
      %v1314 = vsel %vm486, %v1254, 0
      %v1317 = vsel %vm651, %v1255, 0
      %1319 = vmatpush.msra.mxu0 0.0
      %1320 = vmatpush.msra.mxu0 0.0
      %1321 = vmatpush.msra.mxu0 0.0
      %1322 = vmatpush.msra.mxu0 0.0
      %1323 = vmatpush.msra.mxu0 0.0
      %1324 = vmatpush.msra.mxu0 0.0
      %1325 = vmatpush.msra.mxu0 0.0
      %1326 = vmatpush.msra.mxu0 0.0
      %1327 = vmatpush.msra.mxu0 0.0
      %1328 = vmatpush.msra.mxu0 0.0
      %1329 = vmatpush.msra.mxu0 0.0
      %1330 = vmatpush.msra.mxu0 0.0
      %1331 = vmatpush.msra.mxu0 0.0
      %1332 = vmatpush.msra.mxu0 0.0
      %1333 = vmatpush.msra.mxu0 0.0
      %1334 = vmatpush.msra.mxu0 %v1317
      %1335 = vmatmul.f32.gmra.mxu0 %v1257
      %v1336 = vpop.f32.mrf.mxu0
      %v1337 = vadd.f32 0.0, %v1336
      %1338 = vmatmul.f32.gmra.mxu0 %v1260
      %v1339 = vpop.f32.mrf.mxu0
      %v1340 = vadd.f32 0.0, %v1339
      %1341 = vmatmul.f32.gmra.mxu0 %v1263
      %v1342 = vpop.f32.mrf.mxu0
      %v1343 = vadd.f32 0.0, %v1342
      %1344 = vmatmul.f32.gmra.mxu0 %v1266
      %v1345 = vpop.f32.mrf.mxu0
      %v1346 = vadd.f32 0.0, %v1345
      %1347 = vmatmul.f32.gmra.mxu0 %v1269
      %v1348 = vpop.f32.mrf.mxu0
      %v1349 = vadd.f32 0.0, %v1348
      %1350 = vmatmul.f32.gmra.mxu0 %v1272
      %v1351 = vpop.f32.mrf.mxu0
      %v1352 = vadd.f32 0.0, %v1351
      %1353 = vmatmul.f32.gmra.mxu0 %v1275
      %v1354 = vpop.f32.mrf.mxu0
      %v1355 = vadd.f32 0.0, %v1354
      %1356 = vmatmul.f32.gmra.mxu0 %v1278
      %v1357 = vpop.f32.mrf.mxu0
      %v1358 = vadd.f32 0.0, %v1357
      %1359 = vmatmul.f32.gmra.mxu0 %v1281
      %v1360 = vpop.f32.mrf.mxu0
      %v1361 = vadd.f32 0.0, %v1360
      %1362 = vmatmul.f32.gmra.mxu0 %v1284
      %v1363 = vpop.f32.mrf.mxu0
      %v1364 = vadd.f32 0.0, %v1363
      %1365 = vmatmul.f32.gmra.mxu0 %v1287
      %v1366 = vpop.f32.mrf.mxu0
      %v1367 = vadd.f32 0.0, %v1366
      %1368 = vmatmul.f32.gmra.mxu0 %v1290
      %v1369 = vpop.f32.mrf.mxu0
      %v1370 = vadd.f32 0.0, %v1369
      %1371 = vmatmul.f32.gmra.mxu0 %v1293
      %v1372 = vpop.f32.mrf.mxu0
      %v1373 = vadd.f32 0.0, %v1372
      %1374 = vmatmul.f32.gmra.mxu0 %v1296
      %v1375 = vpop.f32.mrf.mxu0
      %v1376 = vadd.f32 0.0, %v1375
      %1377 = vmatmul.f32.gmra.mxu0 %v1299
      %v1378 = vpop.f32.mrf.mxu0
      %v1379 = vadd.f32 0.0, %v1378
      %1380 = vmatmul.f32.gmra.mxu0 %v1302
      %v1381 = vpop.f32.mrf.mxu0
      %v1382 = vadd.f32 0.0, %v1381
      %1383 = vmatmul.f32.gmra.mxu0 %v1305
      %v1384 = vpop.f32.mrf.mxu0
      %v1385 = vadd.f32 0.0, %v1384
      %1386 = vmatmul.f32.gmra.mxu0 %v1308
      %v1387 = vpop.f32.mrf.mxu0
      %v1388 = vadd.f32 0.0, %v1387
      %1389 = vmatmul.f32.gmra.mxu0 %v1311
      %v1390 = vpop.f32.mrf.mxu0
      %v1391 = vadd.f32 0.0, %v1390
      %1392 = vmatmul.f32.gmra.mxu0 %v1314
      %v1393 = vpop.f32.mrf.mxu0
      %v1394 = vadd.f32 0.0, %v1393
      %1395 = vdwg.mxu0
      %v1396 = vadd.f32 %v1215, %v1337
      %v1397 = vadd.f32 %v1216, %v1340
      %v1398 = vadd.f32 %v1217, %v1343
      %v1399 = vadd.f32 %v1218, %v1346
      %v1400 = vadd.f32 %v1219, %v1349
      %v1401 = vadd.f32 %v1220, %v1352
      %v1402 = vadd.f32 %v1221, %v1355
      %v1403 = vadd.f32 %v1222, %v1358
      %v1404 = vadd.f32 %v1223, %v1361
      %v1405 = vadd.f32 %v1224, %v1364
      %v1406 = vadd.f32 %v1225, %v1367
      %v1407 = vadd.f32 %v1226, %v1370
      %v1408 = vadd.f32 %v1227, %v1373
      %v1409 = vadd.f32 %v1228, %v1376
      %v1410 = vadd.f32 %v1229, %v1379
      %v1411 = vadd.f32 %v1230, %v1382
      %v1412 = vadd.f32 %v1231, %v1385
      %v1413 = vadd.f32 %v1232, %v1388
      %v1414 = vadd.f32 %v1233, %v1391
      %v1415 = vadd.f32 %v1234, %v1394
      %v1416 = vld [vmem:[%s1053 + $0x2] sm:$0xff]
      %v1417 = vld [vmem:[%s1053 + $0xa] sm:$0xff]
      %v1418 = vld [vmem:[%s1053 + $0x1a] sm:$0xff]
      %v1419 = vld [vmem:[%s1053 + $0x22] sm:$0xff]
      %v1420 = vld [vmem:[%s1053 + $0x32] sm:$0xff]
      %v1421 = vld [vmem:[%s1053 + $0x3a] sm:$0xff]
      %v1422 = vld [vmem:[%s1053 + $0x4a] sm:$0xff]
      %v1423 = vld [vmem:[%s1053 + $0x52] sm:$0xff]
      %v1424 = vld [vmem:[%s1053 + $0x62] sm:$0xff]
      %v1425 = vld [vmem:[%s1053 + $0x6a] sm:$0xff]
      %v1426 = vld [vmem:[%s1053 + $0x7a] sm:$0xff]
      %v1427 = vld [vmem:[%s1053 + $0x82] sm:$0xff]
      %v1428 = vld [vmem:[%s1053 + $0x92] sm:$0xff]
      %v1429 = vld [vmem:[%s1053 + $0x9a] sm:$0xff]
      %v1430 = vld [vmem:[%s1053 + $0xaa] sm:$0xff]
      %v1431 = vld [vmem:[%s1053 + $0xb2] sm:$0xff]
      %v1432 = vld [vmem:[%s1053 + $0xc2] sm:$0xff]
      %v1433 = vld [vmem:[%s1053 + $0xca] sm:$0xff]
      %v1434 = vld [vmem:[%s1053 + $0xda] sm:$0xff]
      %v1435 = vld [vmem:[%s1053 + $0xe2] sm:$0xff]
      %v1436 = vld [vmem:[%s3 + $0x14] sm:$0xf]
      %v1438 = vsel %vm486, %v1416, 0
      %v1441 = vsel %vm486, %v1417, 0
      %v1444 = vsel %vm486, %v1418, 0
      %v1447 = vsel %vm486, %v1419, 0
      %v1450 = vsel %vm486, %v1420, 0
      %v1453 = vsel %vm486, %v1421, 0
      %v1456 = vsel %vm486, %v1422, 0
      %v1459 = vsel %vm486, %v1423, 0
      %v1462 = vsel %vm486, %v1424, 0
      %v1465 = vsel %vm486, %v1425, 0
      %v1468 = vsel %vm486, %v1426, 0
      %v1471 = vsel %vm486, %v1427, 0
      %v1474 = vsel %vm486, %v1428, 0
      %v1477 = vsel %vm486, %v1429, 0
      %v1480 = vsel %vm486, %v1430, 0
      %v1483 = vsel %vm486, %v1431, 0
      %v1486 = vsel %vm486, %v1432, 0
      %v1489 = vsel %vm486, %v1433, 0
      %v1492 = vsel %vm486, %v1434, 0
      %v1495 = vsel %vm486, %v1435, 0
      %v1498 = vsel %vm651, %v1436, 0
      %1500 = vmatpush.msra.mxu0 0.0
      %1501 = vmatpush.msra.mxu0 0.0
      %1502 = vmatpush.msra.mxu0 0.0
      %1503 = vmatpush.msra.mxu0 0.0
      %1504 = vmatpush.msra.mxu0 0.0
      %1505 = vmatpush.msra.mxu0 0.0
      %1506 = vmatpush.msra.mxu0 0.0
      %1507 = vmatpush.msra.mxu0 0.0
      %1508 = vmatpush.msra.mxu0 0.0
      %1509 = vmatpush.msra.mxu0 0.0
      %1510 = vmatpush.msra.mxu0 0.0
      %1511 = vmatpush.msra.mxu0 0.0
      %1512 = vmatpush.msra.mxu0 0.0
      %1513 = vmatpush.msra.mxu0 0.0
      %1514 = vmatpush.msra.mxu0 0.0
      %1515 = vmatpush.msra.mxu0 %v1498
      %1516 = vmatmul.f32.gmra.mxu0 %v1438
      %v1517 = vpop.f32.mrf.mxu0
      %v1518 = vadd.f32 0.0, %v1517
      %1519 = vmatmul.f32.gmra.mxu0 %v1441
      %v1520 = vpop.f32.mrf.mxu0
      %v1521 = vadd.f32 0.0, %v1520
      %1522 = vmatmul.f32.gmra.mxu0 %v1444
      %v1523 = vpop.f32.mrf.mxu0
      %v1524 = vadd.f32 0.0, %v1523
      %1525 = vmatmul.f32.gmra.mxu0 %v1447
      %v1526 = vpop.f32.mrf.mxu0
      %v1527 = vadd.f32 0.0, %v1526
      %1528 = vmatmul.f32.gmra.mxu0 %v1450
      %v1529 = vpop.f32.mrf.mxu0
      %v1530 = vadd.f32 0.0, %v1529
      %1531 = vmatmul.f32.gmra.mxu0 %v1453
      %v1532 = vpop.f32.mrf.mxu0
      %v1533 = vadd.f32 0.0, %v1532
      %1534 = vmatmul.f32.gmra.mxu0 %v1456
      %v1535 = vpop.f32.mrf.mxu0
      %v1536 = vadd.f32 0.0, %v1535
      %1537 = vmatmul.f32.gmra.mxu0 %v1459
      %v1538 = vpop.f32.mrf.mxu0
      %v1539 = vadd.f32 0.0, %v1538
      %1540 = vmatmul.f32.gmra.mxu0 %v1462
      %v1541 = vpop.f32.mrf.mxu0
      %v1542 = vadd.f32 0.0, %v1541
      %1543 = vmatmul.f32.gmra.mxu0 %v1465
      %v1544 = vpop.f32.mrf.mxu0
      %v1545 = vadd.f32 0.0, %v1544
      %1546 = vmatmul.f32.gmra.mxu0 %v1468
      %v1547 = vpop.f32.mrf.mxu0
      %v1548 = vadd.f32 0.0, %v1547
      %1549 = vmatmul.f32.gmra.mxu0 %v1471
      %v1550 = vpop.f32.mrf.mxu0
      %v1551 = vadd.f32 0.0, %v1550
      %1552 = vmatmul.f32.gmra.mxu0 %v1474
      %v1553 = vpop.f32.mrf.mxu0
      %v1554 = vadd.f32 0.0, %v1553
      %1555 = vmatmul.f32.gmra.mxu0 %v1477
      %v1556 = vpop.f32.mrf.mxu0
      %v1557 = vadd.f32 0.0, %v1556
      %1558 = vmatmul.f32.gmra.mxu0 %v1480
      %v1559 = vpop.f32.mrf.mxu0
      %v1560 = vadd.f32 0.0, %v1559
      %1561 = vmatmul.f32.gmra.mxu0 %v1483
      %v1562 = vpop.f32.mrf.mxu0
      %v1563 = vadd.f32 0.0, %v1562
      %1564 = vmatmul.f32.gmra.mxu0 %v1486
      %v1565 = vpop.f32.mrf.mxu0
      %v1566 = vadd.f32 0.0, %v1565
      %1567 = vmatmul.f32.gmra.mxu0 %v1489
      %v1568 = vpop.f32.mrf.mxu0
      %v1569 = vadd.f32 0.0, %v1568
      %1570 = vmatmul.f32.gmra.mxu0 %v1492
      %v1571 = vpop.f32.mrf.mxu0
      %v1572 = vadd.f32 0.0, %v1571
      %1573 = vmatmul.f32.gmra.mxu0 %v1495
      %v1574 = vpop.f32.mrf.mxu0
      %v1575 = vadd.f32 0.0, %v1574
      %1576 = vdwg.mxu0
      %v1577 = vadd.f32 %v1396, %v1518
      %v1578 = vadd.f32 %v1397, %v1521
      %v1579 = vadd.f32 %v1398, %v1524
      %v1580 = vadd.f32 %v1399, %v1527
      %v1581 = vadd.f32 %v1400, %v1530
      %v1582 = vadd.f32 %v1401, %v1533
      %v1583 = vadd.f32 %v1402, %v1536
      %v1584 = vadd.f32 %v1403, %v1539
      %v1585 = vadd.f32 %v1404, %v1542
      %v1586 = vadd.f32 %v1405, %v1545
      %v1587 = vadd.f32 %v1406, %v1548
      %v1588 = vadd.f32 %v1407, %v1551
      %v1589 = vadd.f32 %v1408, %v1554
      %v1590 = vadd.f32 %v1409, %v1557
      %v1591 = vadd.f32 %v1410, %v1560
      %v1592 = vadd.f32 %v1411, %v1563
      %v1593 = vadd.f32 %v1412, %v1566
      %v1594 = vadd.f32 %v1413, %v1569
      %v1595 = vadd.f32 %v1414, %v1572
      %v1596 = vadd.f32 %v1415, %v1575
      %v1597 = vld [vmem:[%s507] sm:$0xff]
      %v1598 = vld [vmem:[%s507 + $0x8] sm:$0xff]
      %v1599 = vld [vmem:[%s507 + $0x18] sm:$0xff]
      %v1600 = vld [vmem:[%s507 + $0x20] sm:$0xff]
      %v1601 = vld [vmem:[%s507 + $0x30] sm:$0xff]
      %v1602 = vld [vmem:[%s507 + $0x38] sm:$0xff]
      %v1603 = vld [vmem:[%s507 + $0x48] sm:$0xff]
      %v1604 = vld [vmem:[%s507 + $0x50] sm:$0xff]
      %v1605 = vld [vmem:[%s507 + $0x60] sm:$0xff]
      %v1606 = vld [vmem:[%s507 + $0x68] sm:$0xff]
      %v1607 = vld [vmem:[%s507 + $0x78] sm:$0xff]
      %v1608 = vld [vmem:[%s507 + $0x80] sm:$0xff]
      %v1609 = vld [vmem:[%s507 + $0x90] sm:$0xff]
      %v1610 = vld [vmem:[%s507 + $0x98] sm:$0xff]
      %v1611 = vld [vmem:[%s507 + $0xa8] sm:$0xff]
      %v1612 = vld [vmem:[%s507 + $0xb0] sm:$0xff]
      %v1613 = vld [vmem:[%s507 + $0xc0] sm:$0xff]
      %v1614 = vld [vmem:[%s507 + $0xc8] sm:$0xff]
      %v1615 = vld [vmem:[%s507 + $0xd8] sm:$0xff]
      %v1616 = vld [vmem:[%s507 + $0xe0] sm:$0xff]
      %v1617 = vld [vmem:[%s3 + $0x18] sm:$0xf]
      %v1619 = vsel %vm486, %v1597, 0
      %v1622 = vsel %vm486, %v1598, 0
      %v1625 = vsel %vm486, %v1599, 0
      %v1628 = vsel %vm486, %v1600, 0
      %v1631 = vsel %vm486, %v1601, 0
      %v1634 = vsel %vm486, %v1602, 0
      %v1637 = vsel %vm486, %v1603, 0
      %v1640 = vsel %vm486, %v1604, 0
      %v1643 = vsel %vm486, %v1605, 0
      %v1646 = vsel %vm486, %v1606, 0
      %v1649 = vsel %vm486, %v1607, 0
      %v1652 = vsel %vm486, %v1608, 0
      %v1655 = vsel %vm486, %v1609, 0
      %v1658 = vsel %vm486, %v1610, 0
      %v1661 = vsel %vm486, %v1611, 0
      %v1664 = vsel %vm486, %v1612, 0
      %v1667 = vsel %vm486, %v1613, 0
      %v1670 = vsel %vm486, %v1614, 0
      %v1673 = vsel %vm486, %v1615, 0
      %v1676 = vsel %vm486, %v1616, 0
      %v1679 = vsel %vm651, %v1617, 0
      %1681 = vmatpush.msra.mxu0 0.0
      %1682 = vmatpush.msra.mxu0 0.0
      %1683 = vmatpush.msra.mxu0 0.0
      %1684 = vmatpush.msra.mxu0 0.0
      %1685 = vmatpush.msra.mxu0 0.0
      %1686 = vmatpush.msra.mxu0 0.0
      %1687 = vmatpush.msra.mxu0 0.0
      %1688 = vmatpush.msra.mxu0 0.0
      %1689 = vmatpush.msra.mxu0 0.0
      %1690 = vmatpush.msra.mxu0 0.0
      %1691 = vmatpush.msra.mxu0 0.0
      %1692 = vmatpush.msra.mxu0 0.0
      %1693 = vmatpush.msra.mxu0 0.0
      %1694 = vmatpush.msra.mxu0 0.0
      %1695 = vmatpush.msra.mxu0 0.0
      %1696 = vmatpush.msra.mxu0 %v1679
      %1697 = vmatmul.f32.gmra.mxu0 %v1619
      %v1698 = vpop.f32.mrf.mxu0
      %v1699 = vadd.f32 0.0, %v1698
      %1700 = vmatmul.f32.gmra.mxu0 %v1622
      %v1701 = vpop.f32.mrf.mxu0
      %v1702 = vadd.f32 0.0, %v1701
      %1703 = vmatmul.f32.gmra.mxu0 %v1625
      %v1704 = vpop.f32.mrf.mxu0
      %v1705 = vadd.f32 0.0, %v1704
      %1706 = vmatmul.f32.gmra.mxu0 %v1628
      %v1707 = vpop.f32.mrf.mxu0
      %v1708 = vadd.f32 0.0, %v1707
      %1709 = vmatmul.f32.gmra.mxu0 %v1631
      %v1710 = vpop.f32.mrf.mxu0
      %v1711 = vadd.f32 0.0, %v1710
      %1712 = vmatmul.f32.gmra.mxu0 %v1634
      %v1713 = vpop.f32.mrf.mxu0
      %v1714 = vadd.f32 0.0, %v1713
      %1715 = vmatmul.f32.gmra.mxu0 %v1637
      %v1716 = vpop.f32.mrf.mxu0
      %v1717 = vadd.f32 0.0, %v1716
      %1718 = vmatmul.f32.gmra.mxu0 %v1640
      %v1719 = vpop.f32.mrf.mxu0
      %v1720 = vadd.f32 0.0, %v1719
      %1721 = vmatmul.f32.gmra.mxu0 %v1643
      %v1722 = vpop.f32.mrf.mxu0
      %v1723 = vadd.f32 0.0, %v1722
      %1724 = vmatmul.f32.gmra.mxu0 %v1646
      %v1725 = vpop.f32.mrf.mxu0
      %v1726 = vadd.f32 0.0, %v1725
      %1727 = vmatmul.f32.gmra.mxu0 %v1649
      %v1728 = vpop.f32.mrf.mxu0
      %v1729 = vadd.f32 0.0, %v1728
      %1730 = vmatmul.f32.gmra.mxu0 %v1652
      %v1731 = vpop.f32.mrf.mxu0
      %v1732 = vadd.f32 0.0, %v1731
      %1733 = vmatmul.f32.gmra.mxu0 %v1655
      %v1734 = vpop.f32.mrf.mxu0
      %v1735 = vadd.f32 0.0, %v1734
      %1736 = vmatmul.f32.gmra.mxu0 %v1658
      %v1737 = vpop.f32.mrf.mxu0
      %v1738 = vadd.f32 0.0, %v1737
      %1739 = vmatmul.f32.gmra.mxu0 %v1661
      %v1740 = vpop.f32.mrf.mxu0
      %v1741 = vadd.f32 0.0, %v1740
      %1742 = vmatmul.f32.gmra.mxu0 %v1664
      %v1743 = vpop.f32.mrf.mxu0
      %v1744 = vadd.f32 0.0, %v1743
      %1745 = vmatmul.f32.gmra.mxu0 %v1667
      %v1746 = vpop.f32.mrf.mxu0
      %v1747 = vadd.f32 0.0, %v1746
      %1748 = vmatmul.f32.gmra.mxu0 %v1670
      %v1749 = vpop.f32.mrf.mxu0
      %v1750 = vadd.f32 0.0, %v1749
      %1751 = vmatmul.f32.gmra.mxu0 %v1673
      %v1752 = vpop.f32.mrf.mxu0
      %v1753 = vadd.f32 0.0, %v1752
      %1754 = vmatmul.f32.gmra.mxu0 %v1676
      %v1755 = vpop.f32.mrf.mxu0
      %v1756 = vadd.f32 0.0, %v1755
      %1757 = vdwg.mxu0
      %v1758 = vadd.f32 %v1577, %v1699
      %v1759 = vadd.f32 %v1578, %v1702
      %v1760 = vadd.f32 %v1579, %v1705
      %v1761 = vadd.f32 %v1580, %v1708
      %v1762 = vadd.f32 %v1581, %v1711
      %v1763 = vadd.f32 %v1582, %v1714
      %v1764 = vadd.f32 %v1583, %v1717
      %v1765 = vadd.f32 %v1584, %v1720
      %v1766 = vadd.f32 %v1585, %v1723
      %v1767 = vadd.f32 %v1586, %v1726
      %v1768 = vadd.f32 %v1587, %v1729
      %v1769 = vadd.f32 %v1588, %v1732
      %v1770 = vadd.f32 %v1589, %v1735
      %v1771 = vadd.f32 %v1590, %v1738
      %v1772 = vadd.f32 %v1591, %v1741
      %v1773 = vadd.f32 %v1592, %v1744
      %v1774 = vadd.f32 %v1593, %v1747
      %v1775 = vadd.f32 %v1594, %v1750
      %v1776 = vadd.f32 %v1595, %v1753
      %v1777 = vadd.f32 %v1596, %v1756
      %v1778 = vld [vmem:[%s507 + $0x1] sm:$0xff]
      %v1779 = vld [vmem:[%s507 + $0x9] sm:$0xff]
      %v1780 = vld [vmem:[%s507 + $0x19] sm:$0xff]
      %v1781 = vld [vmem:[%s507 + $0x21] sm:$0xff]
      %v1782 = vld [vmem:[%s507 + $0x31] sm:$0xff]
      %v1783 = vld [vmem:[%s507 + $0x39] sm:$0xff]
      %v1784 = vld [vmem:[%s507 + $0x49] sm:$0xff]
      %v1785 = vld [vmem:[%s507 + $0x51] sm:$0xff]
      %v1786 = vld [vmem:[%s507 + $0x61] sm:$0xff]
      %v1787 = vld [vmem:[%s507 + $0x69] sm:$0xff]
      %v1788 = vld [vmem:[%s507 + $0x79] sm:$0xff]
      %v1789 = vld [vmem:[%s507 + $0x81] sm:$0xff]
      %v1790 = vld [vmem:[%s507 + $0x91] sm:$0xff]
      %v1791 = vld [vmem:[%s507 + $0x99] sm:$0xff]
      %v1792 = vld [vmem:[%s507 + $0xa9] sm:$0xff]
      %v1793 = vld [vmem:[%s507 + $0xb1] sm:$0xff]
      %v1794 = vld [vmem:[%s507 + $0xc1] sm:$0xff]
      %v1795 = vld [vmem:[%s507 + $0xc9] sm:$0xff]
      %v1796 = vld [vmem:[%s507 + $0xd9] sm:$0xff]
      %v1797 = vld [vmem:[%s507 + $0xe1] sm:$0xff]
      %v1798 = vld [vmem:[%s3 + $0x1c] sm:$0xf]
      %v1800 = vsel %vm486, %v1778, 0
      %v1803 = vsel %vm486, %v1779, 0
      %v1806 = vsel %vm486, %v1780, 0
      %v1809 = vsel %vm486, %v1781, 0
      %v1812 = vsel %vm486, %v1782, 0
      %v1815 = vsel %vm486, %v1783, 0
      %v1818 = vsel %vm486, %v1784, 0
      %v1821 = vsel %vm486, %v1785, 0
      %v1824 = vsel %vm486, %v1786, 0
      %v1827 = vsel %vm486, %v1787, 0
      %v1830 = vsel %vm486, %v1788, 0
      %v1833 = vsel %vm486, %v1789, 0
      %v1836 = vsel %vm486, %v1790, 0
      %v1839 = vsel %vm486, %v1791, 0
      %v1842 = vsel %vm486, %v1792, 0
      %v1845 = vsel %vm486, %v1793, 0
      %v1848 = vsel %vm486, %v1794, 0
      %v1851 = vsel %vm486, %v1795, 0
      %v1854 = vsel %vm486, %v1796, 0
      %v1857 = vsel %vm486, %v1797, 0
      %v1860 = vsel %vm651, %v1798, 0
      %1862 = vmatpush.msra.mxu0 0.0
      %1863 = vmatpush.msra.mxu0 0.0
      %1864 = vmatpush.msra.mxu0 0.0
      %1865 = vmatpush.msra.mxu0 0.0
      %1866 = vmatpush.msra.mxu0 0.0
      %1867 = vmatpush.msra.mxu0 0.0
      %1868 = vmatpush.msra.mxu0 0.0
      %1869 = vmatpush.msra.mxu0 0.0
      %1870 = vmatpush.msra.mxu0 0.0
      %1871 = vmatpush.msra.mxu0 0.0
      %1872 = vmatpush.msra.mxu0 0.0
      %1873 = vmatpush.msra.mxu0 0.0
      %1874 = vmatpush.msra.mxu0 0.0
      %1875 = vmatpush.msra.mxu0 0.0
      %1876 = vmatpush.msra.mxu0 0.0
      %1877 = vmatpush.msra.mxu0 %v1860
      %1878 = vmatmul.f32.gmra.mxu0 %v1800
      %v1879 = vpop.f32.mrf.mxu0
      %v1880 = vadd.f32 0.0, %v1879
      %1881 = vmatmul.f32.gmra.mxu0 %v1803
      %v1882 = vpop.f32.mrf.mxu0
      %v1883 = vadd.f32 0.0, %v1882
      %1884 = vmatmul.f32.gmra.mxu0 %v1806
      %v1885 = vpop.f32.mrf.mxu0
      %v1886 = vadd.f32 0.0, %v1885
      %1887 = vmatmul.f32.gmra.mxu0 %v1809
      %v1888 = vpop.f32.mrf.mxu0
      %v1889 = vadd.f32 0.0, %v1888
      %1890 = vmatmul.f32.gmra.mxu0 %v1812
      %v1891 = vpop.f32.mrf.mxu0
      %v1892 = vadd.f32 0.0, %v1891
      %1893 = vmatmul.f32.gmra.mxu0 %v1815
      %v1894 = vpop.f32.mrf.mxu0
      %v1895 = vadd.f32 0.0, %v1894
      %1896 = vmatmul.f32.gmra.mxu0 %v1818
      %v1897 = vpop.f32.mrf.mxu0
      %v1898 = vadd.f32 0.0, %v1897
      %1899 = vmatmul.f32.gmra.mxu0 %v1821
      %v1900 = vpop.f32.mrf.mxu0
      %v1901 = vadd.f32 0.0, %v1900
      %1902 = vmatmul.f32.gmra.mxu0 %v1824
      %v1903 = vpop.f32.mrf.mxu0
      %v1904 = vadd.f32 0.0, %v1903
      %1905 = vmatmul.f32.gmra.mxu0 %v1827
      %v1906 = vpop.f32.mrf.mxu0
      %v1907 = vadd.f32 0.0, %v1906
      %1908 = vmatmul.f32.gmra.mxu0 %v1830
      %v1909 = vpop.f32.mrf.mxu0
      %v1910 = vadd.f32 0.0, %v1909
      %1911 = vmatmul.f32.gmra.mxu0 %v1833
      %v1912 = vpop.f32.mrf.mxu0
      %v1913 = vadd.f32 0.0, %v1912
      %1914 = vmatmul.f32.gmra.mxu0 %v1836
      %v1915 = vpop.f32.mrf.mxu0
      %v1916 = vadd.f32 0.0, %v1915
      %1917 = vmatmul.f32.gmra.mxu0 %v1839
      %v1918 = vpop.f32.mrf.mxu0
      %v1919 = vadd.f32 0.0, %v1918
      %1920 = vmatmul.f32.gmra.mxu0 %v1842
      %v1921 = vpop.f32.mrf.mxu0
      %v1922 = vadd.f32 0.0, %v1921
      %1923 = vmatmul.f32.gmra.mxu0 %v1845
      %v1924 = vpop.f32.mrf.mxu0
      %v1925 = vadd.f32 0.0, %v1924
      %1926 = vmatmul.f32.gmra.mxu0 %v1848
      %v1927 = vpop.f32.mrf.mxu0
      %v1928 = vadd.f32 0.0, %v1927
      %1929 = vmatmul.f32.gmra.mxu0 %v1851
      %v1930 = vpop.f32.mrf.mxu0
      %v1931 = vadd.f32 0.0, %v1930
      %1932 = vmatmul.f32.gmra.mxu0 %v1854
      %v1933 = vpop.f32.mrf.mxu0
      %v1934 = vadd.f32 0.0, %v1933
      %1935 = vmatmul.f32.gmra.mxu0 %v1857
      %v1936 = vpop.f32.mrf.mxu0
      %v1937 = vadd.f32 0.0, %v1936
      %1938 = vdwg.mxu0
      %v1939 = vadd.f32 %v1758, %v1880
      %v1940 = vadd.f32 %v1759, %v1883
      %v1941 = vadd.f32 %v1760, %v1886
      %v1942 = vadd.f32 %v1761, %v1889
      %v1943 = vadd.f32 %v1762, %v1892
      %v1944 = vadd.f32 %v1763, %v1895
      %v1945 = vadd.f32 %v1764, %v1898
      %v1946 = vadd.f32 %v1765, %v1901
      %v1947 = vadd.f32 %v1766, %v1904
      %v1948 = vadd.f32 %v1767, %v1907
      %v1949 = vadd.f32 %v1768, %v1910
      %v1950 = vadd.f32 %v1769, %v1913
      %v1951 = vadd.f32 %v1770, %v1916
      %v1952 = vadd.f32 %v1771, %v1919
      %v1953 = vadd.f32 %v1772, %v1922
      %v1954 = vadd.f32 %v1773, %v1925
      %v1955 = vadd.f32 %v1774, %v1928
      %v1956 = vadd.f32 %v1775, %v1931
      %v1957 = vadd.f32 %v1776, %v1934
      %v1958 = vadd.f32 %v1777, %v1937
      %v1959 = vld [vmem:[%s507 + $0x2] sm:$0xff]
      %v1960 = vld [vmem:[%s507 + $0xa] sm:$0xff]
      %v1961 = vld [vmem:[%s507 + $0x1a] sm:$0xff]
      %v1962 = vld [vmem:[%s507 + $0x22] sm:$0xff]
      %v1963 = vld [vmem:[%s507 + $0x32] sm:$0xff]
      %v1964 = vld [vmem:[%s507 + $0x3a] sm:$0xff]
      %v1965 = vld [vmem:[%s507 + $0x4a] sm:$0xff]
      %v1966 = vld [vmem:[%s507 + $0x52] sm:$0xff]
      %v1967 = vld [vmem:[%s507 + $0x62] sm:$0xff]
      %v1968 = vld [vmem:[%s507 + $0x6a] sm:$0xff]
      %v1969 = vld [vmem:[%s507 + $0x7a] sm:$0xff]
      %v1970 = vld [vmem:[%s507 + $0x82] sm:$0xff]
      %v1971 = vld [vmem:[%s507 + $0x92] sm:$0xff]
      %v1972 = vld [vmem:[%s507 + $0x9a] sm:$0xff]
      %v1973 = vld [vmem:[%s507 + $0xaa] sm:$0xff]
      %v1974 = vld [vmem:[%s507 + $0xb2] sm:$0xff]
      %v1975 = vld [vmem:[%s507 + $0xc2] sm:$0xff]
      %v1976 = vld [vmem:[%s507 + $0xca] sm:$0xff]
      %v1977 = vld [vmem:[%s507 + $0xda] sm:$0xff]
      %v1978 = vld [vmem:[%s507 + $0xe2] sm:$0xff]
      %v1979 = vld [vmem:[%s3 + $0x20] sm:$0xf]
      %v1981 = vsel %vm486, %v1959, 0
      %v1984 = vsel %vm486, %v1960, 0
      %v1987 = vsel %vm486, %v1961, 0
      %v1990 = vsel %vm486, %v1962, 0
      %v1993 = vsel %vm486, %v1963, 0
      %v1996 = vsel %vm486, %v1964, 0
      %v1999 = vsel %vm486, %v1965, 0
      %v2002 = vsel %vm486, %v1966, 0
      %v2005 = vsel %vm486, %v1967, 0
      %v2008 = vsel %vm486, %v1968, 0
      %v2011 = vsel %vm486, %v1969, 0
      %v2014 = vsel %vm486, %v1970, 0
      %v2017 = vsel %vm486, %v1971, 0
      %v2020 = vsel %vm486, %v1972, 0
      %v2023 = vsel %vm486, %v1973, 0
      %v2026 = vsel %vm486, %v1974, 0
      %v2029 = vsel %vm486, %v1975, 0
      %v2032 = vsel %vm486, %v1976, 0
      %v2035 = vsel %vm486, %v1977, 0
      %v2038 = vsel %vm486, %v1978, 0
      %v2041 = vsel %vm651, %v1979, 0
      %2043 = vmatpush.msra.mxu0 0.0
      %2044 = vmatpush.msra.mxu0 0.0
      %2045 = vmatpush.msra.mxu0 0.0
      %2046 = vmatpush.msra.mxu0 0.0
      %2047 = vmatpush.msra.mxu0 0.0
      %2048 = vmatpush.msra.mxu0 0.0
      %2049 = vmatpush.msra.mxu0 0.0
      %2050 = vmatpush.msra.mxu0 0.0
      %2051 = vmatpush.msra.mxu0 0.0
      %2052 = vmatpush.msra.mxu0 0.0
      %2053 = vmatpush.msra.mxu0 0.0
      %2054 = vmatpush.msra.mxu0 0.0
      %2055 = vmatpush.msra.mxu0 0.0
      %2056 = vmatpush.msra.mxu0 0.0
      %2057 = vmatpush.msra.mxu0 0.0
      %2058 = vmatpush.msra.mxu0 %v2041
      %2059 = vmatmul.f32.gmra.mxu0 %v1981
      %v2060 = vpop.f32.mrf.mxu0
      %v2061 = vadd.f32 0.0, %v2060
      %2062 = vmatmul.f32.gmra.mxu0 %v1984
      %v2063 = vpop.f32.mrf.mxu0
      %v2064 = vadd.f32 0.0, %v2063
      %2065 = vmatmul.f32.gmra.mxu0 %v1987
      %v2066 = vpop.f32.mrf.mxu0
      %v2067 = vadd.f32 0.0, %v2066
      %2068 = vmatmul.f32.gmra.mxu0 %v1990
      %v2069 = vpop.f32.mrf.mxu0
      %v2070 = vadd.f32 0.0, %v2069
      %2071 = vmatmul.f32.gmra.mxu0 %v1993
      %v2072 = vpop.f32.mrf.mxu0
      %v2073 = vadd.f32 0.0, %v2072
      %2074 = vmatmul.f32.gmra.mxu0 %v1996
      %v2075 = vpop.f32.mrf.mxu0
      %v2076 = vadd.f32 0.0, %v2075
      %2077 = vmatmul.f32.gmra.mxu0 %v1999
      %v2078 = vpop.f32.mrf.mxu0
      %v2079 = vadd.f32 0.0, %v2078
      %2080 = vmatmul.f32.gmra.mxu0 %v2002
      %v2081 = vpop.f32.mrf.mxu0
      %v2082 = vadd.f32 0.0, %v2081
      %2083 = vmatmul.f32.gmra.mxu0 %v2005
      %v2084 = vpop.f32.mrf.mxu0
      %v2085 = vadd.f32 0.0, %v2084
      %2086 = vmatmul.f32.gmra.mxu0 %v2008
      %v2087 = vpop.f32.mrf.mxu0
      %v2088 = vadd.f32 0.0, %v2087
      %2089 = vmatmul.f32.gmra.mxu0 %v2011
      %v2090 = vpop.f32.mrf.mxu0
      %v2091 = vadd.f32 0.0, %v2090
      %2092 = vmatmul.f32.gmra.mxu0 %v2014
      %v2093 = vpop.f32.mrf.mxu0
      %v2094 = vadd.f32 0.0, %v2093
      %2095 = vmatmul.f32.gmra.mxu0 %v2017
      %v2096 = vpop.f32.mrf.mxu0
      %v2097 = vadd.f32 0.0, %v2096
      %2098 = vmatmul.f32.gmra.mxu0 %v2020
      %v2099 = vpop.f32.mrf.mxu0
      %v2100 = vadd.f32 0.0, %v2099
      %2101 = vmatmul.f32.gmra.mxu0 %v2023
      %v2102 = vpop.f32.mrf.mxu0
      %v2103 = vadd.f32 0.0, %v2102
      %2104 = vmatmul.f32.gmra.mxu0 %v2026
      %v2105 = vpop.f32.mrf.mxu0
      %v2106 = vadd.f32 0.0, %v2105
      %2107 = vmatmul.f32.gmra.mxu0 %v2029
      %v2108 = vpop.f32.mrf.mxu0
      %v2109 = vadd.f32 0.0, %v2108
      %2110 = vmatmul.f32.gmra.mxu0 %v2032
      %v2111 = vpop.f32.mrf.mxu0
      %v2112 = vadd.f32 0.0, %v2111
      %2113 = vmatmul.f32.gmra.mxu0 %v2035
      %v2114 = vpop.f32.mrf.mxu0
      %v2115 = vadd.f32 0.0, %v2114
      %2116 = vmatmul.f32.gmra.mxu0 %v2038
      %v2117 = vpop.f32.mrf.mxu0
      %v2118 = vadd.f32 0.0, %v2117
      %2119 = vdwg.mxu0
      %v2120 = vadd.f32 %v1939, %v2061
      %v2121 = vadd.f32 %v1940, %v2064
      %v2122 = vadd.f32 %v1941, %v2067
      %v2123 = vadd.f32 %v1942, %v2070
      %v2124 = vadd.f32 %v1943, %v2073
      %v2125 = vadd.f32 %v1944, %v2076
      %v2126 = vadd.f32 %v1945, %v2079
      %v2127 = vadd.f32 %v1946, %v2082
      %v2128 = vadd.f32 %v1947, %v2085
      %v2129 = vadd.f32 %v1948, %v2088
      %v2130 = vadd.f32 %v1949, %v2091
      %v2131 = vadd.f32 %v1950, %v2094
      %v2132 = vadd.f32 %v1951, %v2097
      %v2133 = vadd.f32 %v1952, %v2100
      %v2134 = vadd.f32 %v1953, %v2103
      %v2135 = vadd.f32 %v1954, %v2106
      %v2136 = vadd.f32 %v1955, %v2109
      %v2137 = vadd.f32 %v1956, %v2112
      %v2138 = vadd.f32 %v1957, %v2115
      %v2139 = vadd.f32 %v1958, %v2118
      %v2140 = vld [vmem:[%s4] sm:$0x1]
      %v2142 = vperm.slane %v2140, 0
      %v2144 = vadd.f32 %v2120, %v2142
      %v2145 = vadd.f32 %v2121, %v2142
      %v2146 = vadd.f32 %v2122, %v2142
      %v2147 = vadd.f32 %v2123, %v2142
      %v2148 = vadd.f32 %v2124, %v2142
      %v2149 = vadd.f32 %v2125, %v2142
      %v2150 = vadd.f32 %v2126, %v2142
      %v2151 = vadd.f32 %v2127, %v2142
      %v2152 = vadd.f32 %v2128, %v2142
      %v2153 = vadd.f32 %v2129, %v2142
      %v2154 = vadd.f32 %v2130, %v2142
      %v2155 = vadd.f32 %v2131, %v2142
      %v2156 = vadd.f32 %v2132, %v2142
      %v2157 = vadd.f32 %v2133, %v2142
      %v2158 = vadd.f32 %v2134, %v2142
      %v2159 = vadd.f32 %v2135, %v2142
      %v2160 = vadd.f32 %v2136, %v2142
      %v2161 = vadd.f32 %v2137, %v2142
      %v2162 = vadd.f32 %v2138, %v2142
      %v2163 = vadd.f32 %v2139, %v2142
      %v2164 = vmax.f32 %v2144, 0.0
      %v2165 = vmax.f32 %v2145, 0.0
      %v2166 = vmax.f32 %v2146, 0.0
      %v2167 = vmax.f32 %v2147, 0.0
      %v2168 = vmax.f32 %v2148, 0.0
      %v2169 = vmax.f32 %v2149, 0.0
      %v2170 = vmax.f32 %v2150, 0.0
      %v2171 = vmax.f32 %v2151, 0.0
      %v2172 = vmax.f32 %v2152, 0.0
      %v2173 = vmax.f32 %v2153, 0.0
      %v2174 = vmax.f32 %v2154, 0.0
      %v2175 = vmax.f32 %v2155, 0.0
      %v2176 = vmax.f32 %v2156, 0.0
      %v2177 = vmax.f32 %v2157, 0.0
      %v2178 = vmax.f32 %v2158, 0.0
      %v2179 = vmax.f32 %v2159, 0.0
      %v2180 = vmax.f32 %v2160, 0.0
      %v2181 = vmax.f32 %v2161, 0.0
      %v2182 = vmax.f32 %v2162, 0.0
      %v2183 = vmax.f32 %v2163, 0.0
      %vm2184 = vcmask 57344
      %2185 = vst.msk [vmem:[#allocation3] sm:$0x1] %vm2184, 0.0
      %2186 = vst.msk [vmem:[#allocation3 + $0x18] sm:$0x1] %vm2184, 0.0
      %2187 = vst.msk [vmem:[#allocation3 + $0x30] sm:$0x1] %vm2184, 0.0
      %2188 = vst.msk [vmem:[#allocation3 + $0x48] sm:$0x1] %vm2184, 0.0
      %2189 = vst.msk [vmem:[#allocation3 + $0x60] sm:$0x1] %vm2184, 0.0
      %2190 = vst.msk [vmem:[#allocation3 + $0x78] sm:$0x1] %vm2184, 0.0
      %2191 = vst.msk [vmem:[#allocation3 + $0x90] sm:$0x1] %vm2184, 0.0
      %2192 = vst.msk [vmem:[#allocation3 + $0xa8] sm:$0x1] %vm2184, 0.0
      %2193 = vst.msk [vmem:[#allocation3 + $0xc0] sm:$0x1] %vm2184, 0.0
      %2194 = vst.msk [vmem:[#allocation3 + $0xd8] sm:$0x1] %vm2184, 0.0
      %2195 = vst.msk [vmem:[#allocation3 + $0x11] sm:$0x1] %vm2184, 0.0
      %2196 = vst.msk [vmem:[#allocation3 + $0x29] sm:$0x1] %vm2184, 0.0
      %2197 = vst.msk [vmem:[#allocation3 + $0x41] sm:$0x1] %vm2184, 0.0
      %2198 = vst.msk [vmem:[#allocation3 + $0x59] sm:$0x1] %vm2184, 0.0
      %2199 = vst.msk [vmem:[#allocation3 + $0x71] sm:$0x1] %vm2184, 0.0
      %2200 = vst.msk [vmem:[#allocation3 + $0x89] sm:$0x1] %vm2184, 0.0
      %2201 = vst.msk [vmem:[#allocation3 + $0xa1] sm:$0x1] %vm2184, 0.0
      %2202 = vst.msk [vmem:[#allocation3 + $0xb9] sm:$0x1] %vm2184, 0.0
      %2203 = vst.msk [vmem:[#allocation3 + $0xd1] sm:$0x1] %vm2184, 0.0
      %2204 = vst.msk [vmem:[#allocation3 + $0xe9] sm:$0x1] %vm2184, 0.0
      %vm2205 = vcmask 64512
      %2206 = vst.msk [vmem:[#allocation3 + $0x1] sm:$0xff] %vm2205, %v2164
      %2207 = vst.msk [vmem:[#allocation3 + $0x9] sm:$0xff] %vm2205, %v2165
      %2208 = vst.msk [vmem:[#allocation3 + $0x19] sm:$0xff] %vm2205, %v2166
      %2209 = vst.msk [vmem:[#allocation3 + $0x21] sm:$0xff] %vm2205, %v2167
      %2210 = vst.msk [vmem:[#allocation3 + $0x31] sm:$0xff] %vm2205, %v2168
      %2211 = vst.msk [vmem:[#allocation3 + $0x39] sm:$0xff] %vm2205, %v2169
      %2212 = vst.msk [vmem:[#allocation3 + $0x49] sm:$0xff] %vm2205, %v2170
      %2213 = vst.msk [vmem:[#allocation3 + $0x51] sm:$0xff] %vm2205, %v2171
      %2214 = vst.msk [vmem:[#allocation3 + $0x61] sm:$0xff] %vm2205, %v2172
      %2215 = vst.msk [vmem:[#allocation3 + $0x69] sm:$0xff] %vm2205, %v2173
      %2216 = vst.msk [vmem:[#allocation3 + $0x79] sm:$0xff] %vm2205, %v2174
      %2217 = vst.msk [vmem:[#allocation3 + $0x81] sm:$0xff] %vm2205, %v2175
      %2218 = vst.msk [vmem:[#allocation3 + $0x91] sm:$0xff] %vm2205, %v2176
      %2219 = vst.msk [vmem:[#allocation3 + $0x99] sm:$0xff] %vm2205, %v2177
      %2220 = vst.msk [vmem:[#allocation3 + $0xa9] sm:$0xff] %vm2205, %v2178
      %2221 = vst.msk [vmem:[#allocation3 + $0xb1] sm:$0xff] %vm2205, %v2179
      %2222 = vst.msk [vmem:[#allocation3 + $0xc1] sm:$0xff] %vm2205, %v2180
      %2223 = vst.msk [vmem:[#allocation3 + $0xc9] sm:$0xff] %vm2205, %v2181
      %2224 = vst.msk [vmem:[#allocation3 + $0xd9] sm:$0xff] %vm2205, %v2182
      %2225 = vst.msk [vmem:[#allocation3 + $0xe1] sm:$0xff] %vm2205, %v2183
      // Predicated region
      $region57: #{tpu_custom_call.1} parent=47 // pred_check
        %p2226 = pneg %p533
      $region58: #{tpu_custom_call.1} parent=47 // pred_check_branch
        %2228 = sbr.rel (%p2226) target = $region60
      $region59: #{tpu_custom_call.1} parent=47 // pred_region
        %2229 = vst.msk [vmem:[#allocation3 + $0x1] sm:$0xff] %vm2205, 0.0
        %2230 = vst.msk [vmem:[#allocation3 + $0x9] sm:$0xff] %vm2205, 0.0
      $region60: #{tpu_custom_call.1} parent=47 // pred_fallthru
        _
      // Predicated region
      $region61: #{tpu_custom_call.1} parent=47 // pred_check
        %p2231 = pneg %p541
      $region62: #{tpu_custom_call.1} parent=47 // pred_check_branch
        %2233 = sbr.rel (%p2231) target = $region64
      $region63: #{tpu_custom_call.1} parent=47 // pred_region
        %s2234 = scalar_lea.vmem [#allocation3], 216
        %2235 = vst.msk [vmem:[%s2234 + $0x1] sm:$0xff] %vm2205, 0.0
        %2236 = vst.msk [vmem:[%s2234 + $0x9] sm:$0xff] %vm2205, 0.0
      $region64: #{tpu_custom_call.1} parent=47 // pred_fallthru
        _
      %v2237 = vld [vmem:[#allocation3] sm:$0xff]
      %v2238 = vld [vmem:[#allocation3 + $0x8] sm:$0xff]
      %v2239 = vld [vmem:[#allocation3 + $0x18] sm:$0xff]
      %v2240 = vld [vmem:[#allocation3 + $0x20] sm:$0xff]
      %v2241 = vld [vmem:[#allocation3 + $0x30] sm:$0xff]
      %v2242 = vld [vmem:[#allocation3 + $0x38] sm:$0xff]
      %v2243 = vld [vmem:[#allocation3 + $0x48] sm:$0xff]
      %v2244 = vld [vmem:[#allocation3 + $0x50] sm:$0xff]
      %v2245 = vld [vmem:[#allocation3 + $0x60] sm:$0xff]
      %v2246 = vld [vmem:[#allocation3 + $0x68] sm:$0xff]
      %v2247 = vld [vmem:[#allocation3 + $0x78] sm:$0xff]
      %v2248 = vld [vmem:[#allocation3 + $0x80] sm:$0xff]
      %v2249 = vld [vmem:[#allocation3 + $0x90] sm:$0xff]
      %v2250 = vld [vmem:[#allocation3 + $0x98] sm:$0xff]
      %v2251 = vld [vmem:[#allocation3 + $0xa8] sm:$0xff]
      %v2252 = vld [vmem:[#allocation3 + $0xb0] sm:$0xff]
      %v2253 = vld [vmem:[%s5] sm:$0xff]
      %v2254 = vld [vmem:[#allocation3 + $0x1] sm:$0xff]
      %v2255 = vld [vmem:[#allocation3 + $0x9] sm:$0xff]
      %v2256 = vld [vmem:[#allocation3 + $0x19] sm:$0xff]
      %v2257 = vld [vmem:[#allocation3 + $0x21] sm:$0xff]
      %v2258 = vld [vmem:[#allocation3 + $0x31] sm:$0xff]
      %v2259 = vld [vmem:[#allocation3 + $0x39] sm:$0xff]
      %v2260 = vld [vmem:[#allocation3 + $0x49] sm:$0xff]
      %v2261 = vld [vmem:[#allocation3 + $0x51] sm:$0xff]
      %v2262 = vld [vmem:[#allocation3 + $0x61] sm:$0xff]
      %v2263 = vld [vmem:[#allocation3 + $0x69] sm:$0xff]
      %v2264 = vld [vmem:[#allocation3 + $0x79] sm:$0xff]
      %v2265 = vld [vmem:[#allocation3 + $0x81] sm:$0xff]
      %v2266 = vld [vmem:[#allocation3 + $0x91] sm:$0xff]
      %v2267 = vld [vmem:[#allocation3 + $0x99] sm:$0xff]
      %v2268 = vld [vmem:[#allocation3 + $0xa9] sm:$0xff]
      %v2269 = vld [vmem:[#allocation3 + $0xb1] sm:$0xff]
      %v2270 = vld [vmem:[%s5 + $0x8] sm:$0xff]
      %v2272 = vsel %vm2205, %v2254, 0
      %v2275 = vsel %vm2205, %v2255, 0
      %v2278 = vsel %vm2205, %v2256, 0
      %v2281 = vsel %vm2205, %v2257, 0
      %v2284 = vsel %vm2205, %v2258, 0
      %v2287 = vsel %vm2205, %v2259, 0
      %v2290 = vsel %vm2205, %v2260, 0
      %v2293 = vsel %vm2205, %v2261, 0
      %v2296 = vsel %vm2205, %v2262, 0
      %v2299 = vsel %vm2205, %v2263, 0
      %v2302 = vsel %vm2205, %v2264, 0
      %v2305 = vsel %vm2205, %v2265, 0
      %v2308 = vsel %vm2205, %v2266, 0
      %v2311 = vsel %vm2205, %v2267, 0
      %v2314 = vsel %vm2205, %v2268, 0
      %v2317 = vsel %vm2205, %v2269, 0
      %2319 = vmatpush.msra.mxu0 0.0
      %2320 = vmatpush.msra.mxu0 0.0
      %2321 = vmatpush.msra.mxu0 0.0
      %2322 = vmatpush.msra.mxu0 0.0
      %2323 = vmatpush.msra.mxu0 0.0
      %2324 = vmatpush.msra.mxu0 0.0
      %2325 = vmatpush.msra.mxu0 0.0
      %2326 = vmatpush.msra.mxu0 0.0
      %2327 = vmatpush.msra.mxu0 0.0
      %2328 = vmatpush.msra.mxu0 0.0
      %2329 = vmatpush.msra.mxu0 0.0
      %2330 = vmatpush.msra.mxu0 0.0
      %2331 = vmatpush.msra.mxu0 0.0
      %2332 = vmatpush.msra.mxu0 0.0
      %2333 = vmatpush.msra.mxu0 0.0
      %2334 = vmatpush.msra.mxu0 %v2270
      %2335 = vmatmul.f32.gmra.mxu0 %v2272
      %v2336 = vpop.f32.mrf.mxu0
      %v2337 = vadd.f32 0.0, %v2336
      %2338 = vmatmul.f32.gmra.mxu0 %v2275
      %v2339 = vpop.f32.mrf.mxu0
      %v2340 = vadd.f32 0.0, %v2339
      %2341 = vmatmul.f32.gmra.mxu0 %v2278
      %v2342 = vpop.f32.mrf.mxu0
      %v2343 = vadd.f32 0.0, %v2342
      %2344 = vmatmul.f32.gmra.mxu0 %v2281
      %v2345 = vpop.f32.mrf.mxu0
      %v2346 = vadd.f32 0.0, %v2345
      %2347 = vmatmul.f32.gmra.mxu0 %v2284
      %v2348 = vpop.f32.mrf.mxu0
      %v2349 = vadd.f32 0.0, %v2348
      %2350 = vmatmul.f32.gmra.mxu0 %v2287
      %v2351 = vpop.f32.mrf.mxu0
      %v2352 = vadd.f32 0.0, %v2351
      %2353 = vmatmul.f32.gmra.mxu0 %v2290
      %v2354 = vpop.f32.mrf.mxu0
      %v2355 = vadd.f32 0.0, %v2354
      %2356 = vmatmul.f32.gmra.mxu0 %v2293
      %v2357 = vpop.f32.mrf.mxu0
      %v2358 = vadd.f32 0.0, %v2357
      %2359 = vmatmul.f32.gmra.mxu0 %v2296
      %v2360 = vpop.f32.mrf.mxu0
      %v2361 = vadd.f32 0.0, %v2360
      %2362 = vmatmul.f32.gmra.mxu0 %v2299
      %v2363 = vpop.f32.mrf.mxu0
      %v2364 = vadd.f32 0.0, %v2363
      %2365 = vmatmul.f32.gmra.mxu0 %v2302
      %v2366 = vpop.f32.mrf.mxu0
      %v2367 = vadd.f32 0.0, %v2366
      %2368 = vmatmul.f32.gmra.mxu0 %v2305
      %v2369 = vpop.f32.mrf.mxu0
      %v2370 = vadd.f32 0.0, %v2369
      %2371 = vmatmul.f32.gmra.mxu0 %v2308
      %v2372 = vpop.f32.mrf.mxu0
      %v2373 = vadd.f32 0.0, %v2372
      %2374 = vmatmul.f32.gmra.mxu0 %v2311
      %v2375 = vpop.f32.mrf.mxu0
      %v2376 = vadd.f32 0.0, %v2375
      %2377 = vmatmul.f32.gmra.mxu0 %v2314
      %v2378 = vpop.f32.mrf.mxu0
      %v2379 = vadd.f32 0.0, %v2378
      %2380 = vmatmul.f32.gmra.mxu0 %v2317
      %v2381 = vpop.f32.mrf.mxu0
      %v2382 = vadd.f32 0.0, %v2381
      %2383 = vdwg.mxu0
      %v2385 = vsel %vm2205, %v2237, 0
      %v2388 = vsel %vm2205, %v2238, 0
      %v2391 = vsel %vm2205, %v2239, 0
      %v2394 = vsel %vm2205, %v2240, 0
      %v2397 = vsel %vm2205, %v2241, 0
      %v2400 = vsel %vm2205, %v2242, 0
      %v2403 = vsel %vm2205, %v2243, 0
      %v2406 = vsel %vm2205, %v2244, 0
      %v2409 = vsel %vm2205, %v2245, 0
      %v2412 = vsel %vm2205, %v2246, 0
      %v2415 = vsel %vm2205, %v2247, 0
      %v2418 = vsel %vm2205, %v2248, 0
      %v2421 = vsel %vm2205, %v2249, 0
      %v2424 = vsel %vm2205, %v2250, 0
      %v2427 = vsel %vm2205, %v2251, 0
      %v2430 = vsel %vm2205, %v2252, 0
      %2432 = vmatpush.msra.mxu0 0.0
      %2433 = vmatpush.msra.mxu0 0.0
      %2434 = vmatpush.msra.mxu0 0.0
      %2435 = vmatpush.msra.mxu0 0.0
      %2436 = vmatpush.msra.mxu0 0.0
      %2437 = vmatpush.msra.mxu0 0.0
      %2438 = vmatpush.msra.mxu0 0.0
      %2439 = vmatpush.msra.mxu0 0.0
      %2440 = vmatpush.msra.mxu0 0.0
      %2441 = vmatpush.msra.mxu0 0.0
      %2442 = vmatpush.msra.mxu0 0.0
      %2443 = vmatpush.msra.mxu0 0.0
      %2444 = vmatpush.msra.mxu0 0.0
      %2445 = vmatpush.msra.mxu0 0.0
      %2446 = vmatpush.msra.mxu0 0.0
      %2447 = vmatpush.msra.mxu0 %v2253
      %2448 = vmatmul.f32.gmra.mxu0 %v2385
      %v2449 = vpop.f32.mrf.mxu0
      %v2450 = vadd.f32 %v2337, %v2449
      %2451 = vmatmul.f32.gmra.mxu0 %v2388
      %v2452 = vpop.f32.mrf.mxu0
      %v2453 = vadd.f32 %v2340, %v2452
      %2454 = vmatmul.f32.gmra.mxu0 %v2391
      %v2455 = vpop.f32.mrf.mxu0
      %v2456 = vadd.f32 %v2343, %v2455
      %2457 = vmatmul.f32.gmra.mxu0 %v2394
      %v2458 = vpop.f32.mrf.mxu0
      %v2459 = vadd.f32 %v2346, %v2458
      %2460 = vmatmul.f32.gmra.mxu0 %v2397
      %v2461 = vpop.f32.mrf.mxu0
      %v2462 = vadd.f32 %v2349, %v2461
      %2463 = vmatmul.f32.gmra.mxu0 %v2400
      %v2464 = vpop.f32.mrf.mxu0
      %v2465 = vadd.f32 %v2352, %v2464
      %2466 = vmatmul.f32.gmra.mxu0 %v2403
      %v2467 = vpop.f32.mrf.mxu0
      %v2468 = vadd.f32 %v2355, %v2467
      %2469 = vmatmul.f32.gmra.mxu0 %v2406
      %v2470 = vpop.f32.mrf.mxu0
      %v2471 = vadd.f32 %v2358, %v2470
      %2472 = vmatmul.f32.gmra.mxu0 %v2409
      %v2473 = vpop.f32.mrf.mxu0
      %v2474 = vadd.f32 %v2361, %v2473
      %2475 = vmatmul.f32.gmra.mxu0 %v2412
      %v2476 = vpop.f32.mrf.mxu0
      %v2477 = vadd.f32 %v2364, %v2476
      %2478 = vmatmul.f32.gmra.mxu0 %v2415
      %v2479 = vpop.f32.mrf.mxu0
      %v2480 = vadd.f32 %v2367, %v2479
      %2481 = vmatmul.f32.gmra.mxu0 %v2418
      %v2482 = vpop.f32.mrf.mxu0
      %v2483 = vadd.f32 %v2370, %v2482
      %2484 = vmatmul.f32.gmra.mxu0 %v2421
      %v2485 = vpop.f32.mrf.mxu0
      %v2486 = vadd.f32 %v2373, %v2485
      %2487 = vmatmul.f32.gmra.mxu0 %v2424
      %v2488 = vpop.f32.mrf.mxu0
      %v2489 = vadd.f32 %v2376, %v2488
      %2490 = vmatmul.f32.gmra.mxu0 %v2427
      %v2491 = vpop.f32.mrf.mxu0
      %v2492 = vadd.f32 %v2379, %v2491
      %2493 = vmatmul.f32.gmra.mxu0 %v2430
      %v2494 = vpop.f32.mrf.mxu0
      %v2495 = vadd.f32 %v2382, %v2494
      %2496 = vdwg.mxu0
      %v2497 = vld [vmem:[#allocation3 + $0x2] sm:$0xff]
      %v2498 = vld [vmem:[#allocation3 + $0xa] sm:$0xff]
      %v2499 = vld [vmem:[#allocation3 + $0x1a] sm:$0xff]
      %v2500 = vld [vmem:[#allocation3 + $0x22] sm:$0xff]
      %v2501 = vld [vmem:[#allocation3 + $0x32] sm:$0xff]
      %v2502 = vld [vmem:[#allocation3 + $0x3a] sm:$0xff]
      %v2503 = vld [vmem:[#allocation3 + $0x4a] sm:$0xff]
      %v2504 = vld [vmem:[#allocation3 + $0x52] sm:$0xff]
      %v2505 = vld [vmem:[#allocation3 + $0x62] sm:$0xff]
      %v2506 = vld [vmem:[#allocation3 + $0x6a] sm:$0xff]
      %v2507 = vld [vmem:[#allocation3 + $0x7a] sm:$0xff]
      %v2508 = vld [vmem:[#allocation3 + $0x82] sm:$0xff]
      %v2509 = vld [vmem:[#allocation3 + $0x92] sm:$0xff]
      %v2510 = vld [vmem:[#allocation3 + $0x9a] sm:$0xff]
      %v2511 = vld [vmem:[#allocation3 + $0xaa] sm:$0xff]
      %v2512 = vld [vmem:[#allocation3 + $0xb2] sm:$0xff]
      %v2513 = vld [vmem:[%s5 + $0x10] sm:$0xff]
      %v2515 = vsel %vm2205, %v2497, 0
      %v2518 = vsel %vm2205, %v2498, 0
      %v2521 = vsel %vm2205, %v2499, 0
      %v2524 = vsel %vm2205, %v2500, 0
      %v2527 = vsel %vm2205, %v2501, 0
      %v2530 = vsel %vm2205, %v2502, 0
      %v2533 = vsel %vm2205, %v2503, 0
      %v2536 = vsel %vm2205, %v2504, 0
      %v2539 = vsel %vm2205, %v2505, 0
      %v2542 = vsel %vm2205, %v2506, 0
      %v2545 = vsel %vm2205, %v2507, 0
      %v2548 = vsel %vm2205, %v2508, 0
      %v2551 = vsel %vm2205, %v2509, 0
      %v2554 = vsel %vm2205, %v2510, 0
      %v2557 = vsel %vm2205, %v2511, 0
      %v2560 = vsel %vm2205, %v2512, 0
      %2562 = vmatpush.msra.mxu0 0.0
      %2563 = vmatpush.msra.mxu0 0.0
      %2564 = vmatpush.msra.mxu0 0.0
      %2565 = vmatpush.msra.mxu0 0.0
      %2566 = vmatpush.msra.mxu0 0.0
      %2567 = vmatpush.msra.mxu0 0.0
      %2568 = vmatpush.msra.mxu0 0.0
      %2569 = vmatpush.msra.mxu0 0.0
      %2570 = vmatpush.msra.mxu0 0.0
      %2571 = vmatpush.msra.mxu0 0.0
      %2572 = vmatpush.msra.mxu0 0.0
      %2573 = vmatpush.msra.mxu0 0.0
      %2574 = vmatpush.msra.mxu0 0.0
      %2575 = vmatpush.msra.mxu0 0.0
      %2576 = vmatpush.msra.mxu0 0.0
      %2577 = vmatpush.msra.mxu0 %v2513
      %2578 = vmatmul.f32.gmra.mxu0 %v2515
      %v2579 = vpop.f32.mrf.mxu0
      %v2580 = vadd.f32 0.0, %v2579
      %2581 = vmatmul.f32.gmra.mxu0 %v2518
      %v2582 = vpop.f32.mrf.mxu0
      %v2583 = vadd.f32 0.0, %v2582
      %2584 = vmatmul.f32.gmra.mxu0 %v2521
      %v2585 = vpop.f32.mrf.mxu0
      %v2586 = vadd.f32 0.0, %v2585
      %2587 = vmatmul.f32.gmra.mxu0 %v2524
      %v2588 = vpop.f32.mrf.mxu0
      %v2589 = vadd.f32 0.0, %v2588
      %2590 = vmatmul.f32.gmra.mxu0 %v2527
      %v2591 = vpop.f32.mrf.mxu0
      %v2592 = vadd.f32 0.0, %v2591
      %2593 = vmatmul.f32.gmra.mxu0 %v2530
      %v2594 = vpop.f32.mrf.mxu0
      %v2595 = vadd.f32 0.0, %v2594
      %2596 = vmatmul.f32.gmra.mxu0 %v2533
      %v2597 = vpop.f32.mrf.mxu0
      %v2598 = vadd.f32 0.0, %v2597
      %2599 = vmatmul.f32.gmra.mxu0 %v2536
      %v2600 = vpop.f32.mrf.mxu0
      %v2601 = vadd.f32 0.0, %v2600
      %2602 = vmatmul.f32.gmra.mxu0 %v2539
      %v2603 = vpop.f32.mrf.mxu0
      %v2604 = vadd.f32 0.0, %v2603
      %2605 = vmatmul.f32.gmra.mxu0 %v2542
      %v2606 = vpop.f32.mrf.mxu0
      %v2607 = vadd.f32 0.0, %v2606
      %2608 = vmatmul.f32.gmra.mxu0 %v2545
      %v2609 = vpop.f32.mrf.mxu0
      %v2610 = vadd.f32 0.0, %v2609
      %2611 = vmatmul.f32.gmra.mxu0 %v2548
      %v2612 = vpop.f32.mrf.mxu0
      %v2613 = vadd.f32 0.0, %v2612
      %2614 = vmatmul.f32.gmra.mxu0 %v2551
      %v2615 = vpop.f32.mrf.mxu0
      %v2616 = vadd.f32 0.0, %v2615
      %2617 = vmatmul.f32.gmra.mxu0 %v2554
      %v2618 = vpop.f32.mrf.mxu0
      %v2619 = vadd.f32 0.0, %v2618
      %2620 = vmatmul.f32.gmra.mxu0 %v2557
      %v2621 = vpop.f32.mrf.mxu0
      %v2622 = vadd.f32 0.0, %v2621
      %2623 = vmatmul.f32.gmra.mxu0 %v2560
      %v2624 = vpop.f32.mrf.mxu0
      %v2625 = vadd.f32 0.0, %v2624
      %2626 = vdwg.mxu0
      %v2627 = vadd.f32 %v2450, %v2580
      %v2628 = vadd.f32 %v2453, %v2583
      %v2629 = vadd.f32 %v2456, %v2586
      %v2630 = vadd.f32 %v2459, %v2589
      %v2631 = vadd.f32 %v2462, %v2592
      %v2632 = vadd.f32 %v2465, %v2595
      %v2633 = vadd.f32 %v2468, %v2598
      %v2634 = vadd.f32 %v2471, %v2601
      %v2635 = vadd.f32 %v2474, %v2604
      %v2636 = vadd.f32 %v2477, %v2607
      %v2637 = vadd.f32 %v2480, %v2610
      %v2638 = vadd.f32 %v2483, %v2613
      %v2639 = vadd.f32 %v2486, %v2616
      %v2640 = vadd.f32 %v2489, %v2619
      %v2641 = vadd.f32 %v2492, %v2622
      %v2642 = vadd.f32 %v2495, %v2625
      %s2643 = scalar_lea.vmem [#allocation3], 24
      %v2644 = vld [vmem:[%s2643] sm:$0xff]
      %v2645 = vld [vmem:[%s2643 + $0x8] sm:$0xff]
      %v2646 = vld [vmem:[%s2643 + $0x18] sm:$0xff]
      %v2647 = vld [vmem:[%s2643 + $0x20] sm:$0xff]
      %v2648 = vld [vmem:[%s2643 + $0x30] sm:$0xff]
      %v2649 = vld [vmem:[%s2643 + $0x38] sm:$0xff]
      %v2650 = vld [vmem:[%s2643 + $0x48] sm:$0xff]
      %v2651 = vld [vmem:[%s2643 + $0x50] sm:$0xff]
      %v2652 = vld [vmem:[%s2643 + $0x60] sm:$0xff]
      %v2653 = vld [vmem:[%s2643 + $0x68] sm:$0xff]
      %v2654 = vld [vmem:[%s2643 + $0x78] sm:$0xff]
      %v2655 = vld [vmem:[%s2643 + $0x80] sm:$0xff]
      %v2656 = vld [vmem:[%s2643 + $0x90] sm:$0xff]
      %v2657 = vld [vmem:[%s2643 + $0x98] sm:$0xff]
      %v2658 = vld [vmem:[%s2643 + $0xa8] sm:$0xff]
      %v2659 = vld [vmem:[%s2643 + $0xb0] sm:$0xff]
      %v2660 = vld [vmem:[%s5 + $0x18] sm:$0xff]
      %v2662 = vsel %vm2205, %v2644, 0
      %v2665 = vsel %vm2205, %v2645, 0
      %v2668 = vsel %vm2205, %v2646, 0
      %v2671 = vsel %vm2205, %v2647, 0
      %v2674 = vsel %vm2205, %v2648, 0
      %v2677 = vsel %vm2205, %v2649, 0
      %v2680 = vsel %vm2205, %v2650, 0
      %v2683 = vsel %vm2205, %v2651, 0
      %v2686 = vsel %vm2205, %v2652, 0
      %v2689 = vsel %vm2205, %v2653, 0
      %v2692 = vsel %vm2205, %v2654, 0
      %v2695 = vsel %vm2205, %v2655, 0
      %v2698 = vsel %vm2205, %v2656, 0
      %v2701 = vsel %vm2205, %v2657, 0
      %v2704 = vsel %vm2205, %v2658, 0
      %v2707 = vsel %vm2205, %v2659, 0
      %2709 = vmatpush.msra.mxu0 0.0
      %2710 = vmatpush.msra.mxu0 0.0
      %2711 = vmatpush.msra.mxu0 0.0
      %2712 = vmatpush.msra.mxu0 0.0
      %2713 = vmatpush.msra.mxu0 0.0
      %2714 = vmatpush.msra.mxu0 0.0
      %2715 = vmatpush.msra.mxu0 0.0
      %2716 = vmatpush.msra.mxu0 0.0
      %2717 = vmatpush.msra.mxu0 0.0
      %2718 = vmatpush.msra.mxu0 0.0
      %2719 = vmatpush.msra.mxu0 0.0
      %2720 = vmatpush.msra.mxu0 0.0
      %2721 = vmatpush.msra.mxu0 0.0
      %2722 = vmatpush.msra.mxu0 0.0
      %2723 = vmatpush.msra.mxu0 0.0
      %2724 = vmatpush.msra.mxu0 %v2660
      %2725 = vmatmul.f32.gmra.mxu0 %v2662
      %v2726 = vpop.f32.mrf.mxu0
      %v2727 = vadd.f32 0.0, %v2726
      %2728 = vmatmul.f32.gmra.mxu0 %v2665
      %v2729 = vpop.f32.mrf.mxu0
      %v2730 = vadd.f32 0.0, %v2729
      %2731 = vmatmul.f32.gmra.mxu0 %v2668
      %v2732 = vpop.f32.mrf.mxu0
      %v2733 = vadd.f32 0.0, %v2732
      %2734 = vmatmul.f32.gmra.mxu0 %v2671
      %v2735 = vpop.f32.mrf.mxu0
      %v2736 = vadd.f32 0.0, %v2735
      %2737 = vmatmul.f32.gmra.mxu0 %v2674
      %v2738 = vpop.f32.mrf.mxu0
      %v2739 = vadd.f32 0.0, %v2738
      %2740 = vmatmul.f32.gmra.mxu0 %v2677
      %v2741 = vpop.f32.mrf.mxu0
      %v2742 = vadd.f32 0.0, %v2741
      %2743 = vmatmul.f32.gmra.mxu0 %v2680
      %v2744 = vpop.f32.mrf.mxu0
      %v2745 = vadd.f32 0.0, %v2744
      %2746 = vmatmul.f32.gmra.mxu0 %v2683
      %v2747 = vpop.f32.mrf.mxu0
      %v2748 = vadd.f32 0.0, %v2747
      %2749 = vmatmul.f32.gmra.mxu0 %v2686
      %v2750 = vpop.f32.mrf.mxu0
      %v2751 = vadd.f32 0.0, %v2750
      %2752 = vmatmul.f32.gmra.mxu0 %v2689
      %v2753 = vpop.f32.mrf.mxu0
      %v2754 = vadd.f32 0.0, %v2753
      %2755 = vmatmul.f32.gmra.mxu0 %v2692
      %v2756 = vpop.f32.mrf.mxu0
      %v2757 = vadd.f32 0.0, %v2756
      %2758 = vmatmul.f32.gmra.mxu0 %v2695
      %v2759 = vpop.f32.mrf.mxu0
      %v2760 = vadd.f32 0.0, %v2759
      %2761 = vmatmul.f32.gmra.mxu0 %v2698
      %v2762 = vpop.f32.mrf.mxu0
      %v2763 = vadd.f32 0.0, %v2762
      %2764 = vmatmul.f32.gmra.mxu0 %v2701
      %v2765 = vpop.f32.mrf.mxu0
      %v2766 = vadd.f32 0.0, %v2765
      %2767 = vmatmul.f32.gmra.mxu0 %v2704
      %v2768 = vpop.f32.mrf.mxu0
      %v2769 = vadd.f32 0.0, %v2768
      %2770 = vmatmul.f32.gmra.mxu0 %v2707
      %v2771 = vpop.f32.mrf.mxu0
      %v2772 = vadd.f32 0.0, %v2771
      %2773 = vdwg.mxu0
      %v2774 = vadd.f32 %v2627, %v2727
      %v2775 = vadd.f32 %v2628, %v2730
      %v2776 = vadd.f32 %v2629, %v2733
      %v2777 = vadd.f32 %v2630, %v2736
      %v2778 = vadd.f32 %v2631, %v2739
      %v2779 = vadd.f32 %v2632, %v2742
      %v2780 = vadd.f32 %v2633, %v2745
      %v2781 = vadd.f32 %v2634, %v2748
      %v2782 = vadd.f32 %v2635, %v2751
      %v2783 = vadd.f32 %v2636, %v2754
      %v2784 = vadd.f32 %v2637, %v2757
      %v2785 = vadd.f32 %v2638, %v2760
      %v2786 = vadd.f32 %v2639, %v2763
      %v2787 = vadd.f32 %v2640, %v2766
      %v2788 = vadd.f32 %v2641, %v2769
      %v2789 = vadd.f32 %v2642, %v2772
      %v2790 = vld [vmem:[%s2643 + $0x1] sm:$0xff]
      %v2791 = vld [vmem:[%s2643 + $0x9] sm:$0xff]
      %v2792 = vld [vmem:[%s2643 + $0x19] sm:$0xff]
      %v2793 = vld [vmem:[%s2643 + $0x21] sm:$0xff]
      %v2794 = vld [vmem:[%s2643 + $0x31] sm:$0xff]
      %v2795 = vld [vmem:[%s2643 + $0x39] sm:$0xff]
      %v2796 = vld [vmem:[%s2643 + $0x49] sm:$0xff]
      %v2797 = vld [vmem:[%s2643 + $0x51] sm:$0xff]
      %v2798 = vld [vmem:[%s2643 + $0x61] sm:$0xff]
      %v2799 = vld [vmem:[%s2643 + $0x69] sm:$0xff]
      %v2800 = vld [vmem:[%s2643 + $0x79] sm:$0xff]
      %v2801 = vld [vmem:[%s2643 + $0x81] sm:$0xff]
      %v2802 = vld [vmem:[%s2643 + $0x91] sm:$0xff]
      %v2803 = vld [vmem:[%s2643 + $0x99] sm:$0xff]
      %v2804 = vld [vmem:[%s2643 + $0xa9] sm:$0xff]
      %v2805 = vld [vmem:[%s2643 + $0xb1] sm:$0xff]
      %v2806 = vld [vmem:[%s5 + $0x20] sm:$0xff]
      %v2808 = vsel %vm2205, %v2790, 0
      %v2811 = vsel %vm2205, %v2791, 0
      %v2814 = vsel %vm2205, %v2792, 0
      %v2817 = vsel %vm2205, %v2793, 0
      %v2820 = vsel %vm2205, %v2794, 0
      %v2823 = vsel %vm2205, %v2795, 0
      %v2826 = vsel %vm2205, %v2796, 0
      %v2829 = vsel %vm2205, %v2797, 0
      %v2832 = vsel %vm2205, %v2798, 0
      %v2835 = vsel %vm2205, %v2799, 0
      %v2838 = vsel %vm2205, %v2800, 0
      %v2841 = vsel %vm2205, %v2801, 0
      %v2844 = vsel %vm2205, %v2802, 0
      %v2847 = vsel %vm2205, %v2803, 0
      %v2850 = vsel %vm2205, %v2804, 0
      %v2853 = vsel %vm2205, %v2805, 0
      %2855 = vmatpush.msra.mxu0 0.0
      %2856 = vmatpush.msra.mxu0 0.0
      %2857 = vmatpush.msra.mxu0 0.0
      %2858 = vmatpush.msra.mxu0 0.0
      %2859 = vmatpush.msra.mxu0 0.0
      %2860 = vmatpush.msra.mxu0 0.0
      %2861 = vmatpush.msra.mxu0 0.0
      %2862 = vmatpush.msra.mxu0 0.0
      %2863 = vmatpush.msra.mxu0 0.0
      %2864 = vmatpush.msra.mxu0 0.0
      %2865 = vmatpush.msra.mxu0 0.0
      %2866 = vmatpush.msra.mxu0 0.0
      %2867 = vmatpush.msra.mxu0 0.0
      %2868 = vmatpush.msra.mxu0 0.0
      %2869 = vmatpush.msra.mxu0 0.0
      %2870 = vmatpush.msra.mxu0 %v2806
      %2871 = vmatmul.f32.gmra.mxu0 %v2808
      %v2872 = vpop.f32.mrf.mxu0
      %v2873 = vadd.f32 0.0, %v2872
      %2874 = vmatmul.f32.gmra.mxu0 %v2811
      %v2875 = vpop.f32.mrf.mxu0
      %v2876 = vadd.f32 0.0, %v2875
      %2877 = vmatmul.f32.gmra.mxu0 %v2814
      %v2878 = vpop.f32.mrf.mxu0
      %v2879 = vadd.f32 0.0, %v2878
      %2880 = vmatmul.f32.gmra.mxu0 %v2817
      %v2881 = vpop.f32.mrf.mxu0
      %v2882 = vadd.f32 0.0, %v2881
      %2883 = vmatmul.f32.gmra.mxu0 %v2820
      %v2884 = vpop.f32.mrf.mxu0
      %v2885 = vadd.f32 0.0, %v2884
      %2886 = vmatmul.f32.gmra.mxu0 %v2823
      %v2887 = vpop.f32.mrf.mxu0
      %v2888 = vadd.f32 0.0, %v2887
      %2889 = vmatmul.f32.gmra.mxu0 %v2826
      %v2890 = vpop.f32.mrf.mxu0
      %v2891 = vadd.f32 0.0, %v2890
      %2892 = vmatmul.f32.gmra.mxu0 %v2829
      %v2893 = vpop.f32.mrf.mxu0
      %v2894 = vadd.f32 0.0, %v2893
      %2895 = vmatmul.f32.gmra.mxu0 %v2832
      %v2896 = vpop.f32.mrf.mxu0
      %v2897 = vadd.f32 0.0, %v2896
      %2898 = vmatmul.f32.gmra.mxu0 %v2835
      %v2899 = vpop.f32.mrf.mxu0
      %v2900 = vadd.f32 0.0, %v2899
      %2901 = vmatmul.f32.gmra.mxu0 %v2838
      %v2902 = vpop.f32.mrf.mxu0
      %v2903 = vadd.f32 0.0, %v2902
      %2904 = vmatmul.f32.gmra.mxu0 %v2841
      %v2905 = vpop.f32.mrf.mxu0
      %v2906 = vadd.f32 0.0, %v2905
      %2907 = vmatmul.f32.gmra.mxu0 %v2844
      %v2908 = vpop.f32.mrf.mxu0
      %v2909 = vadd.f32 0.0, %v2908
      %2910 = vmatmul.f32.gmra.mxu0 %v2847
      %v2911 = vpop.f32.mrf.mxu0
      %v2912 = vadd.f32 0.0, %v2911
      %2913 = vmatmul.f32.gmra.mxu0 %v2850
      %v2914 = vpop.f32.mrf.mxu0
      %v2915 = vadd.f32 0.0, %v2914
      %2916 = vmatmul.f32.gmra.mxu0 %v2853
      %v2917 = vpop.f32.mrf.mxu0
      %v2918 = vadd.f32 0.0, %v2917
      %2919 = vdwg.mxu0
      %v2920 = vadd.f32 %v2774, %v2873
      %v2921 = vadd.f32 %v2775, %v2876
      %v2922 = vadd.f32 %v2776, %v2879
      %v2923 = vadd.f32 %v2777, %v2882
      %v2924 = vadd.f32 %v2778, %v2885
      %v2925 = vadd.f32 %v2779, %v2888
      %v2926 = vadd.f32 %v2780, %v2891
      %v2927 = vadd.f32 %v2781, %v2894
      %v2928 = vadd.f32 %v2782, %v2897
      %v2929 = vadd.f32 %v2783, %v2900
      %v2930 = vadd.f32 %v2784, %v2903
      %v2931 = vadd.f32 %v2785, %v2906
      %v2932 = vadd.f32 %v2786, %v2909
      %v2933 = vadd.f32 %v2787, %v2912
      %v2934 = vadd.f32 %v2788, %v2915
      %v2935 = vadd.f32 %v2789, %v2918
      %v2936 = vld [vmem:[%s2643 + $0x2] sm:$0xff]
      %v2937 = vld [vmem:[%s2643 + $0xa] sm:$0xff]
      %v2938 = vld [vmem:[%s2643 + $0x1a] sm:$0xff]
      %v2939 = vld [vmem:[%s2643 + $0x22] sm:$0xff]
      %v2940 = vld [vmem:[%s2643 + $0x32] sm:$0xff]
      %v2941 = vld [vmem:[%s2643 + $0x3a] sm:$0xff]
      %v2942 = vld [vmem:[%s2643 + $0x4a] sm:$0xff]
      %v2943 = vld [vmem:[%s2643 + $0x52] sm:$0xff]
      %v2944 = vld [vmem:[%s2643 + $0x62] sm:$0xff]
      %v2945 = vld [vmem:[%s2643 + $0x6a] sm:$0xff]
      %v2946 = vld [vmem:[%s2643 + $0x7a] sm:$0xff]
      %v2947 = vld [vmem:[%s2643 + $0x82] sm:$0xff]
      %v2948 = vld [vmem:[%s2643 + $0x92] sm:$0xff]
      %v2949 = vld [vmem:[%s2643 + $0x9a] sm:$0xff]
      %v2950 = vld [vmem:[%s2643 + $0xaa] sm:$0xff]
      %v2951 = vld [vmem:[%s2643 + $0xb2] sm:$0xff]
      %v2952 = vld [vmem:[%s5 + $0x28] sm:$0xff]
      %v2954 = vsel %vm2205, %v2936, 0
      %v2957 = vsel %vm2205, %v2937, 0
      %v2960 = vsel %vm2205, %v2938, 0
      %v2963 = vsel %vm2205, %v2939, 0
      %v2966 = vsel %vm2205, %v2940, 0
      %v2969 = vsel %vm2205, %v2941, 0
      %v2972 = vsel %vm2205, %v2942, 0
      %v2975 = vsel %vm2205, %v2943, 0
      %v2978 = vsel %vm2205, %v2944, 0
      %v2981 = vsel %vm2205, %v2945, 0
      %v2984 = vsel %vm2205, %v2946, 0
      %v2987 = vsel %vm2205, %v2947, 0
      %v2990 = vsel %vm2205, %v2948, 0
      %v2993 = vsel %vm2205, %v2949, 0
      %v2996 = vsel %vm2205, %v2950, 0
      %v2999 = vsel %vm2205, %v2951, 0
      %3001 = vmatpush.msra.mxu0 0.0
      %3002 = vmatpush.msra.mxu0 0.0
      %3003 = vmatpush.msra.mxu0 0.0
      %3004 = vmatpush.msra.mxu0 0.0
      %3005 = vmatpush.msra.mxu0 0.0
      %3006 = vmatpush.msra.mxu0 0.0
      %3007 = vmatpush.msra.mxu0 0.0
      %3008 = vmatpush.msra.mxu0 0.0
      %3009 = vmatpush.msra.mxu0 0.0
      %3010 = vmatpush.msra.mxu0 0.0
      %3011 = vmatpush.msra.mxu0 0.0
      %3012 = vmatpush.msra.mxu0 0.0
      %3013 = vmatpush.msra.mxu0 0.0
      %3014 = vmatpush.msra.mxu0 0.0
      %3015 = vmatpush.msra.mxu0 0.0
      %3016 = vmatpush.msra.mxu0 %v2952
      %3017 = vmatmul.f32.gmra.mxu0 %v2954
      %v3018 = vpop.f32.mrf.mxu0
      %v3019 = vadd.f32 0.0, %v3018
      %3020 = vmatmul.f32.gmra.mxu0 %v2957
      %v3021 = vpop.f32.mrf.mxu0
      %v3022 = vadd.f32 0.0, %v3021
      %3023 = vmatmul.f32.gmra.mxu0 %v2960
      %v3024 = vpop.f32.mrf.mxu0
      %v3025 = vadd.f32 0.0, %v3024
      %3026 = vmatmul.f32.gmra.mxu0 %v2963
      %v3027 = vpop.f32.mrf.mxu0
      %v3028 = vadd.f32 0.0, %v3027
      %3029 = vmatmul.f32.gmra.mxu0 %v2966
      %v3030 = vpop.f32.mrf.mxu0
      %v3031 = vadd.f32 0.0, %v3030
      %3032 = vmatmul.f32.gmra.mxu0 %v2969
      %v3033 = vpop.f32.mrf.mxu0
      %v3034 = vadd.f32 0.0, %v3033
      %3035 = vmatmul.f32.gmra.mxu0 %v2972
      %v3036 = vpop.f32.mrf.mxu0
      %v3037 = vadd.f32 0.0, %v3036
      %3038 = vmatmul.f32.gmra.mxu0 %v2975
      %v3039 = vpop.f32.mrf.mxu0
      %v3040 = vadd.f32 0.0, %v3039
      %3041 = vmatmul.f32.gmra.mxu0 %v2978
      %v3042 = vpop.f32.mrf.mxu0
      %v3043 = vadd.f32 0.0, %v3042
      %3044 = vmatmul.f32.gmra.mxu0 %v2981
      %v3045 = vpop.f32.mrf.mxu0
      %v3046 = vadd.f32 0.0, %v3045
      %3047 = vmatmul.f32.gmra.mxu0 %v2984
      %v3048 = vpop.f32.mrf.mxu0
      %v3049 = vadd.f32 0.0, %v3048
      %3050 = vmatmul.f32.gmra.mxu0 %v2987
      %v3051 = vpop.f32.mrf.mxu0
      %v3052 = vadd.f32 0.0, %v3051
      %3053 = vmatmul.f32.gmra.mxu0 %v2990
      %v3054 = vpop.f32.mrf.mxu0
      %v3055 = vadd.f32 0.0, %v3054
      %3056 = vmatmul.f32.gmra.mxu0 %v2993
      %v3057 = vpop.f32.mrf.mxu0
      %v3058 = vadd.f32 0.0, %v3057
      %3059 = vmatmul.f32.gmra.mxu0 %v2996
      %v3060 = vpop.f32.mrf.mxu0
      %v3061 = vadd.f32 0.0, %v3060
      %3062 = vmatmul.f32.gmra.mxu0 %v2999
      %v3063 = vpop.f32.mrf.mxu0
      %v3064 = vadd.f32 0.0, %v3063
      %3065 = vdwg.mxu0
      %v3066 = vadd.f32 %v2920, %v3019
      %v3067 = vadd.f32 %v2921, %v3022
      %v3068 = vadd.f32 %v2922, %v3025
      %v3069 = vadd.f32 %v2923, %v3028
      %v3070 = vadd.f32 %v2924, %v3031
      %v3071 = vadd.f32 %v2925, %v3034
      %v3072 = vadd.f32 %v2926, %v3037
      %v3073 = vadd.f32 %v2927, %v3040
      %v3074 = vadd.f32 %v2928, %v3043
      %v3075 = vadd.f32 %v2929, %v3046
      %v3076 = vadd.f32 %v2930, %v3049
      %v3077 = vadd.f32 %v2931, %v3052
      %v3078 = vadd.f32 %v2932, %v3055
      %v3079 = vadd.f32 %v2933, %v3058
      %v3080 = vadd.f32 %v2934, %v3061
      %v3081 = vadd.f32 %v2935, %v3064
      %s3082 = scalar_lea.vmem [#allocation3], 48
      %v3083 = vld [vmem:[%s3082] sm:$0xff]
      %v3084 = vld [vmem:[%s3082 + $0x8] sm:$0xff]
      %v3085 = vld [vmem:[%s3082 + $0x18] sm:$0xff]
      %v3086 = vld [vmem:[%s3082 + $0x20] sm:$0xff]
      %v3087 = vld [vmem:[%s3082 + $0x30] sm:$0xff]
      %v3088 = vld [vmem:[%s3082 + $0x38] sm:$0xff]
      %v3089 = vld [vmem:[%s3082 + $0x48] sm:$0xff]
      %v3090 = vld [vmem:[%s3082 + $0x50] sm:$0xff]
      %v3091 = vld [vmem:[%s3082 + $0x60] sm:$0xff]
      %v3092 = vld [vmem:[%s3082 + $0x68] sm:$0xff]
      %v3093 = vld [vmem:[%s3082 + $0x78] sm:$0xff]
      %v3094 = vld [vmem:[%s3082 + $0x80] sm:$0xff]
      %v3095 = vld [vmem:[%s3082 + $0x90] sm:$0xff]
      %v3096 = vld [vmem:[%s3082 + $0x98] sm:$0xff]
      %v3097 = vld [vmem:[%s3082 + $0xa8] sm:$0xff]
      %v3098 = vld [vmem:[%s3082 + $0xb0] sm:$0xff]
      %v3099 = vld [vmem:[%s5 + $0x30] sm:$0xff]
      %v3101 = vsel %vm2205, %v3083, 0
      %v3104 = vsel %vm2205, %v3084, 0
      %v3107 = vsel %vm2205, %v3085, 0
      %v3110 = vsel %vm2205, %v3086, 0
      %v3113 = vsel %vm2205, %v3087, 0
      %v3116 = vsel %vm2205, %v3088, 0
      %v3119 = vsel %vm2205, %v3089, 0
      %v3122 = vsel %vm2205, %v3090, 0
      %v3125 = vsel %vm2205, %v3091, 0
      %v3128 = vsel %vm2205, %v3092, 0
      %v3131 = vsel %vm2205, %v3093, 0
      %v3134 = vsel %vm2205, %v3094, 0
      %v3137 = vsel %vm2205, %v3095, 0
      %v3140 = vsel %vm2205, %v3096, 0
      %v3143 = vsel %vm2205, %v3097, 0
      %v3146 = vsel %vm2205, %v3098, 0
      %3148 = vmatpush.msra.mxu0 0.0
      %3149 = vmatpush.msra.mxu0 0.0
      %3150 = vmatpush.msra.mxu0 0.0
      %3151 = vmatpush.msra.mxu0 0.0
      %3152 = vmatpush.msra.mxu0 0.0
      %3153 = vmatpush.msra.mxu0 0.0
      %3154 = vmatpush.msra.mxu0 0.0
      %3155 = vmatpush.msra.mxu0 0.0
      %3156 = vmatpush.msra.mxu0 0.0
      %3157 = vmatpush.msra.mxu0 0.0
      %3158 = vmatpush.msra.mxu0 0.0
      %3159 = vmatpush.msra.mxu0 0.0
      %3160 = vmatpush.msra.mxu0 0.0
      %3161 = vmatpush.msra.mxu0 0.0
      %3162 = vmatpush.msra.mxu0 0.0
      %3163 = vmatpush.msra.mxu0 %v3099
      %3164 = vmatmul.f32.gmra.mxu0 %v3101
      %v3165 = vpop.f32.mrf.mxu0
      %v3166 = vadd.f32 0.0, %v3165
      %3167 = vmatmul.f32.gmra.mxu0 %v3104
      %v3168 = vpop.f32.mrf.mxu0
      %v3169 = vadd.f32 0.0, %v3168
      %3170 = vmatmul.f32.gmra.mxu0 %v3107
      %v3171 = vpop.f32.mrf.mxu0
      %v3172 = vadd.f32 0.0, %v3171
      %3173 = vmatmul.f32.gmra.mxu0 %v3110
      %v3174 = vpop.f32.mrf.mxu0
      %v3175 = vadd.f32 0.0, %v3174
      %3176 = vmatmul.f32.gmra.mxu0 %v3113
      %v3177 = vpop.f32.mrf.mxu0
      %v3178 = vadd.f32 0.0, %v3177
      %3179 = vmatmul.f32.gmra.mxu0 %v3116
      %v3180 = vpop.f32.mrf.mxu0
      %v3181 = vadd.f32 0.0, %v3180
      %3182 = vmatmul.f32.gmra.mxu0 %v3119
      %v3183 = vpop.f32.mrf.mxu0
      %v3184 = vadd.f32 0.0, %v3183
      %3185 = vmatmul.f32.gmra.mxu0 %v3122
      %v3186 = vpop.f32.mrf.mxu0
      %v3187 = vadd.f32 0.0, %v3186
      %3188 = vmatmul.f32.gmra.mxu0 %v3125
      %v3189 = vpop.f32.mrf.mxu0
      %v3190 = vadd.f32 0.0, %v3189
      %3191 = vmatmul.f32.gmra.mxu0 %v3128
      %v3192 = vpop.f32.mrf.mxu0
      %v3193 = vadd.f32 0.0, %v3192
      %3194 = vmatmul.f32.gmra.mxu0 %v3131
      %v3195 = vpop.f32.mrf.mxu0
      %v3196 = vadd.f32 0.0, %v3195
      %3197 = vmatmul.f32.gmra.mxu0 %v3134
      %v3198 = vpop.f32.mrf.mxu0
      %v3199 = vadd.f32 0.0, %v3198
      %3200 = vmatmul.f32.gmra.mxu0 %v3137
      %v3201 = vpop.f32.mrf.mxu0
      %v3202 = vadd.f32 0.0, %v3201
      %3203 = vmatmul.f32.gmra.mxu0 %v3140
      %v3204 = vpop.f32.mrf.mxu0
      %v3205 = vadd.f32 0.0, %v3204
      %3206 = vmatmul.f32.gmra.mxu0 %v3143
      %v3207 = vpop.f32.mrf.mxu0
      %v3208 = vadd.f32 0.0, %v3207
      %3209 = vmatmul.f32.gmra.mxu0 %v3146
      %v3210 = vpop.f32.mrf.mxu0
      %v3211 = vadd.f32 0.0, %v3210
      %3212 = vdwg.mxu0
      %v3213 = vadd.f32 %v3066, %v3166
      %v3214 = vadd.f32 %v3067, %v3169
      %v3215 = vadd.f32 %v3068, %v3172
      %v3216 = vadd.f32 %v3069, %v3175
      %v3217 = vadd.f32 %v3070, %v3178
      %v3218 = vadd.f32 %v3071, %v3181
      %v3219 = vadd.f32 %v3072, %v3184
      %v3220 = vadd.f32 %v3073, %v3187
      %v3221 = vadd.f32 %v3074, %v3190
      %v3222 = vadd.f32 %v3075, %v3193
      %v3223 = vadd.f32 %v3076, %v3196
      %v3224 = vadd.f32 %v3077, %v3199
      %v3225 = vadd.f32 %v3078, %v3202
      %v3226 = vadd.f32 %v3079, %v3205
      %v3227 = vadd.f32 %v3080, %v3208
      %v3228 = vadd.f32 %v3081, %v3211
      %v3229 = vld [vmem:[%s3082 + $0x1] sm:$0xff]
      %v3230 = vld [vmem:[%s3082 + $0x9] sm:$0xff]
      %v3231 = vld [vmem:[%s3082 + $0x19] sm:$0xff]
      %v3232 = vld [vmem:[%s3082 + $0x21] sm:$0xff]
      %v3233 = vld [vmem:[%s3082 + $0x31] sm:$0xff]
      %v3234 = vld [vmem:[%s3082 + $0x39] sm:$0xff]
      %v3235 = vld [vmem:[%s3082 + $0x49] sm:$0xff]
      %v3236 = vld [vmem:[%s3082 + $0x51] sm:$0xff]
      %v3237 = vld [vmem:[%s3082 + $0x61] sm:$0xff]
      %v3238 = vld [vmem:[%s3082 + $0x69] sm:$0xff]
      %v3239 = vld [vmem:[%s3082 + $0x79] sm:$0xff]
      %v3240 = vld [vmem:[%s3082 + $0x81] sm:$0xff]
      %v3241 = vld [vmem:[%s3082 + $0x91] sm:$0xff]
      %v3242 = vld [vmem:[%s3082 + $0x99] sm:$0xff]
      %v3243 = vld [vmem:[%s3082 + $0xa9] sm:$0xff]
      %v3244 = vld [vmem:[%s3082 + $0xb1] sm:$0xff]
      %v3245 = vld [vmem:[%s5 + $0x38] sm:$0xff]
      %v3247 = vsel %vm2205, %v3229, 0
      %v3250 = vsel %vm2205, %v3230, 0
      %v3253 = vsel %vm2205, %v3231, 0
      %v3256 = vsel %vm2205, %v3232, 0
      %v3259 = vsel %vm2205, %v3233, 0
      %v3262 = vsel %vm2205, %v3234, 0
      %v3265 = vsel %vm2205, %v3235, 0
      %v3268 = vsel %vm2205, %v3236, 0
      %v3271 = vsel %vm2205, %v3237, 0
      %v3274 = vsel %vm2205, %v3238, 0
      %v3277 = vsel %vm2205, %v3239, 0
      %v3280 = vsel %vm2205, %v3240, 0
      %v3283 = vsel %vm2205, %v3241, 0
      %v3286 = vsel %vm2205, %v3242, 0
      %v3289 = vsel %vm2205, %v3243, 0
      %v3292 = vsel %vm2205, %v3244, 0
      %3294 = vmatpush.msra.mxu0 0.0
      %3295 = vmatpush.msra.mxu0 0.0
      %3296 = vmatpush.msra.mxu0 0.0
      %3297 = vmatpush.msra.mxu0 0.0
      %3298 = vmatpush.msra.mxu0 0.0
      %3299 = vmatpush.msra.mxu0 0.0
      %3300 = vmatpush.msra.mxu0 0.0
      %3301 = vmatpush.msra.mxu0 0.0
      %3302 = vmatpush.msra.mxu0 0.0
      %3303 = vmatpush.msra.mxu0 0.0
      %3304 = vmatpush.msra.mxu0 0.0
      %3305 = vmatpush.msra.mxu0 0.0
      %3306 = vmatpush.msra.mxu0 0.0
      %3307 = vmatpush.msra.mxu0 0.0
      %3308 = vmatpush.msra.mxu0 0.0
      %3309 = vmatpush.msra.mxu0 %v3245
      %3310 = vmatmul.f32.gmra.mxu0 %v3247
      %v3311 = vpop.f32.mrf.mxu0
      %v3312 = vadd.f32 0.0, %v3311
      %3313 = vmatmul.f32.gmra.mxu0 %v3250
      %v3314 = vpop.f32.mrf.mxu0
      %v3315 = vadd.f32 0.0, %v3314
      %3316 = vmatmul.f32.gmra.mxu0 %v3253
      %v3317 = vpop.f32.mrf.mxu0
      %v3318 = vadd.f32 0.0, %v3317
      %3319 = vmatmul.f32.gmra.mxu0 %v3256
      %v3320 = vpop.f32.mrf.mxu0
      %v3321 = vadd.f32 0.0, %v3320
      %3322 = vmatmul.f32.gmra.mxu0 %v3259
      %v3323 = vpop.f32.mrf.mxu0
      %v3324 = vadd.f32 0.0, %v3323
      %3325 = vmatmul.f32.gmra.mxu0 %v3262
      %v3326 = vpop.f32.mrf.mxu0
      %v3327 = vadd.f32 0.0, %v3326
      %3328 = vmatmul.f32.gmra.mxu0 %v3265
      %v3329 = vpop.f32.mrf.mxu0
      %v3330 = vadd.f32 0.0, %v3329
      %3331 = vmatmul.f32.gmra.mxu0 %v3268
      %v3332 = vpop.f32.mrf.mxu0
      %v3333 = vadd.f32 0.0, %v3332
      %3334 = vmatmul.f32.gmra.mxu0 %v3271
      %v3335 = vpop.f32.mrf.mxu0
      %v3336 = vadd.f32 0.0, %v3335
      %3337 = vmatmul.f32.gmra.mxu0 %v3274
      %v3338 = vpop.f32.mrf.mxu0
      %v3339 = vadd.f32 0.0, %v3338
      %3340 = vmatmul.f32.gmra.mxu0 %v3277
      %v3341 = vpop.f32.mrf.mxu0
      %v3342 = vadd.f32 0.0, %v3341
      %3343 = vmatmul.f32.gmra.mxu0 %v3280
      %v3344 = vpop.f32.mrf.mxu0
      %v3345 = vadd.f32 0.0, %v3344
      %3346 = vmatmul.f32.gmra.mxu0 %v3283
      %v3347 = vpop.f32.mrf.mxu0
      %v3348 = vadd.f32 0.0, %v3347
      %3349 = vmatmul.f32.gmra.mxu0 %v3286
      %v3350 = vpop.f32.mrf.mxu0
      %v3351 = vadd.f32 0.0, %v3350
      %3352 = vmatmul.f32.gmra.mxu0 %v3289
      %v3353 = vpop.f32.mrf.mxu0
      %v3354 = vadd.f32 0.0, %v3353
      %3355 = vmatmul.f32.gmra.mxu0 %v3292
      %v3356 = vpop.f32.mrf.mxu0
      %v3357 = vadd.f32 0.0, %v3356
      %3358 = vdwg.mxu0
      %v3359 = vadd.f32 %v3213, %v3312
      %v3360 = vadd.f32 %v3214, %v3315
      %v3361 = vadd.f32 %v3215, %v3318
      %v3362 = vadd.f32 %v3216, %v3321
      %v3363 = vadd.f32 %v3217, %v3324
      %v3364 = vadd.f32 %v3218, %v3327
      %v3365 = vadd.f32 %v3219, %v3330
      %v3366 = vadd.f32 %v3220, %v3333
      %v3367 = vadd.f32 %v3221, %v3336
      %v3368 = vadd.f32 %v3222, %v3339
      %v3369 = vadd.f32 %v3223, %v3342
      %v3370 = vadd.f32 %v3224, %v3345
      %v3371 = vadd.f32 %v3225, %v3348
      %v3372 = vadd.f32 %v3226, %v3351
      %v3373 = vadd.f32 %v3227, %v3354
      %v3374 = vadd.f32 %v3228, %v3357
      %v3375 = vld [vmem:[%s3082 + $0x2] sm:$0xff]
      %v3376 = vld [vmem:[%s3082 + $0xa] sm:$0xff]
      %v3377 = vld [vmem:[%s3082 + $0x1a] sm:$0xff]
      %v3378 = vld [vmem:[%s3082 + $0x22] sm:$0xff]
      %v3379 = vld [vmem:[%s3082 + $0x32] sm:$0xff]
      %v3380 = vld [vmem:[%s3082 + $0x3a] sm:$0xff]
      %v3381 = vld [vmem:[%s3082 + $0x4a] sm:$0xff]
      %v3382 = vld [vmem:[%s3082 + $0x52] sm:$0xff]
      %v3383 = vld [vmem:[%s3082 + $0x62] sm:$0xff]
      %v3384 = vld [vmem:[%s3082 + $0x6a] sm:$0xff]
      %v3385 = vld [vmem:[%s3082 + $0x7a] sm:$0xff]
      %v3386 = vld [vmem:[%s3082 + $0x82] sm:$0xff]
      %v3387 = vld [vmem:[%s3082 + $0x92] sm:$0xff]
      %v3388 = vld [vmem:[%s3082 + $0x9a] sm:$0xff]
      %v3389 = vld [vmem:[%s3082 + $0xaa] sm:$0xff]
      %v3390 = vld [vmem:[%s3082 + $0xb2] sm:$0xff]
      %v3391 = vld [vmem:[%s5 + $0x40] sm:$0xff]
      %v3393 = vsel %vm2205, %v3375, 0
      %v3396 = vsel %vm2205, %v3376, 0
      %v3399 = vsel %vm2205, %v3377, 0
      %v3402 = vsel %vm2205, %v3378, 0
      %v3405 = vsel %vm2205, %v3379, 0
      %v3408 = vsel %vm2205, %v3380, 0
      %v3411 = vsel %vm2205, %v3381, 0
      %v3414 = vsel %vm2205, %v3382, 0
      %v3417 = vsel %vm2205, %v3383, 0
      %v3420 = vsel %vm2205, %v3384, 0
      %v3423 = vsel %vm2205, %v3385, 0
      %v3426 = vsel %vm2205, %v3386, 0
      %v3429 = vsel %vm2205, %v3387, 0
      %v3432 = vsel %vm2205, %v3388, 0
      %v3435 = vsel %vm2205, %v3389, 0
      %v3438 = vsel %vm2205, %v3390, 0
      %3440 = vmatpush.msra.mxu0 0.0
      %3441 = vmatpush.msra.mxu0 0.0
      %3442 = vmatpush.msra.mxu0 0.0
      %3443 = vmatpush.msra.mxu0 0.0
      %3444 = vmatpush.msra.mxu0 0.0
      %3445 = vmatpush.msra.mxu0 0.0
      %3446 = vmatpush.msra.mxu0 0.0
      %3447 = vmatpush.msra.mxu0 0.0
      %3448 = vmatpush.msra.mxu0 0.0
      %3449 = vmatpush.msra.mxu0 0.0
      %3450 = vmatpush.msra.mxu0 0.0
      %3451 = vmatpush.msra.mxu0 0.0
      %3452 = vmatpush.msra.mxu0 0.0
      %3453 = vmatpush.msra.mxu0 0.0
      %3454 = vmatpush.msra.mxu0 0.0
      %3455 = vmatpush.msra.mxu0 %v3391
      %3456 = vmatmul.f32.gmra.mxu0 %v3393
      %v3457 = vpop.f32.mrf.mxu0
      %v3458 = vadd.f32 0.0, %v3457
      %3459 = vmatmul.f32.gmra.mxu0 %v3396
      %v3460 = vpop.f32.mrf.mxu0
      %v3461 = vadd.f32 0.0, %v3460
      %3462 = vmatmul.f32.gmra.mxu0 %v3399
      %v3463 = vpop.f32.mrf.mxu0
      %v3464 = vadd.f32 0.0, %v3463
      %3465 = vmatmul.f32.gmra.mxu0 %v3402
      %v3466 = vpop.f32.mrf.mxu0
      %v3467 = vadd.f32 0.0, %v3466
      %3468 = vmatmul.f32.gmra.mxu0 %v3405
      %v3469 = vpop.f32.mrf.mxu0
      %v3470 = vadd.f32 0.0, %v3469
      %3471 = vmatmul.f32.gmra.mxu0 %v3408
      %v3472 = vpop.f32.mrf.mxu0
      %v3473 = vadd.f32 0.0, %v3472
      %3474 = vmatmul.f32.gmra.mxu0 %v3411
      %v3475 = vpop.f32.mrf.mxu0
      %v3476 = vadd.f32 0.0, %v3475
      %3477 = vmatmul.f32.gmra.mxu0 %v3414
      %v3478 = vpop.f32.mrf.mxu0
      %v3479 = vadd.f32 0.0, %v3478
      %3480 = vmatmul.f32.gmra.mxu0 %v3417
      %v3481 = vpop.f32.mrf.mxu0
      %v3482 = vadd.f32 0.0, %v3481
      %3483 = vmatmul.f32.gmra.mxu0 %v3420
      %v3484 = vpop.f32.mrf.mxu0
      %v3485 = vadd.f32 0.0, %v3484
      %3486 = vmatmul.f32.gmra.mxu0 %v3423
      %v3487 = vpop.f32.mrf.mxu0
      %v3488 = vadd.f32 0.0, %v3487
      %3489 = vmatmul.f32.gmra.mxu0 %v3426
      %v3490 = vpop.f32.mrf.mxu0
      %v3491 = vadd.f32 0.0, %v3490
      %3492 = vmatmul.f32.gmra.mxu0 %v3429
      %v3493 = vpop.f32.mrf.mxu0
      %v3494 = vadd.f32 0.0, %v3493
      %3495 = vmatmul.f32.gmra.mxu0 %v3432
      %v3496 = vpop.f32.mrf.mxu0
      %v3497 = vadd.f32 0.0, %v3496
      %3498 = vmatmul.f32.gmra.mxu0 %v3435
      %v3499 = vpop.f32.mrf.mxu0
      %v3500 = vadd.f32 0.0, %v3499
      %3501 = vmatmul.f32.gmra.mxu0 %v3438
      %v3502 = vpop.f32.mrf.mxu0
      %v3503 = vadd.f32 0.0, %v3502
      %3504 = vdwg.mxu0
      %v3505 = vadd.f32 %v3359, %v3458
      %v3506 = vadd.f32 %v3360, %v3461
      %v3507 = vadd.f32 %v3361, %v3464
      %v3508 = vadd.f32 %v3362, %v3467
      %v3509 = vadd.f32 %v3363, %v3470
      %v3510 = vadd.f32 %v3364, %v3473
      %v3511 = vadd.f32 %v3365, %v3476
      %v3512 = vadd.f32 %v3366, %v3479
      %v3513 = vadd.f32 %v3367, %v3482
      %v3514 = vadd.f32 %v3368, %v3485
      %v3515 = vadd.f32 %v3369, %v3488
      %v3516 = vadd.f32 %v3370, %v3491
      %v3517 = vadd.f32 %v3371, %v3494
      %v3518 = vadd.f32 %v3372, %v3497
      %v3519 = vadd.f32 %v3373, %v3500
      %v3520 = vadd.f32 %v3374, %v3503
      %v3521 = vld [vmem:[%s6] sm:$0x1]
      %v3523 = vperm.slane %v3521, 0
      %v3525 = vadd.f32 %v3505, %v3523
      %v3526 = vadd.f32 %v3506, %v3523
      %v3527 = vadd.f32 %v3507, %v3523
      %v3528 = vadd.f32 %v3508, %v3523
      %v3529 = vadd.f32 %v3509, %v3523
      %v3530 = vadd.f32 %v3510, %v3523
      %v3531 = vadd.f32 %v3511, %v3523
      %v3532 = vadd.f32 %v3512, %v3523
      %v3533 = vadd.f32 %v3513, %v3523
      %v3534 = vadd.f32 %v3514, %v3523
      %v3535 = vadd.f32 %v3515, %v3523
      %v3536 = vadd.f32 %v3516, %v3523
      %v3537 = vadd.f32 %v3517, %v3523
      %v3538 = vadd.f32 %v3518, %v3523
      %v3539 = vadd.f32 %v3519, %v3523
      %v3540 = vadd.f32 %v3520, %v3523
      %v3541 = vmax.f32 %v3525, 0.0
      %v3542 = vmax.f32 %v3526, 0.0
      %v3543 = vmax.f32 %v3527, 0.0
      %v3544 = vmax.f32 %v3528, 0.0
      %v3545 = vmax.f32 %v3529, 0.0
      %v3546 = vmax.f32 %v3530, 0.0
      %v3547 = vmax.f32 %v3531, 0.0
      %v3548 = vmax.f32 %v3532, 0.0
      %v3549 = vmax.f32 %v3533, 0.0
      %v3550 = vmax.f32 %v3534, 0.0
      %v3551 = vmax.f32 %v3535, 0.0
      %v3552 = vmax.f32 %v3536, 0.0
      %v3553 = vmax.f32 %v3537, 0.0
      %v3554 = vmax.f32 %v3538, 0.0
      %v3555 = vmax.f32 %v3539, 0.0
      %v3556 = vmax.f32 %v3540, 0.0
      %3557 = vst.msk [vmem:[%s455] sm:$0xff] %vm2205, %v3541
      %3558 = vst.msk [vmem:[%s455 + $0x8] sm:$0xff] %vm2205, %v3542
      %3559 = vst.msk [vmem:[%s455 + $0x10] sm:$0xff] %vm2205, %v3543
      %3560 = vst.msk [vmem:[%s455 + $0x18] sm:$0xff] %vm2205, %v3544
      %3561 = vst.msk [vmem:[%s455 + $0x20] sm:$0xff] %vm2205, %v3545
      %3562 = vst.msk [vmem:[%s455 + $0x28] sm:$0xff] %vm2205, %v3546
      %3563 = vst.msk [vmem:[%s455 + $0x30] sm:$0xff] %vm2205, %v3547
      %3564 = vst.msk [vmem:[%s455 + $0x38] sm:$0xff] %vm2205, %v3548
      %3565 = vst.msk [vmem:[%s455 + $0x40] sm:$0xff] %vm2205, %v3549
      %3566 = vst.msk [vmem:[%s455 + $0x48] sm:$0xff] %vm2205, %v3550
      %3567 = vst.msk [vmem:[%s455 + $0x50] sm:$0xff] %vm2205, %v3551
      %3568 = vst.msk [vmem:[%s455 + $0x58] sm:$0xff] %vm2205, %v3552
      %3569 = vst.msk [vmem:[%s455 + $0x60] sm:$0xff] %vm2205, %v3553
      %3570 = vst.msk [vmem:[%s455 + $0x68] sm:$0xff] %vm2205, %v3554
      %3571 = vst.msk [vmem:[%s455 + $0x70] sm:$0xff] %vm2205, %v3555
      %3572 = vst.msk [vmem:[%s455 + $0x78] sm:$0xff] %vm2205, %v3556
      %s3573 = smul.u32 8, %s23
      %p3574 = scmp.lt.s32.totalorder %s22, 1
      %s3575 = scalar_select %p3574, %s22, 1
      %p3576 = scmp.lt.s32.totalorder %s3573, 15
      %s3577 = scalar_select %p3576, %s3573, 15
      %s3578 = smul.addr %s3577, 2
      %s3579 = smul.addr %s3575, 32
      %s3580 = sadd.s32 %s3578, %s3579
      %s3581 = smul.addr %s3580, 8
      %s3582 = scalar_lea.vmem %s7, %s3581
      // Predicated region
      $region65: #{tpu_custom_call.1} parent=47 // pred_check
        %p3583 = pneg %p234
      $region66: #{tpu_custom_call.1} parent=47 // pred_check_branch
        %3585 = sbr.rel (%p3583) target = $region68
      $region67: #{tpu_custom_call.1} parent=47 // pred_region
        %s3586 = smul.u32 8, %s23
      $region68: #{tpu_custom_call.1} parent=47 // pred_fallthru
        _
    $region48: #{tpu_custom_call.1} parent=5 // pred_fallthru
      _
    %p3587 = scmp.le.s32.totalorder 2, %s13
    // Predicated region
    $region69: #{tpu_custom_call.1} parent=5 // pred_check
      %p3588 = pneg %p3587
    $region70: #{tpu_custom_call.1} parent=5 // pred_check_branch
      %3590 = sbr.rel (%p3588) target = $region72
    $region71: #{tpu_custom_call.1} parent=5 // pred_region
      %s3591 = ssub.s32 %s13, 2
      // Predicated region
      $region73: #{tpu_custom_call.1} parent=71 // pred_check
        %p3592 = pneg %p240
      $region74: #{tpu_custom_call.1} parent=71 // pred_check_branch
        %3594 = sbr.rel (%p3592) target = $region76
      $region75: #{tpu_custom_call.1} parent=71 // pred_region
        %s3595 = smul.u32 8, %s25
        %p3596 = scmp.lt.s32.totalorder %s24, 1
        %s3597 = scalar_select %p3596, %s24, 1
        %p3598 = scmp.lt.s32.totalorder %s3595, 15
        %s3599 = scalar_select %p3598, %s3595, 15
        %s3600 = smul.addr %s3599, 2
        %s3601 = smul.addr %s3597, 32
        %s3602 = sadd.s32 %s3600, %s3601
        %s3603 = smul.addr %s3602, 8
        %s3604 = scalar_lea.vmem %s7, %s3603
      $region76: #{tpu_custom_call.1} parent=71 // pred_fallthru
        _
    $region72: #{tpu_custom_call.1} parent=5 // pred_fallthru
      _
  $region6: #{tpu_custom_call.1} parent=0 // loop_footer
    %s17 = sadd.s32 1, %s13
  $region7: #{tpu_custom_call.1} parent=0 // loop_footer_branch
    %12 = sbr.rel target = $region3
  $region8: #{tpu_custom_call.1} parent=0 // loop_exit
    _

</llo_original>
